<compile_context>
chip_gen: v7x
topology: tpu7x:2x2x1
jax: 0.10.0
libtpu: 0.0.40
codegen_flags: <defaults>
</compile_context>

<pallas_src>
import functools

import jax
import jax.numpy as jnp
from jax.experimental import pallas as pl
from jax.experimental.pallas import tpu as pltpu

C_FEAT = 512 * 4        # ResNet-50 final channel count (fc in_features = 2048)
CLASS_NUM = 16          # class_num (undefined in the reference snippet; pick small)


# ----------------------------------------------------------------------------
# Fused kernel.  For one batch sample n and one spatial tile s:
#   h       = relu(x_tile @ stem_w + stem_b)     (ts, C_FEAT)     K = C_in
#   partial = h @ fc_w                           (ts, CLASS_NUM)  K = 2048 (MXU-friendly)
#   acc    += sum over tile rows of partial      (1, CLASS_NUM)
# On the last spatial tile: logits = acc / (H*W) + fc_b.
# The 2048-wide intermediate lives only in VMEM/vregs — no HBM round trip.
# ----------------------------------------------------------------------------
def fused_kernel(x_ref, wstem_ref, bstem_ref, wfc_ref, bfc_ref,
                 o_ref, acc_ref, *, hw, ts):
    s = pl.program_id(1)

    @pl.when(s == 0)
    def _init():
        acc_ref[...] = jnp.zeros_like(acc_ref)

    xb = x_ref[0]                                             # (ts, C_in)
    h = jnp.dot(xb, wstem_ref[...], preferred_element_type=jnp.float32)
    h = jnp.maximum(h + bstem_ref[...], 0.0)                  # (ts, C_FEAT)
    partial = jnp.dot(h, wfc_ref[...],
                      preferred_element_type=jnp.float32)     # (ts, CLASS_NUM)

    if hw % ts != 0:
        # Last spatial tile is partial: zero the out-of-bounds rows before they
        # enter the running sum (fixes the silent row-drop of the old version).
        rows = jax.lax.broadcasted_iota(jnp.int32, partial.shape, 0) + s * ts
        partial = jnp.where(rows < hw, partial, 0.0)

    acc_ref[...] += jnp.sum(partial, axis=0, keepdims=True)   # (1, CLASS_NUM)

    @pl.when(s == pl.num_programs(1) - 1)
    def _finalize():
        inv_hw = jnp.float32(1.0 / hw)
        o_ref[0] = (acc_ref[...] * inv_hw + bfc_ref[...]).astype(o_ref.dtype)


def _spatial_tile(hw, max_spatial_tile):
    if hw <= max_spatial_tile:
        return hw                       # full spatial extent -> always a legal block dim
    return (max_spatial_tile // 8) * 8  # keep the sublane dim a multiple of 8


def mynet_forward(x_nchw, params, *, max_spatial_tile=512):
    N, C_in, H, W = x_nchw.shape
    HW = H * W

    # One layout change in the wrapper: NCHW -> (N, HW, C_in) so the kernel reads
    # contiguous spatial rows.  Negligible at these sizes; a real conv backbone would
    # consume the NCHW input directly.
    x_rows = jnp.transpose(x_nchw, (0, 2, 3, 1)).reshape(N, HW, C_in)

    ts = _spatial_tile(HW, max_spatial_tile)
    s_tiles = pl.cdiv(HW, ts)           # partial last tile handled by in-kernel masking

    wstem = params["stem_w"]                       # (C_in, C_FEAT)
    bstem = params["stem_b"].reshape(1, C_FEAT)
    wfc = params["fc_w"]                           # (C_FEAT, CLASS_NUM)
    bfc = params["fc_b"].reshape(1, CLASS_NUM)

    kernel = functools.partial(fused_kernel, hw=HW, ts=ts)

    out = pl.pallas_call(
        kernel,
        out_shape=jax.ShapeDtypeStruct((N, 1, CLASS_NUM), jnp.float32),
        grid_spec=pltpu.PrefetchScalarGridSpec(
            num_scalar_prefetch=0,
            # Batch leading and "parallel" (v7x's two TensorCores both get work);
            # spatial reduction axis innermost and "arbitrary" (resident accumulator).
            grid=(N, s_tiles),
            in_specs=[
                pl.BlockSpec((1, ts, C_in), lambda n, s: (n, s, 0)),
                pl.BlockSpec((C_in, C_FEAT), lambda n, s: (0, 0)),
                pl.BlockSpec((1, C_FEAT), lambda n, s: (0, 0)),
                pl.BlockSpec((C_FEAT, CLASS_NUM), lambda n, s: (0, 0)),
                pl.BlockSpec((1, CLASS_NUM), lambda n, s: (0, 0)),
            ],
            out_specs=pl.BlockSpec((1, 1, CLASS_NUM), lambda n, s: (n, 0, 0)),
            scratch_shapes=[pltpu.VMEM((1, CLASS_NUM), jnp.float32)],
        ),
        compiler_params=pltpu.CompilerParams(
            dimension_semantics=("parallel", "arbitrary")),
    )(x_rows, wstem, bstem, wfc, bfc)

    return out.reshape(N, CLASS_NUM)


def init_params(key, c_in):
    k1, k2 = jax.random.split(key, 2)
    # stand-in backbone params
    stem_w = jax.random.normal(k1, (c_in, C_FEAT), jnp.float32) * 0.05
    stem_b = jnp.zeros((C_FEAT,), jnp.float32)
    # fc: xavier-normal weight, zero bias (matches torch init in __init__)
    fan_in, fan_out = C_FEAT, CLASS_NUM
    std = (2.0 / (fan_in + fan_out)) ** 0.5
    fc_w = jax.random.normal(k2, (C_FEAT, CLASS_NUM), jnp.float32) * std
    fc_b = jnp.zeros((CLASS_NUM,), jnp.float32)
    return {"stem_w": stem_w, "stem_b": stem_b, "fc_w": fc_w, "fc_b": fc_b}


def reference_forward(x_nchw, params):
    N, C_in, H, W = x_nchw.shape
    x_rows = jnp.transpose(x_nchw, (0, 2, 3, 1)).reshape(N, H * W, C_in)
    feat = jnp.maximum(
        jnp.einsum("nsc,cf->nsf", x_rows, params["stem_w"]) + params["stem_b"], 0.0)
    pooled = feat.mean(axis=1)
    return pooled @ params["fc_w"] + params["fc_b"]


if __name__ == "__main__":
    key = jax.random.PRNGKey(0)
    kx, kx2, kp = jax.random.split(key, 3)

    # Case 1: toy shape from the spec; spatial tile 128 exercises the multi-step
    # spatial accumulation path (grid = (2, 2)).
    N, C_in, H, W = 2, 4, 16, 16
    x = jax.random.normal(kx, (N, C_in, H, W), jnp.float32)
    params = init_params(kp, C_in)

    fwd = jax.jit(functools.partial(mynet_forward, max_spatial_tile=128))
    logits = fwd(x, params)
    jax.block_until_ready(logits)
    assert logits.shape == (N, CLASS_NUM), logits.shape
    ref = reference_forward(x, params)
    assert jnp.allclose(logits, ref, atol=2e-4, rtol=2e-4)

    # Case 2: ragged spatial extent (HW=25, not a multiple of the tile) exercises the
    # cdiv + in-kernel masking path that the previous version silently dropped rows on.
    x2 = jax.random.normal(kx2, (N, C_in, 5, 5), jnp.float32)
    fwd2 = jax.jit(functools.partial(mynet_forward, max_spatial_tile=16))
    logits2 = fwd2(x2, params)
    jax.block_until_ready(logits2)
    ref2 = reference_forward(x2, params)
    assert jnp.allclose(logits2, ref2, atol=2e-4, rtol=2e-4)

    print("KERNEL_OK")
</pallas_src>

<mosaic_0001>
module attributes {stable_mosaic.version = 11 : i64} {
  func.func @fused_kernel(%arg0: i32, %arg1: i32, %arg2: memref<1x128x4xf32, #tpu.memory_space<vmem>>, %arg3: memref<4x2048xf32, #tpu.memory_space<vmem>>, %arg4: memref<1x2048xf32, #tpu.memory_space<vmem>>, %arg5: memref<2048x16xf32, #tpu.memory_space<vmem>>, %arg6: memref<1x16xf32, #tpu.memory_space<vmem>>, %arg7: memref<1x1x16xf32, #tpu.memory_space<vmem>>, %arg8: memref<1x16xf32, #tpu.memory_space<vmem>>) attributes {dimension_semantics = [#tpu.dimension_semantics<parallel>, #tpu.dimension_semantics<arbitrary>], iteration_bounds = array<i64: 2, 2>, scalar_prefetch = 0 : i64, scratch_operands = 1 : i64, tpu.core_type = #tpu.core_type<tc>, window_params = [{transform_indices = @transform_0, window_bounds = array<i64: 1, 128, 4>}, {pipeline_mode = #tpu.pipeline_mode<synchronous>, transform_indices = @transform_1, window_bounds = array<i64: 4, 2048>}, {pipeline_mode = #tpu.pipeline_mode<synchronous>, transform_indices = @transform_2, window_bounds = array<i64: 1, 2048>}, {pipeline_mode = #tpu.pipeline_mode<synchronous>, transform_indices = @transform_3, window_bounds = array<i64: 2048, 16>}, {pipeline_mode = #tpu.pipeline_mode<synchronous>, transform_indices = @transform_4, window_bounds = array<i64: 1, 16>}, {transform_indices = @transform_5, window_bounds = array<i64: 1, 1, 16>}]} {
    %c0_i32 = arith.constant 0 : i32
    %0 = arith.cmpi eq, %arg1, %c0_i32 : i32
    %1 = arith.extui %0 : i1 to i32
    %c0_i32_0 = arith.constant 0 : i32
    %2 = arith.cmpi ne, %1, %c0_i32_0 : i32
    scf.if %2 {
      %cst_17 = arith.constant 0.000000e+00 : f32
      %22 = vector.broadcast %cst_17 : f32 to vector<1x16xf32>
      %c0_18 = arith.constant 0 : index
      %c0_19 = arith.constant 0 : index
      %23 = vector.load %arg8[%c0_18, %c0_19] : memref<1x16xf32, #tpu.memory_space<vmem>>, vector<1x16xf32>
      tpu.vector_store %arg8[%c0_18, %c0_19], %22 {strides = array<i32>} : memref<1x16xf32, #tpu.memory_space<vmem>>, vector<1x16xf32>,
    } else {
    }
    %c0 = arith.constant 0 : index
    %c0_1 = arith.constant 0 : index
    %c0_2 = arith.constant 0 : index
    %3 = vector.load %arg2[%c0, %c0_1, %c0_2] : memref<1x128x4xf32, #tpu.memory_space<vmem>>, vector<1x128x4xf32>
    %4 = vector.shape_cast %3 : vector<1x128x4xf32> to vector<128x4xf32>
    %c0_3 = arith.constant 0 : index
    %c0_4 = arith.constant 0 : index
    %5 = vector.load %arg3[%c0_3, %c0_4] : memref<4x2048xf32, #tpu.memory_space<vmem>>, vector<4x2048xf32>
    %cst = arith.constant dense<0.000000e+00> : vector<128x2048xf32>
    %6 = tpu.matmul %4, %5, %cst {dimension_numbers = #tpu.dot_dimension_numbers<[1], [0], [0], [1], [0, 0, 1, 1], [], []>} : vector<128x4xf32>, vector<4x2048xf32>, vector<128x2048xf32> -> vector<128x2048xf32>
    %c0_5 = arith.constant 0 : index
    %c0_6 = arith.constant 0 : index
    %7 = vector.load %arg4[%c0_5, %c0_6] : memref<1x2048xf32, #tpu.memory_space<vmem>>, vector<1x2048xf32>
    %8 = vector.broadcast %7 : vector<1x2048xf32> to vector<128x2048xf32>
    %9 = arith.addf %6, %8 : vector<128x2048xf32>
    %cst_7 = arith.constant 0.000000e+00 : f32
    %10 = vector.broadcast %cst_7 : f32 to vector<128x2048xf32>
    %11 = arith.maximumf %9, %10 : vector<128x2048xf32>
    %c0_8 = arith.constant 0 : index
    %c0_9 = arith.constant 0 : index
    %12 = vector.load %arg5[%c0_8, %c0_9] : memref<2048x16xf32, #tpu.memory_space<vmem>>, vector<2048x16xf32>
    %cst_10 = arith.constant dense<0.000000e+00> : vector<128x16xf32>
    %13 = tpu.matmul %11, %12, %cst_10 {dimension_numbers = #tpu.dot_dimension_numbers<[1], [0], [0], [1], [0, 0, 1, 1], [], []>} : vector<128x2048xf32>, vector<2048x16xf32>, vector<128x16xf32> -> vector<128x16xf32>
    %c0_11 = arith.constant 0 : index
    %c0_12 = arith.constant 0 : index
    %14 = vector.load %arg8[%c0_11, %c0_12] : memref<1x16xf32, #tpu.memory_space<vmem>>, vector<1x16xf32>
    %cst_13 = arith.constant dense<0.000000e+00> : vector<16xf32>
    %15 = vector.multi_reduction <add>, %13, %cst_13 [0] : vector<128x16xf32> to vector<16xf32>
    %16 = vector.shape_cast %15 : vector<16xf32> to vector<1x16xf32>
    %17 = arith.addf %14, %16 : vector<1x16xf32>
    %c0_14 = arith.constant 0 : index
    %c0_15 = arith.constant 0 : index
    %18 = vector.load %arg8[%c0_14, %c0_15] : memref<1x16xf32, #tpu.memory_space<vmem>>, vector<1x16xf32>
    tpu.vector_store %arg8[%c0_14, %c0_15], %17 {strides = array<i32>} : memref<1x16xf32, #tpu.memory_space<vmem>>, vector<1x16xf32>,
    %c1_i32 = arith.constant 1 : i32
    %19 = arith.cmpi eq, %arg1, %c1_i32 : i32
    %20 = arith.extui %19 : i1 to i32
    %c0_i32_16 = arith.constant 0 : i32
    %21 = arith.cmpi ne, %20, %c0_i32_16 : i32
    scf.if %21 {
      %c0_17 = arith.constant 0 : index
      %c0_18 = arith.constant 0 : index
      %22 = vector.load %arg8[%c0_17, %c0_18] : memref<1x16xf32, #tpu.memory_space<vmem>>, vector<1x16xf32>
      %cst_19 = arith.constant 3.906250e-03 : f32
      %23 = vector.broadcast %cst_19 : f32 to vector<1x16xf32>
      %24 = arith.mulf %22, %23 : vector<1x16xf32>
      %c0_20 = arith.constant 0 : index
      %c0_21 = arith.constant 0 : index
      %25 = vector.load %arg6[%c0_20, %c0_21] : memref<1x16xf32, #tpu.memory_space<vmem>>, vector<1x16xf32>
      %26 = arith.addf %24, %25 : vector<1x16xf32>
      %c0_22 = arith.constant 0 : index
      %c0_23 = arith.constant 0 : index
      %c0_24 = arith.constant 0 : index
      %27 = vector.load %arg7[%c0_22, %c0_23, %c0_24] : memref<1x1x16xf32, #tpu.memory_space<vmem>>, vector<1x1x16xf32>
      %28 = vector.shape_cast %27 : vector<1x1x16xf32> to vector<1x16xf32>
      %29 = vector.shape_cast %26 : vector<1x16xf32> to vector<1x1x16xf32>
      tpu.vector_store %arg7[%c0_22, %c0_23, %c0_24], %29 {strides = array<i32>} : memref<1x1x16xf32, #tpu.memory_space<vmem>>, vector<1x1x16xf32>,
    } else {
    }
    return
  }
  func.func @transform_0(%arg0: i32, %arg1: i32) -> (i32, i32, i32) {
    %c0_i32 = arith.constant 0 : i32
    %c0_i32_0 = arith.constant 0 : i32
    return %arg0, %arg1, %c0_i32 : i32, i32, i32
  }
  func.func @transform_1(%arg0: i32, %arg1: i32) -> (i32, i32) {
    %c0_i32 = arith.constant 0 : i32
    %c0_i32_0 = arith.constant 0 : i32
    %c0_i32_1 = arith.constant 0 : i32
    return %c0_i32, %c0_i32_0 : i32, i32
  }
  func.func @transform_2(%arg0: i32, %arg1: i32) -> (i32, i32) {
    %c0_i32 = arith.constant 0 : i32
    %c0_i32_0 = arith.constant 0 : i32
    %c0_i32_1 = arith.constant 0 : i32
    return %c0_i32, %c0_i32_0 : i32, i32
  }
  func.func @transform_3(%arg0: i32, %arg1: i32) -> (i32, i32) {
    %c0_i32 = arith.constant 0 : i32
    %c0_i32_0 = arith.constant 0 : i32
    %c0_i32_1 = arith.constant 0 : i32
    return %c0_i32, %c0_i32_0 : i32, i32
  }
  func.func @transform_4(%arg0: i32, %arg1: i32) -> (i32, i32) {
    %c0_i32 = arith.constant 0 : i32
    %c0_i32_0 = arith.constant 0 : i32
    %c0_i32_1 = arith.constant 0 : i32
    return %c0_i32, %c0_i32_0 : i32, i32
  }
  func.func @transform_5(%arg0: i32, %arg1: i32) -> (i32, i32, i32) {
    %c0_i32 = arith.constant 0 : i32
    %c0_i32_0 = arith.constant 0 : i32
    %c0_i32_1 = arith.constant 0 : i32
    return %arg0, %c0_i32, %c0_i32_0 : i32, i32, i32
  }
}

</mosaic_0001>

<llo_original>
// kernel: mynet_forward.1
$region0: #{mynet_forward.1}
  #allocation0 [shape = 'u32[]', space=smem, size = 0x4, offset = 0x4, fixed_abs, tag = 'smem constant byte address 0x4 - core index']
  #allocation1 [shape = 'u32[144,128]{1,0:T(1,128)}', space=vmem, size = 0x12000, scoped, tag = 'internal scratch']
  #allocation2 [shape = 'f32[1,16]{1,0:T(1,128)}', space=vmem, size = 0x200, scoped, tag = 'scratch operand']
  %s0 = inlined_call_operand.vmem [shape: f32[2,256,4], index: 0, kind: input, shape index: {}]
  %s1 = inlined_call_operand.vmem [shape: f32[4,2048], index: 1, kind: input, shape index: {}]
  %s2 = inlined_call_operand.vmem [shape: f32[1,2048], index: 2, kind: input, shape index: {}]
  %s3 = inlined_call_operand.vmem [shape: f32[2048,16], index: 3, kind: input, shape index: {}]
  %s4 = inlined_call_operand.vmem [shape: f32[1,16], index: 4, kind: input, shape index: {}]
  %s5 = inlined_call_operand.hbm [shape: f32[2,1,16], index: 5, kind: output, shape index: {}]
  %s6 = sld [smem:[#allocation0]]
  $region61: #{mynet_forward.1} parent=0
    _
  %s8 = ssub.s32 1, %s6
  %s9 = scalar_select 0, %s8, %s6
  $region1: #{mynet_forward.1} parent=0
    #allocation3 [shape = 'u8[1024]{0}', space=vmem, size = 0x400, scoped, tag = 'output window, operand 0']
    #allocation4 [shape = 's32[2]{0}', space=sflag, size = 0x8, scoped, tag = 'scoped memory for mynet_forward.1']
    %10 = vsyncpa [#allocation4], 0
    %s11 = scalar_lea.sflag [#allocation4], 1
    %12 = vsyncpa %s11, 0
    loop: start=0, step=1, limit=6
    $region2: #{mynet_forward.1} parent=1 // loop_pre_header
      _
    $region3: #{mynet_forward.1} parent=1 // loop_header
      %s14 = sphi 0, %s18
      %p15 = scmp.ge.s32.totalorder %s14, 6
      %s21 = sphi 0, %s33
      %s22 = sphi 0, %s29
      %s23 = sphi 0, %s21
      %s24 = sphi 0, %s22
      %s25 = sphi 0, %s23
      %s26 = sphi 0, %s24
      %s38 = sphi 0, %s40
      %s41 = sphi 0, %s38
      %s42 = sphi 0, %s41
      %s58 = sphi 0, %s42
      %s62 = sphi 0, %s62
      %s64 = sphi 0, %s62
      %s65 = sphi 0, %s64
      %s79 = sphi 0, %s65
      %s83 = sphi 0, %s83
      %s85 = sphi 0, %s83
      %s86 = sphi 0, %s85
      %s100 = sphi 0, %s86
      %s104 = sphi 0, %s104
      %s106 = sphi 0, %s104
      %s107 = sphi 0, %s106
      %s121 = sphi 0, %s107
      %s125 = sphi 0, %s125
      %s127 = sphi 0, %s125
      %s128 = sphi 0, %s127
      %s142 = sphi 0, %s128
      %s148 = sphi 0, %s150
      %s151 = sphi 0, %s148
      %s152 = sphi 0, %s151
      %s168 = sphi 0, %s152
    $region4: #{mynet_forward.1} parent=1 // loop_header_branch
      %17 = sbr.rel (%p15) target = $region8
    $region5: #{mynet_forward.1} parent=1 // loop_body
      %s19 = ssub.s32 %s14, 1
      %s20 = ssub.s32 %s14, 2
      %s27 = sadd.s32 1, %s22
      %p28 = scmp.ge.s32.totalorder %s27, 2
      %s29 = scalar_select %p28, 0, %s27
      %s30 = sadd.s32 1, %s21
      %s31 = scalar_select %p28, %s30, %s21
      %p32 = scmp.ge.s32.totalorder %s31, 2
      %s33 = scalar_select %p32, 0, %s31
      %s34 = ssub.s32 %s21, %s33
      %s35 = ssub.s32 %s22, %s29
      %s36 = sor.u32 %s34, %s35
      %p37 = scmp.eq.s32.totalorder %s36, 0
      %s39 = sadd.s32 %s38, 1
      %s40 = scalar_select %p37, %s38, %s39
      %p43 = pneg %p37
      %p44 = scmp.eq.s32.totalorder %s14, 3
      %p45 = por %p43, %p44
      %p46 = scmp.ne.s32.totalorder %s38, %s41
      %p47 = scmp.eq.s32.totalorder %s14, 0
      %p48 = por %p46, %p47
      %p49 = scmp.ne.s32.totalorder %s38, %s41
      %p50 = scmp.eq.s32.totalorder %s19, 3
      %p51 = por %p49, %p50
      %p52 = scmp.ne.s32.totalorder %s41, %s42
      %p53 = scmp.eq.s32.totalorder %s19, 0
      %p54 = por %p52, %p53
      %p55 = scmp.ne.s32.totalorder %s41, %s42
      %p56 = scmp.eq.s32.totalorder %s20, 3
      %p57 = por %p55, %p56
      %p59 = scmp.ne.s32.totalorder %s42, %s58
      %p60 = scmp.eq.s32.totalorder %s20, 0
      %p61 = por %p59, %p60
      %s63 = sadd.s32 %s62, 1
      %p66 = scmp.eq.s32.totalorder %s14, 3
      %p67 = scmp.ne.s32.totalorder %s62, %s64
      %p68 = scmp.eq.s32.totalorder %s14, 0
      %p69 = por %p67, %p68
      %p70 = scmp.ne.s32.totalorder %s62, %s64
      %p71 = scmp.eq.s32.totalorder %s19, 3
      %p72 = por %p70, %p71
      %p73 = scmp.ne.s32.totalorder %s64, %s65
      %p74 = scmp.eq.s32.totalorder %s19, 0
      %p75 = por %p73, %p74
      %p76 = scmp.ne.s32.totalorder %s64, %s65
      %p77 = scmp.eq.s32.totalorder %s20, 3
      %p78 = por %p76, %p77
      %p80 = scmp.ne.s32.totalorder %s65, %s79
      %p81 = scmp.eq.s32.totalorder %s20, 0
      %p82 = por %p80, %p81
      %s84 = sadd.s32 %s83, 1
      %p87 = scmp.eq.s32.totalorder %s14, 3
      %p88 = scmp.ne.s32.totalorder %s83, %s85
      %p89 = scmp.eq.s32.totalorder %s14, 0
      %p90 = por %p88, %p89
      %p91 = scmp.ne.s32.totalorder %s83, %s85
      %p92 = scmp.eq.s32.totalorder %s19, 3
      %p93 = por %p91, %p92
      %p94 = scmp.ne.s32.totalorder %s85, %s86
      %p95 = scmp.eq.s32.totalorder %s19, 0
      %p96 = por %p94, %p95
      %p97 = scmp.ne.s32.totalorder %s85, %s86
      %p98 = scmp.eq.s32.totalorder %s20, 3
      %p99 = por %p97, %p98
      %p101 = scmp.ne.s32.totalorder %s86, %s100
      %p102 = scmp.eq.s32.totalorder %s20, 0
      %p103 = por %p101, %p102
      %s105 = sadd.s32 %s104, 1
      %p108 = scmp.eq.s32.totalorder %s14, 3
      %p109 = scmp.ne.s32.totalorder %s104, %s106
      %p110 = scmp.eq.s32.totalorder %s14, 0
      %p111 = por %p109, %p110
      %p112 = scmp.ne.s32.totalorder %s104, %s106
      %p113 = scmp.eq.s32.totalorder %s19, 3
      %p114 = por %p112, %p113
      %p115 = scmp.ne.s32.totalorder %s106, %s107
      %p116 = scmp.eq.s32.totalorder %s19, 0
      %p117 = por %p115, %p116
      %p118 = scmp.ne.s32.totalorder %s106, %s107
      %p119 = scmp.eq.s32.totalorder %s20, 3
      %p120 = por %p118, %p119
      %p122 = scmp.ne.s32.totalorder %s107, %s121
      %p123 = scmp.eq.s32.totalorder %s20, 0
      %p124 = por %p122, %p123
      %s126 = sadd.s32 %s125, 1
      %p129 = scmp.eq.s32.totalorder %s14, 3
      %p130 = scmp.ne.s32.totalorder %s125, %s127
      %p131 = scmp.eq.s32.totalorder %s14, 0
      %p132 = por %p130, %p131
      %p133 = scmp.ne.s32.totalorder %s125, %s127
      %p134 = scmp.eq.s32.totalorder %s19, 3
      %p135 = por %p133, %p134
      %p136 = scmp.ne.s32.totalorder %s127, %s128
      %p137 = scmp.eq.s32.totalorder %s19, 0
      %p138 = por %p136, %p137
      %p139 = scmp.ne.s32.totalorder %s127, %s128
      %p140 = scmp.eq.s32.totalorder %s20, 3
      %p141 = por %p139, %p140
      %p143 = scmp.ne.s32.totalorder %s128, %s142
      %p144 = scmp.eq.s32.totalorder %s20, 0
      %p145 = por %p143, %p144
      %s146 = ssub.s32 %s21, %s33
      %p147 = scmp.eq.s32.totalorder %s146, 0
      %s149 = sadd.s32 %s148, 1
      %s150 = scalar_select %p147, %s148, %s149
      %p153 = pneg %p147
      %p154 = scmp.eq.s32.totalorder %s14, 3
      %p155 = por %p153, %p154
      %p156 = scmp.ne.s32.totalorder %s148, %s151
      %p157 = scmp.eq.s32.totalorder %s14, 0
      %p158 = por %p156, %p157
      %p159 = scmp.ne.s32.totalorder %s148, %s151
      %p160 = scmp.eq.s32.totalorder %s19, 3
      %p161 = por %p159, %p160
      %p162 = scmp.ne.s32.totalorder %s151, %s152
      %p163 = scmp.eq.s32.totalorder %s19, 0
      %p164 = por %p162, %p163
      %p165 = scmp.ne.s32.totalorder %s151, %s152
      %p166 = scmp.eq.s32.totalorder %s20, 3
      %p167 = por %p165, %p166
      %p169 = scmp.ne.s32.totalorder %s152, %s168
      %p170 = scmp.eq.s32.totalorder %s20, 0
      %p171 = por %p169, %p170
      %p172 = scmp.le.s32.totalorder 1, %s14
      %p173 = scmp.lt.s32.totalorder %s14, 5
      %p174 = pnand %p172, %p173
      %p175 = pneg %p174
      // Predicated region
      $region9: #{mynet_forward.1} parent=5 // pred_check
        _
      $region10: #{mynet_forward.1} parent=5 // pred_check_branch
        %177 = sbr.rel (%p174) target = $region12
      $region11: #{mynet_forward.1} parent=5 // pred_region
        %s178 = ssub.s32 %s14, 1
        // Predicated region
        $region13: #{mynet_forward.1} parent=11 // pred_check
          %p179 = pneg %p75
        $region14: #{mynet_forward.1} parent=11 // pred_check_branch
          %181 = sbr.rel (%p179) target = $region16
        $region15: #{mynet_forward.1} parent=11 // pred_region
          _
        $region16: #{mynet_forward.1} parent=11 // pred_fallthru
          _
        // Predicated region
        $region17: #{mynet_forward.1} parent=11 // pred_check
          %p182 = pneg %p96
        $region18: #{mynet_forward.1} parent=11 // pred_check_branch
          %184 = sbr.rel (%p182) target = $region20
        $region19: #{mynet_forward.1} parent=11 // pred_region
          _
        $region20: #{mynet_forward.1} parent=11 // pred_fallthru
          _
        // Predicated region
        $region21: #{mynet_forward.1} parent=11 // pred_check
          %p185 = pneg %p117
        $region22: #{mynet_forward.1} parent=11 // pred_check_branch
          %187 = sbr.rel (%p185) target = $region24
        $region23: #{mynet_forward.1} parent=11 // pred_region
          _
        $region24: #{mynet_forward.1} parent=11 // pred_fallthru
          _
        // Predicated region
        $region25: #{mynet_forward.1} parent=11 // pred_check
          %p188 = pneg %p138
        $region26: #{mynet_forward.1} parent=11 // pred_check_branch
          %190 = sbr.rel (%p188) target = $region28
        $region27: #{mynet_forward.1} parent=11 // pred_region
          _
        $region28: #{mynet_forward.1} parent=11 // pred_fallthru
          _
      $region12: #{mynet_forward.1} parent=5 // pred_fallthru
        _
      %p191 = scmp.lt.s32.totalorder %s14, 4
      // Predicated region
      $region29: #{mynet_forward.1} parent=5 // pred_check
        %p192 = pneg %p191
      $region30: #{mynet_forward.1} parent=5 // pred_check_branch
        %194 = sbr.rel (%p192) target = $region32
      $region31: #{mynet_forward.1} parent=5 // pred_region
        // Predicated region
        $region33: #{mynet_forward.1} parent=31 // pred_check
          %p195 = pneg %p48
        $region34: #{mynet_forward.1} parent=31 // pred_check_branch
          %197 = sbr.rel (%p195) target = $region36
        $region35: #{mynet_forward.1} parent=31 // pred_region
          %s198 = smul.u32 16, %s22
          %p199 = scmp.lt.s32.totalorder %s21, 1
          %s200 = scalar_select %p199, %s21, 1
          %p201 = scmp.lt.s32.totalorder %s198, 31
          %s202 = scalar_select %p201, %s198, 31
          %s203 = smul.addr %s200, 32
          %s204 = sadd.s32 %s202, %s203
          %s205 = smul.addr %s204, 8
          %s206 = scalar_lea.vmem %s0, %s205
          %s207 = smul.u32 16, %s22
        $region36: #{mynet_forward.1} parent=31 // pred_fallthru
          _
      $region32: #{mynet_forward.1} parent=5 // pred_fallthru
        _
      %p208 = scmp.le.s32.totalorder 1, %s14
      %p209 = scmp.lt.s32.totalorder %s14, 5
      %p210 = pnand %p208, %p209
      %p211 = pneg %p210
      // Predicated region
      $region37: #{mynet_forward.1} parent=5 // pred_check
        _
      $region38: #{mynet_forward.1} parent=5 // pred_check_branch
        %213 = sbr.rel (%p210) target = $region40
      $region39: #{mynet_forward.1} parent=5 // pred_region
        %s214 = ssub.s32 %s14, 1
        %s215 = smul.u32 16, %s24
        %p216 = scmp.lt.s32.totalorder %s23, 1
        %s217 = scalar_select %p216, %s23, 1
        %p218 = scmp.lt.s32.totalorder %s215, 31
        %s219 = scalar_select %p218, %s215, 31
        %s220 = smul.addr %s217, 32
        %s221 = sadd.s32 %s219, %s220
        %s222 = smul.addr %s221, 8
        %s223 = scalar_lea.vmem %s0, %s222
        %p224 = pneg %p54
        %p225 = pneg %p51
        %p226 = pneg %p75
        %p227 = pneg %p72
        %p228 = pneg %p96
        %p229 = pneg %p93
        %p230 = pneg %p117
        %p231 = pneg %p114
        %p232 = pneg %p138
        %p233 = pneg %p135
        %p234 = pneg %p164
        %p235 = pneg %p161
        %s236 = sand.u32 %s151, 1
        %s237 = scalar_lea.sflag [#allocation4], %s236
        %s238 = sand.u32 %s151, 1
        %s239 = scalar_lea.vmem [#allocation3], %s238
        %s240 = smul.u32 16, %s24
        %p241 = scmp.lt.s32.totalorder %s23, 1
        %s242 = scalar_select %p241, %s23, 1
        %p243 = scmp.lt.s32.totalorder %s240, 31
        %s244 = scalar_select %p243, %s240, 31
        %s245 = smul.addr %s242, 32
        %s246 = sadd.s32 %s244, %s245
        %s247 = smul.addr %s246, 8
        %s248 = scalar_lea.vmem %s0, %s247
        %s249 = smul.u32 16, %s24
        %p250 = scmp.eq.s32.totalorder %s24, 0
        // Predicated region
        $region41: #{mynet_forward.1} parent=39 // pred_check
          %p251 = pneg %p250
        $region42: #{mynet_forward.1} parent=39 // pred_check_branch
          %253 = sbr.rel (%p251) target = $region44
        $region43: #{mynet_forward.1} parent=39 // pred_region
          %vm254 = vcmask 122880
          %255 = vst.msk [vmem:[#allocation2] sm:$0x1] %vm254, 0.0
        $region44: #{mynet_forward.1} parent=39 // pred_fallthru
          _
        %v256 = vld [vmem:[%s248] sm:$0xff]
        %v257 = vld [vmem:[%s248 + $0x8] sm:$0xff]
        %v258 = vld [vmem:[%s248 + $0x10] sm:$0xff]
        %v259 = vld [vmem:[%s248 + $0x18] sm:$0xff]
        %v260 = vld [vmem:[%s248 + $0x20] sm:$0xff]
        %v261 = vld [vmem:[%s248 + $0x28] sm:$0xff]
        %v262 = vld [vmem:[%s248 + $0x30] sm:$0xff]
        %v263 = vld [vmem:[%s248 + $0x38] sm:$0xff]
        %v264 = vld [vmem:[%s248 + $0x40] sm:$0xff]
        %v265 = vld [vmem:[%s248 + $0x48] sm:$0xff]
        %v266 = vld [vmem:[%s248 + $0x50] sm:$0xff]
        %v267 = vld [vmem:[%s248 + $0x58] sm:$0xff]
        %v268 = vld [vmem:[%s248 + $0x60] sm:$0xff]
        %v269 = vld [vmem:[%s248 + $0x68] sm:$0xff]
        %v270 = vld [vmem:[%s248 + $0x70] sm:$0xff]
        %v271 = vld [vmem:[%s248 + $0x78] sm:$0xff]
        %v272 = vld [vmem:[%s1] sm:$0xff]
        %v273 = vld [vmem:[%s1 + $0x8] sm:$0xff]
        %v274 = vld [vmem:[%s1 + $0x10] sm:$0xff]
        %v275 = vld [vmem:[%s1 + $0x18] sm:$0xff]
        %v276 = vld [vmem:[%s1 + $0x20] sm:$0xff]
        %v277 = vld [vmem:[%s1 + $0x28] sm:$0xff]
        %v278 = vld [vmem:[%s1 + $0x30] sm:$0xff]
        %v279 = vld [vmem:[%s1 + $0x38] sm:$0xff]
        %v280 = vld [vmem:[%s2] sm:$0xff]
        %v281 = vld [vmem:[%s2 + $0x8] sm:$0xff]
        %v284 = vlaneseq
        %v285 = vshrl.u32 %v284, 7
        %v286 = vsub.s32 0, %v285
        %v287 = vrot.slane %v280, %v286
        %v288 = vlaneseq
        %v289 = vshrl.u32 %v288, 7
        %v290 = vsub.s32 1, %v289
        %v291 = vrot.slane %v280, %v290
        %v292 = vlaneseq
        %v293 = vshrl.u32 %v292, 7
        %v294 = vsub.s32 2, %v293
        %v295 = vrot.slane %v280, %v294
        %v296 = vlaneseq
        %v297 = vshrl.u32 %v296, 7
        %v298 = vsub.s32 3, %v297
        %v299 = vrot.slane %v280, %v298
        %v300 = vlaneseq
        %v301 = vshrl.u32 %v300, 7
        %v302 = vsub.s32 4, %v301
        %v303 = vrot.slane %v280, %v302
        %v304 = vlaneseq
        %v305 = vshrl.u32 %v304, 7
        %v306 = vsub.s32 5, %v305
        %v307 = vrot.slane %v280, %v306
        %v308 = vlaneseq
        %v309 = vshrl.u32 %v308, 7
        %v310 = vsub.s32 6, %v309
        %v311 = vrot.slane %v280, %v310
        %v312 = vlaneseq
        %v313 = vshrl.u32 %v312, 7
        %v314 = vsub.s32 7, %v313
        %v315 = vrot.slane %v280, %v314
        %v316 = vlaneseq
        %v317 = vshrl.u32 %v316, 7
        %v318 = vsub.s32 0, %v317
        %v319 = vrot.slane %v281, %v318
        %v320 = vlaneseq
        %v321 = vshrl.u32 %v320, 7
        %v322 = vsub.s32 1, %v321
        %v323 = vrot.slane %v281, %v322
        %v324 = vlaneseq
        %v325 = vshrl.u32 %v324, 7
        %v326 = vsub.s32 2, %v325
        %v327 = vrot.slane %v281, %v326
        %v328 = vlaneseq
        %v329 = vshrl.u32 %v328, 7
        %v330 = vsub.s32 3, %v329
        %v331 = vrot.slane %v281, %v330
        %v332 = vlaneseq
        %v333 = vshrl.u32 %v332, 7
        %v334 = vsub.s32 4, %v333
        %v335 = vrot.slane %v281, %v334
        %v336 = vlaneseq
        %v337 = vshrl.u32 %v336, 7
        %v338 = vsub.s32 5, %v337
        %v339 = vrot.slane %v281, %v338
        %v340 = vlaneseq
        %v341 = vshrl.u32 %v340, 7
        %v342 = vsub.s32 6, %v341
        %v343 = vrot.slane %v281, %v342
        %v344 = vlaneseq
        %v345 = vshrl.u32 %v344, 7
        %v346 = vsub.s32 7, %v345
        %v347 = vrot.slane %v281, %v346
        %v372 = vcombine.high %v272, %v272
        %v373 = vcombine.high %v273, %v273
        %v374 = vcombine.high %v274, %v274
        %v375 = vcombine.high %v275, %v275
        %v376 = vcombine.high %v276, %v276
        %v377 = vcombine.high %v277, %v277
        %v378 = vcombine.high %v278, %v278
        %v379 = vcombine.high %v279, %v279
        %vm380 = vcmask 31744
        %v382 = vsel %vm380, %v256, 0
        %v385 = vsel %vm380, %v257, 0
        %v388 = vsel %vm380, %v258, 0
        %v391 = vsel %vm380, %v259, 0
        %v394 = vsel %vm380, %v260, 0
        %v397 = vsel %vm380, %v261, 0
        %v400 = vsel %vm380, %v262, 0
        %v403 = vsel %vm380, %v263, 0
        %v406 = vsel %vm380, %v264, 0
        %v409 = vsel %vm380, %v265, 0
        %v412 = vsel %vm380, %v266, 0
        %v415 = vsel %vm380, %v267, 0
        %v418 = vsel %vm380, %v268, 0
        %v421 = vsel %vm380, %v269, 0
        %v424 = vsel %vm380, %v270, 0
        %v427 = vsel %vm380, %v271, 0
        %vm429 = vcmask 1043456
        %v430 = vsel %vm429, %v272, 0
        %v432 = vsel %vm429, %v372, 0
        %v434 = vsel %vm429, %v273, 0
        %v436 = vsel %vm429, %v373, 0
        %v438 = vsel %vm429, %v274, 0
        %v440 = vsel %vm429, %v374, 0
        %v442 = vsel %vm429, %v275, 0
        %v444 = vsel %vm429, %v375, 0
        %v446 = vsel %vm429, %v276, 0
        %v448 = vsel %vm429, %v376, 0
        %v450 = vsel %vm429, %v277, 0
        %v452 = vsel %vm429, %v377, 0
        %v454 = vsel %vm429, %v278, 0
        %v456 = vsel %vm429, %v378, 0
        %v458 = vsel %vm429, %v279, 0
        %v460 = vsel %vm429, %v379, 0
        %462 = vmatprep.subr.mxu0 %v432
        %463 = vmatpush1.msra.mxu0 %v430
        %464 = vmatprep.subr.mxu0 0.0
        %465 = vmatpush1.msra.mxu0 0.0
        %466 = vmatprep.subr.mxu0 0.0
        %467 = vmatpush1.msra.mxu0 0.0
        %468 = vmatprep.subr.mxu0 0.0
        %469 = vmatpush1.msra.mxu0 0.0
        %470 = vmatprep.subr.mxu0 0.0
        %471 = vmatpush1.msra.mxu0 0.0
        %472 = vmatprep.subr.mxu0 0.0
        %473 = vmatpush1.msra.mxu0 0.0
        %474 = vmatprep.subr.mxu0 0.0
        %475 = vmatpush1.msra.mxu0 0.0
        %476 = vmatprep.subr.mxu0 0.0
        %477 = vmatpush1.msra.mxu0 0.0
        %478 = vmatprep.subr.mxu0 0.0
        %479 = vmatpush1.msra.mxu0 0.0
        %480 = vmatprep.subr.mxu0 0.0
        %481 = vmatpush1.msra.mxu0 0.0
        %482 = vmatprep.subr.mxu0 0.0
        %483 = vmatpush1.msra.mxu0 0.0
        %484 = vmatprep.subr.mxu0 0.0
        %485 = vmatpush1.msra.mxu0 0.0
        %486 = vmatprep.subr.mxu0 0.0
        %487 = vmatpush1.msra.mxu0 0.0
        %488 = vmatprep.subr.mxu0 0.0
        %489 = vmatpush1.msra.mxu0 0.0
        %490 = vmatprep.subr.mxu0 0.0
        %491 = vmatpush1.msra.mxu0 0.0
        %492 = vmatprep.subr.mxu0 0.0
        %493 = vmatpush1.msra.mxu0 0.0
        %494 = vmatprep.subr.mxu0 0.0
        %495 = vmatpush1.msra.mxu0 0.0
        %496 = vmatprep.subr.mxu0 0.0
        %497 = vmatpush1.msra.mxu0 0.0
        %498 = vmatprep.subr.mxu0 0.0
        %499 = vmatpush1.msra.mxu0 0.0
        %500 = vmatprep.subr.mxu0 0.0
        %501 = vmatpush1.msra.mxu0 0.0
        %502 = vmatprep.subr.mxu0 0.0
        %503 = vmatpush1.msra.mxu0 0.0
        %504 = vmatprep.subr.mxu0 0.0
        %505 = vmatpush1.msra.mxu0 0.0
        %506 = vmatprep.subr.mxu0 0.0
        %507 = vmatpush1.msra.mxu0 0.0
        %508 = vmatprep.subr.mxu0 0.0
        %509 = vmatpush1.msra.mxu0 0.0
        %510 = vmatprep.subr.mxu0 0.0
        %511 = vmatpush1.msra.mxu0 0.0
        %512 = vmatprep.subr.mxu0 0.0
        %513 = vmatpush1.msra.mxu0 0.0
        %514 = vmatprep.subr.mxu0 0.0
        %515 = vmatpush1.msra.mxu0 0.0
        %516 = vmatprep.subr.mxu0 0.0
        %517 = vmatpush1.msra.mxu0 0.0
        %518 = vmatprep.subr.mxu0 0.0
        %519 = vmatpush1.msra.mxu0 0.0
        %520 = vmatprep.subr.mxu0 0.0
        %521 = vmatpush1.msra.mxu0 0.0
        %522 = vmatprep.subr.mxu0 0.0
        %523 = vmatpush1.msra.mxu0 0.0
        %524 = vmatprep.subr.mxu0 0.0
        %525 = vmatpush1.msra.mxu0 0.0
        %526 = vmatprep.mubr.f32.mxu0 0.0
        %527 = vmatmul.mubr.f32.gmra.mrb[0].mxu0 %v382
        %v528 = vpop.f32.mrb[0].mxu0
        %v529 = vadd.f32 %v287, %v528
        %v530 = vpop.f32.mrb[0].mxu0
        %v531 = vadd.f32 %v291, %v530
        %532 = vmatprep.mubr.f32.mxu0 0.0
        %533 = vmatmul.mubr.f32.gmra.mrb[0].mxu0 %v385
        %v534 = vpop.f32.mrb[0].mxu0
        %v535 = vadd.f32 %v287, %v534
        %v536 = vpop.f32.mrb[0].mxu0
        %v537 = vadd.f32 %v291, %v536
        %538 = vmatprep.mubr.f32.mxu0 0.0
        %539 = vmatmul.mubr.f32.gmra.mrb[0].mxu0 %v388
        %v540 = vpop.f32.mrb[0].mxu0
        %v541 = vadd.f32 %v287, %v540
        %v542 = vpop.f32.mrb[0].mxu0
        %v543 = vadd.f32 %v291, %v542
        %544 = vmatprep.mubr.f32.mxu0 0.0
        %545 = vmatmul.mubr.f32.gmra.mrb[0].mxu0 %v391
        %v546 = vpop.f32.mrb[0].mxu0
        %v547 = vadd.f32 %v287, %v546
        %v548 = vpop.f32.mrb[0].mxu0
        %v549 = vadd.f32 %v291, %v548
        %550 = vmatprep.mubr.f32.mxu0 0.0
        %551 = vmatmul.mubr.f32.gmra.mrb[0].mxu0 %v394
        %v552 = vpop.f32.mrb[0].mxu0
        %v553 = vadd.f32 %v287, %v552
        %v554 = vpop.f32.mrb[0].mxu0
        %v555 = vadd.f32 %v291, %v554
        %556 = vmatprep.mubr.f32.mxu0 0.0
        %557 = vmatmul.mubr.f32.gmra.mrb[0].mxu0 %v397
        %v558 = vpop.f32.mrb[0].mxu0
        %v559 = vadd.f32 %v287, %v558
        %v560 = vpop.f32.mrb[0].mxu0
        %v561 = vadd.f32 %v291, %v560
        %562 = vmatprep.mubr.f32.mxu0 0.0
        %563 = vmatmul.mubr.f32.gmra.mrb[0].mxu0 %v400
        %v564 = vpop.f32.mrb[0].mxu0
        %v565 = vadd.f32 %v287, %v564
        %v566 = vpop.f32.mrb[0].mxu0
        %v567 = vadd.f32 %v291, %v566
        %568 = vmatprep.mubr.f32.mxu0 0.0
        %569 = vmatmul.mubr.f32.gmra.mrb[0].mxu0 %v403
        %v570 = vpop.f32.mrb[0].mxu0
        %v571 = vadd.f32 %v287, %v570
        %v572 = vpop.f32.mrb[0].mxu0
        %v573 = vadd.f32 %v291, %v572
        %574 = vmatprep.mubr.f32.mxu0 0.0
        %575 = vmatmul.mubr.f32.gmra.mrb[0].mxu0 %v406
        %v576 = vpop.f32.mrb[0].mxu0
        %v577 = vadd.f32 %v287, %v576
        %v578 = vpop.f32.mrb[0].mxu0
        %v579 = vadd.f32 %v291, %v578
        %580 = vmatprep.mubr.f32.mxu0 0.0
        %581 = vmatmul.mubr.f32.gmra.mrb[0].mxu0 %v409
        %v582 = vpop.f32.mrb[0].mxu0
        %v583 = vadd.f32 %v287, %v582
        %v584 = vpop.f32.mrb[0].mxu0
        %v585 = vadd.f32 %v291, %v584
        %586 = vmatprep.mubr.f32.mxu0 0.0
        %587 = vmatmul.mubr.f32.gmra.mrb[0].mxu0 %v412
        %v588 = vpop.f32.mrb[0].mxu0
        %v589 = vadd.f32 %v287, %v588
        %v590 = vpop.f32.mrb[0].mxu0
        %v591 = vadd.f32 %v291, %v590
        %592 = vmatprep.mubr.f32.mxu0 0.0
        %593 = vmatmul.mubr.f32.gmra.mrb[0].mxu0 %v415
        %v594 = vpop.f32.mrb[0].mxu0
        %v595 = vadd.f32 %v287, %v594
        %v596 = vpop.f32.mrb[0].mxu0
        %v597 = vadd.f32 %v291, %v596
        %598 = vmatprep.mubr.f32.mxu0 0.0
        %599 = vmatmul.mubr.f32.gmra.mrb[0].mxu0 %v418
        %v600 = vpop.f32.mrb[0].mxu0
        %v601 = vadd.f32 %v287, %v600
        %v602 = vpop.f32.mrb[0].mxu0
        %v603 = vadd.f32 %v291, %v602
        %604 = vmatprep.mubr.f32.mxu0 0.0
        %605 = vmatmul.mubr.f32.gmra.mrb[0].mxu0 %v421
        %v606 = vpop.f32.mrb[0].mxu0
        %v607 = vadd.f32 %v287, %v606
        %v608 = vpop.f32.mrb[0].mxu0
        %v609 = vadd.f32 %v291, %v608
        %610 = vmatprep.mubr.f32.mxu0 0.0
        %611 = vmatmul.mubr.f32.gmra.mrb[0].mxu0 %v424
        %v612 = vpop.f32.mrb[0].mxu0
        %v613 = vadd.f32 %v287, %v612
        %v614 = vpop.f32.mrb[0].mxu0
        %v615 = vadd.f32 %v291, %v614
        %616 = vmatprep.mubr.f32.mxu0 0.0
        %617 = vmatmul.mubr.f32.gmra.mrb[0].mxu0 %v427
        %v618 = vpop.f32.mrb[0].mxu0
        %v619 = vadd.f32 %v287, %v618
        %v620 = vpop.f32.mrb[0].mxu0
        %v621 = vadd.f32 %v291, %v620
        %622 = vdwg.mxu0
        %623 = vmatprep.subr.mxu0 %v436
        %624 = vmatpush1.msra.mxu0 %v434
        %625 = vmatprep.subr.mxu0 0.0
        %626 = vmatpush1.msra.mxu0 0.0
        %627 = vmatprep.subr.mxu0 0.0
        %628 = vmatpush1.msra.mxu0 0.0
        %629 = vmatprep.subr.mxu0 0.0
        %630 = vmatpush1.msra.mxu0 0.0
        %631 = vmatprep.subr.mxu0 0.0
        %632 = vmatpush1.msra.mxu0 0.0
        %633 = vmatprep.subr.mxu0 0.0
        %634 = vmatpush1.msra.mxu0 0.0
        %635 = vmatprep.subr.mxu0 0.0
        %636 = vmatpush1.msra.mxu0 0.0
        %637 = vmatprep.subr.mxu0 0.0
        %638 = vmatpush1.msra.mxu0 0.0
        %639 = vmatprep.subr.mxu0 0.0
        %640 = vmatpush1.msra.mxu0 0.0
        %641 = vmatprep.subr.mxu0 0.0
        %642 = vmatpush1.msra.mxu0 0.0
        %643 = vmatprep.subr.mxu0 0.0
        %644 = vmatpush1.msra.mxu0 0.0
        %645 = vmatprep.subr.mxu0 0.0
        %646 = vmatpush1.msra.mxu0 0.0
        %647 = vmatprep.subr.mxu0 0.0
        %648 = vmatpush1.msra.mxu0 0.0
        %649 = vmatprep.subr.mxu0 0.0
        %650 = vmatpush1.msra.mxu0 0.0
        %651 = vmatprep.subr.mxu0 0.0
        %652 = vmatpush1.msra.mxu0 0.0
        %653 = vmatprep.subr.mxu0 0.0
        %654 = vmatpush1.msra.mxu0 0.0
        %655 = vmatprep.subr.mxu0 0.0
        %656 = vmatpush1.msra.mxu0 0.0
        %657 = vmatprep.subr.mxu0 0.0
        %658 = vmatpush1.msra.mxu0 0.0
        %659 = vmatprep.subr.mxu0 0.0
        %660 = vmatpush1.msra.mxu0 0.0
        %661 = vmatprep.subr.mxu0 0.0
        %662 = vmatpush1.msra.mxu0 0.0
        %663 = vmatprep.subr.mxu0 0.0
        %664 = vmatpush1.msra.mxu0 0.0
        %665 = vmatprep.subr.mxu0 0.0
        %666 = vmatpush1.msra.mxu0 0.0
        %667 = vmatprep.subr.mxu0 0.0
        %668 = vmatpush1.msra.mxu0 0.0
        %669 = vmatprep.subr.mxu0 0.0
        %670 = vmatpush1.msra.mxu0 0.0
        %671 = vmatprep.subr.mxu0 0.0
        %672 = vmatpush1.msra.mxu0 0.0
        %673 = vmatprep.subr.mxu0 0.0
        %674 = vmatpush1.msra.mxu0 0.0
        %675 = vmatprep.subr.mxu0 0.0
        %676 = vmatpush1.msra.mxu0 0.0
        %677 = vmatprep.subr.mxu0 0.0
        %678 = vmatpush1.msra.mxu0 0.0
        %679 = vmatprep.subr.mxu0 0.0
        %680 = vmatpush1.msra.mxu0 0.0
        %681 = vmatprep.subr.mxu0 0.0
        %682 = vmatpush1.msra.mxu0 0.0
        %683 = vmatprep.subr.mxu0 0.0
        %684 = vmatpush1.msra.mxu0 0.0
        %685 = vmatprep.subr.mxu0 0.0
        %686 = vmatpush1.msra.mxu0 0.0
        %687 = vmatprep.mubr.f32.mxu0 0.0
        %688 = vmatmul.mubr.f32.gmra.mrb[0].mxu0 %v382
        %v689 = vpop.f32.mrb[0].mxu0
        %v690 = vadd.f32 %v295, %v689
        %v691 = vpop.f32.mrb[0].mxu0
        %v692 = vadd.f32 %v299, %v691
        %693 = vmatprep.mubr.f32.mxu0 0.0
        %694 = vmatmul.mubr.f32.gmra.mrb[0].mxu0 %v385
        %v695 = vpop.f32.mrb[0].mxu0
        %v696 = vadd.f32 %v295, %v695
        %v697 = vpop.f32.mrb[0].mxu0
        %v698 = vadd.f32 %v299, %v697
        %699 = vmatprep.mubr.f32.mxu0 0.0
        %700 = vmatmul.mubr.f32.gmra.mrb[0].mxu0 %v388
        %v701 = vpop.f32.mrb[0].mxu0
        %v702 = vadd.f32 %v295, %v701
        %v703 = vpop.f32.mrb[0].mxu0
        %v704 = vadd.f32 %v299, %v703
        %705 = vmatprep.mubr.f32.mxu0 0.0
        %706 = vmatmul.mubr.f32.gmra.mrb[0].mxu0 %v391
        %v707 = vpop.f32.mrb[0].mxu0
        %v708 = vadd.f32 %v295, %v707
        %v709 = vpop.f32.mrb[0].mxu0
        %v710 = vadd.f32 %v299, %v709
        %711 = vmatprep.mubr.f32.mxu0 0.0
        %712 = vmatmul.mubr.f32.gmra.mrb[0].mxu0 %v394
        %v713 = vpop.f32.mrb[0].mxu0
        %v714 = vadd.f32 %v295, %v713
        %v715 = vpop.f32.mrb[0].mxu0
        %v716 = vadd.f32 %v299, %v715
        %717 = vmatprep.mubr.f32.mxu0 0.0
        %718 = vmatmul.mubr.f32.gmra.mrb[0].mxu0 %v397
        %v719 = vpop.f32.mrb[0].mxu0
        %v720 = vadd.f32 %v295, %v719
        %v721 = vpop.f32.mrb[0].mxu0
        %v722 = vadd.f32 %v299, %v721
        %723 = vmatprep.mubr.f32.mxu0 0.0
        %724 = vmatmul.mubr.f32.gmra.mrb[0].mxu0 %v400
        %v725 = vpop.f32.mrb[0].mxu0
        %v726 = vadd.f32 %v295, %v725
        %v727 = vpop.f32.mrb[0].mxu0
        %v728 = vadd.f32 %v299, %v727
        %729 = vmatprep.mubr.f32.mxu0 0.0
        %730 = vmatmul.mubr.f32.gmra.mrb[0].mxu0 %v403
        %v731 = vpop.f32.mrb[0].mxu0
        %v732 = vadd.f32 %v295, %v731
        %v733 = vpop.f32.mrb[0].mxu0
        %v734 = vadd.f32 %v299, %v733
        %735 = vmatprep.mubr.f32.mxu0 0.0
        %736 = vmatmul.mubr.f32.gmra.mrb[0].mxu0 %v406
        %v737 = vpop.f32.mrb[0].mxu0
        %v738 = vadd.f32 %v295, %v737
        %v739 = vpop.f32.mrb[0].mxu0
        %v740 = vadd.f32 %v299, %v739
        %741 = vmatprep.mubr.f32.mxu0 0.0
        %742 = vmatmul.mubr.f32.gmra.mrb[0].mxu0 %v409
        %v743 = vpop.f32.mrb[0].mxu0
        %v744 = vadd.f32 %v295, %v743
        %v745 = vpop.f32.mrb[0].mxu0
        %v746 = vadd.f32 %v299, %v745
        %747 = vmatprep.mubr.f32.mxu0 0.0
        %748 = vmatmul.mubr.f32.gmra.mrb[0].mxu0 %v412
        %v749 = vpop.f32.mrb[0].mxu0
        %v750 = vadd.f32 %v295, %v749
        %v751 = vpop.f32.mrb[0].mxu0
        %v752 = vadd.f32 %v299, %v751
        %753 = vmatprep.mubr.f32.mxu0 0.0
        %754 = vmatmul.mubr.f32.gmra.mrb[0].mxu0 %v415
        %v755 = vpop.f32.mrb[0].mxu0
        %v756 = vadd.f32 %v295, %v755
        %v757 = vpop.f32.mrb[0].mxu0
        %v758 = vadd.f32 %v299, %v757
        %759 = vmatprep.mubr.f32.mxu0 0.0
        %760 = vmatmul.mubr.f32.gmra.mrb[0].mxu0 %v418
        %v761 = vpop.f32.mrb[0].mxu0
        %v762 = vadd.f32 %v295, %v761
        %v763 = vpop.f32.mrb[0].mxu0
        %v764 = vadd.f32 %v299, %v763
        %765 = vmatprep.mubr.f32.mxu0 0.0
        %766 = vmatmul.mubr.f32.gmra.mrb[0].mxu0 %v421
        %v767 = vpop.f32.mrb[0].mxu0
        %v768 = vadd.f32 %v295, %v767
        %v769 = vpop.f32.mrb[0].mxu0
        %v770 = vadd.f32 %v299, %v769
        %771 = vmatprep.mubr.f32.mxu0 0.0
        %772 = vmatmul.mubr.f32.gmra.mrb[0].mxu0 %v424
        %v773 = vpop.f32.mrb[0].mxu0
        %v774 = vadd.f32 %v295, %v773
        %v775 = vpop.f32.mrb[0].mxu0
        %v776 = vadd.f32 %v299, %v775
        %777 = vmatprep.mubr.f32.mxu0 0.0
        %778 = vmatmul.mubr.f32.gmra.mrb[0].mxu0 %v427
        %v779 = vpop.f32.mrb[0].mxu0
        %v780 = vadd.f32 %v295, %v779
        %v781 = vpop.f32.mrb[0].mxu0
        %v782 = vadd.f32 %v299, %v781
        %783 = vdwg.mxu0
        %784 = vmatprep.subr.mxu0 %v440
        %785 = vmatpush1.msra.mxu0 %v438
        %786 = vmatprep.subr.mxu0 0.0
        %787 = vmatpush1.msra.mxu0 0.0
        %788 = vmatprep.subr.mxu0 0.0
        %789 = vmatpush1.msra.mxu0 0.0
        %790 = vmatprep.subr.mxu0 0.0
        %791 = vmatpush1.msra.mxu0 0.0
        %792 = vmatprep.subr.mxu0 0.0
        %793 = vmatpush1.msra.mxu0 0.0
        %794 = vmatprep.subr.mxu0 0.0
        %795 = vmatpush1.msra.mxu0 0.0
        %796 = vmatprep.subr.mxu0 0.0
        %797 = vmatpush1.msra.mxu0 0.0
        %798 = vmatprep.subr.mxu0 0.0
        %799 = vmatpush1.msra.mxu0 0.0
        %800 = vmatprep.subr.mxu0 0.0
        %801 = vmatpush1.msra.mxu0 0.0
        %802 = vmatprep.subr.mxu0 0.0
        %803 = vmatpush1.msra.mxu0 0.0
        %804 = vmatprep.subr.mxu0 0.0
        %805 = vmatpush1.msra.mxu0 0.0
        %806 = vmatprep.subr.mxu0 0.0
        %807 = vmatpush1.msra.mxu0 0.0
        %808 = vmatprep.subr.mxu0 0.0
        %809 = vmatpush1.msra.mxu0 0.0
        %810 = vmatprep.subr.mxu0 0.0
        %811 = vmatpush1.msra.mxu0 0.0
        %812 = vmatprep.subr.mxu0 0.0
        %813 = vmatpush1.msra.mxu0 0.0
        %814 = vmatprep.subr.mxu0 0.0
        %815 = vmatpush1.msra.mxu0 0.0
        %816 = vmatprep.subr.mxu0 0.0
        %817 = vmatpush1.msra.mxu0 0.0
        %818 = vmatprep.subr.mxu0 0.0
        %819 = vmatpush1.msra.mxu0 0.0
        %820 = vmatprep.subr.mxu0 0.0
        %821 = vmatpush1.msra.mxu0 0.0
        %822 = vmatprep.subr.mxu0 0.0
        %823 = vmatpush1.msra.mxu0 0.0
        %824 = vmatprep.subr.mxu0 0.0
        %825 = vmatpush1.msra.mxu0 0.0
        %826 = vmatprep.subr.mxu0 0.0
        %827 = vmatpush1.msra.mxu0 0.0
        %828 = vmatprep.subr.mxu0 0.0
        %829 = vmatpush1.msra.mxu0 0.0
        %830 = vmatprep.subr.mxu0 0.0
        %831 = vmatpush1.msra.mxu0 0.0
        %832 = vmatprep.subr.mxu0 0.0
        %833 = vmatpush1.msra.mxu0 0.0
        %834 = vmatprep.subr.mxu0 0.0
        %835 = vmatpush1.msra.mxu0 0.0
        %836 = vmatprep.subr.mxu0 0.0
        %837 = vmatpush1.msra.mxu0 0.0
        %838 = vmatprep.subr.mxu0 0.0
        %839 = vmatpush1.msra.mxu0 0.0
        %840 = vmatprep.subr.mxu0 0.0
        %841 = vmatpush1.msra.mxu0 0.0
        %842 = vmatprep.subr.mxu0 0.0
        %843 = vmatpush1.msra.mxu0 0.0
        %844 = vmatprep.subr.mxu0 0.0
        %845 = vmatpush1.msra.mxu0 0.0
        %846 = vmatprep.subr.mxu0 0.0
        %847 = vmatpush1.msra.mxu0 0.0
        %848 = vmatprep.mubr.f32.mxu0 0.0
        %849 = vmatmul.mubr.f32.gmra.mrb[0].mxu0 %v382
        %v850 = vpop.f32.mrb[0].mxu0
        %v851 = vadd.f32 %v303, %v850
        %v852 = vpop.f32.mrb[0].mxu0
        %v853 = vadd.f32 %v307, %v852
        %854 = vmatprep.mubr.f32.mxu0 0.0
        %855 = vmatmul.mubr.f32.gmra.mrb[0].mxu0 %v385
        %v856 = vpop.f32.mrb[0].mxu0
        %v857 = vadd.f32 %v303, %v856
        %v858 = vpop.f32.mrb[0].mxu0
        %v859 = vadd.f32 %v307, %v858
        %860 = vmatprep.mubr.f32.mxu0 0.0
        %861 = vmatmul.mubr.f32.gmra.mrb[0].mxu0 %v388
        %v862 = vpop.f32.mrb[0].mxu0
        %v863 = vadd.f32 %v303, %v862
        %v864 = vpop.f32.mrb[0].mxu0
        %v865 = vadd.f32 %v307, %v864
        %866 = vmatprep.mubr.f32.mxu0 0.0
        %867 = vmatmul.mubr.f32.gmra.mrb[0].mxu0 %v391
        %v868 = vpop.f32.mrb[0].mxu0
        %v869 = vadd.f32 %v303, %v868
        %v870 = vpop.f32.mrb[0].mxu0
        %v871 = vadd.f32 %v307, %v870
        %872 = vmatprep.mubr.f32.mxu0 0.0
        %873 = vmatmul.mubr.f32.gmra.mrb[0].mxu0 %v394
        %v874 = vpop.f32.mrb[0].mxu0
        %v875 = vadd.f32 %v303, %v874
        %v876 = vpop.f32.mrb[0].mxu0
        %v877 = vadd.f32 %v307, %v876
        %878 = vmatprep.mubr.f32.mxu0 0.0
        %879 = vmatmul.mubr.f32.gmra.mrb[0].mxu0 %v397
        %v880 = vpop.f32.mrb[0].mxu0
        %v881 = vadd.f32 %v303, %v880
        %v882 = vpop.f32.mrb[0].mxu0
        %v883 = vadd.f32 %v307, %v882
        %884 = vmatprep.mubr.f32.mxu0 0.0
        %885 = vmatmul.mubr.f32.gmra.mrb[0].mxu0 %v400
        %v886 = vpop.f32.mrb[0].mxu0
        %v887 = vadd.f32 %v303, %v886
        %v888 = vpop.f32.mrb[0].mxu0
        %v889 = vadd.f32 %v307, %v888
        %890 = vmatprep.mubr.f32.mxu0 0.0
        %891 = vmatmul.mubr.f32.gmra.mrb[0].mxu0 %v403
        %v892 = vpop.f32.mrb[0].mxu0
        %v893 = vadd.f32 %v303, %v892
        %v894 = vpop.f32.mrb[0].mxu0
        %v895 = vadd.f32 %v307, %v894
        %896 = vmatprep.mubr.f32.mxu0 0.0
        %897 = vmatmul.mubr.f32.gmra.mrb[0].mxu0 %v406
        %v898 = vpop.f32.mrb[0].mxu0
        %v899 = vadd.f32 %v303, %v898
        %v900 = vpop.f32.mrb[0].mxu0
        %v901 = vadd.f32 %v307, %v900
        %902 = vmatprep.mubr.f32.mxu0 0.0
        %903 = vmatmul.mubr.f32.gmra.mrb[0].mxu0 %v409
        %v904 = vpop.f32.mrb[0].mxu0
        %v905 = vadd.f32 %v303, %v904
        %v906 = vpop.f32.mrb[0].mxu0
        %v907 = vadd.f32 %v307, %v906
        %908 = vmatprep.mubr.f32.mxu0 0.0
        %909 = vmatmul.mubr.f32.gmra.mrb[0].mxu0 %v412
        %v910 = vpop.f32.mrb[0].mxu0
        %v911 = vadd.f32 %v303, %v910
        %v912 = vpop.f32.mrb[0].mxu0
        %v913 = vadd.f32 %v307, %v912
        %914 = vmatprep.mubr.f32.mxu0 0.0
        %915 = vmatmul.mubr.f32.gmra.mrb[0].mxu0 %v415
        %v916 = vpop.f32.mrb[0].mxu0
        %v917 = vadd.f32 %v303, %v916
        %v918 = vpop.f32.mrb[0].mxu0
        %v919 = vadd.f32 %v307, %v918
        %920 = vmatprep.mubr.f32.mxu0 0.0
        %921 = vmatmul.mubr.f32.gmra.mrb[0].mxu0 %v418
        %v922 = vpop.f32.mrb[0].mxu0
        %v923 = vadd.f32 %v303, %v922
        %v924 = vpop.f32.mrb[0].mxu0
        %v925 = vadd.f32 %v307, %v924
        %926 = vmatprep.mubr.f32.mxu0 0.0
        %927 = vmatmul.mubr.f32.gmra.mrb[0].mxu0 %v421
        %v928 = vpop.f32.mrb[0].mxu0
        %v929 = vadd.f32 %v303, %v928
        %v930 = vpop.f32.mrb[0].mxu0
        %v931 = vadd.f32 %v307, %v930
        %932 = vmatprep.mubr.f32.mxu0 0.0
        %933 = vmatmul.mubr.f32.gmra.mrb[0].mxu0 %v424
        %v934 = vpop.f32.mrb[0].mxu0
        %v935 = vadd.f32 %v303, %v934
        %v936 = vpop.f32.mrb[0].mxu0
        %v937 = vadd.f32 %v307, %v936
        %938 = vmatprep.mubr.f32.mxu0 0.0
        %939 = vmatmul.mubr.f32.gmra.mrb[0].mxu0 %v427
        %v940 = vpop.f32.mrb[0].mxu0
        %v941 = vadd.f32 %v303, %v940
        %v942 = vpop.f32.mrb[0].mxu0
        %v943 = vadd.f32 %v307, %v942
        %944 = vdwg.mxu0
        %945 = vmatprep.subr.mxu0 %v444
        %946 = vmatpush1.msra.mxu0 %v442
        %947 = vmatprep.subr.mxu0 0.0
        %948 = vmatpush1.msra.mxu0 0.0
        %949 = vmatprep.subr.mxu0 0.0
        %950 = vmatpush1.msra.mxu0 0.0
        %951 = vmatprep.subr.mxu0 0.0
        %952 = vmatpush1.msra.mxu0 0.0
        %953 = vmatprep.subr.mxu0 0.0
        %954 = vmatpush1.msra.mxu0 0.0
        %955 = vmatprep.subr.mxu0 0.0
        %956 = vmatpush1.msra.mxu0 0.0
        %957 = vmatprep.subr.mxu0 0.0
        %958 = vmatpush1.msra.mxu0 0.0
        %959 = vmatprep.subr.mxu0 0.0
        %960 = vmatpush1.msra.mxu0 0.0
        %961 = vmatprep.subr.mxu0 0.0
        %962 = vmatpush1.msra.mxu0 0.0
        %963 = vmatprep.subr.mxu0 0.0
        %964 = vmatpush1.msra.mxu0 0.0
        %965 = vmatprep.subr.mxu0 0.0
        %966 = vmatpush1.msra.mxu0 0.0
        %967 = vmatprep.subr.mxu0 0.0
        %968 = vmatpush1.msra.mxu0 0.0
        %969 = vmatprep.subr.mxu0 0.0
        %970 = vmatpush1.msra.mxu0 0.0
        %971 = vmatprep.subr.mxu0 0.0
        %972 = vmatpush1.msra.mxu0 0.0
        %973 = vmatprep.subr.mxu0 0.0
        %974 = vmatpush1.msra.mxu0 0.0
        %975 = vmatprep.subr.mxu0 0.0
        %976 = vmatpush1.msra.mxu0 0.0
        %977 = vmatprep.subr.mxu0 0.0
        %978 = vmatpush1.msra.mxu0 0.0
        %979 = vmatprep.subr.mxu0 0.0
        %980 = vmatpush1.msra.mxu0 0.0
        %981 = vmatprep.subr.mxu0 0.0
        %982 = vmatpush1.msra.mxu0 0.0
        %983 = vmatprep.subr.mxu0 0.0
        %984 = vmatpush1.msra.mxu0 0.0
        %985 = vmatprep.subr.mxu0 0.0
        %986 = vmatpush1.msra.mxu0 0.0
        %987 = vmatprep.subr.mxu0 0.0
        %988 = vmatpush1.msra.mxu0 0.0
        %989 = vmatprep.subr.mxu0 0.0
        %990 = vmatpush1.msra.mxu0 0.0
        %991 = vmatprep.subr.mxu0 0.0
        %992 = vmatpush1.msra.mxu0 0.0
        %993 = vmatprep.subr.mxu0 0.0
        %994 = vmatpush1.msra.mxu0 0.0
        %995 = vmatprep.subr.mxu0 0.0
        %996 = vmatpush1.msra.mxu0 0.0
        %997 = vmatprep.subr.mxu0 0.0
        %998 = vmatpush1.msra.mxu0 0.0
        %999 = vmatprep.subr.mxu0 0.0
        %1000 = vmatpush1.msra.mxu0 0.0
        %1001 = vmatprep.subr.mxu0 0.0
        %1002 = vmatpush1.msra.mxu0 0.0
        %1003 = vmatprep.subr.mxu0 0.0
        %1004 = vmatpush1.msra.mxu0 0.0
        %1005 = vmatprep.subr.mxu0 0.0
        %1006 = vmatpush1.msra.mxu0 0.0
        %1007 = vmatprep.subr.mxu0 0.0
        %1008 = vmatpush1.msra.mxu0 0.0
        %1009 = vmatprep.mubr.f32.mxu0 0.0
        %1010 = vmatmul.mubr.f32.gmra.mrb[0].mxu0 %v382
        %v1011 = vpop.f32.mrb[0].mxu0
        %v1012 = vadd.f32 %v311, %v1011
        %v1013 = vpop.f32.mrb[0].mxu0
        %v1014 = vadd.f32 %v315, %v1013
        %1015 = vmatprep.mubr.f32.mxu0 0.0
        %1016 = vmatmul.mubr.f32.gmra.mrb[0].mxu0 %v385
        %v1017 = vpop.f32.mrb[0].mxu0
        %v1018 = vadd.f32 %v311, %v1017
        %v1019 = vpop.f32.mrb[0].mxu0
        %v1020 = vadd.f32 %v315, %v1019
        %1021 = vmatprep.mubr.f32.mxu0 0.0
        %1022 = vmatmul.mubr.f32.gmra.mrb[0].mxu0 %v388
        %v1023 = vpop.f32.mrb[0].mxu0
        %v1024 = vadd.f32 %v311, %v1023
        %v1025 = vpop.f32.mrb[0].mxu0
        %v1026 = vadd.f32 %v315, %v1025
        %1027 = vmatprep.mubr.f32.mxu0 0.0
        %1028 = vmatmul.mubr.f32.gmra.mrb[0].mxu0 %v391
        %v1029 = vpop.f32.mrb[0].mxu0
        %v1030 = vadd.f32 %v311, %v1029
        %v1031 = vpop.f32.mrb[0].mxu0
        %v1032 = vadd.f32 %v315, %v1031
        %1033 = vmatprep.mubr.f32.mxu0 0.0
        %1034 = vmatmul.mubr.f32.gmra.mrb[0].mxu0 %v394
        %v1035 = vpop.f32.mrb[0].mxu0
        %v1036 = vadd.f32 %v311, %v1035
        %v1037 = vpop.f32.mrb[0].mxu0
        %v1038 = vadd.f32 %v315, %v1037
        %1039 = vmatprep.mubr.f32.mxu0 0.0
        %1040 = vmatmul.mubr.f32.gmra.mrb[0].mxu0 %v397
        %v1041 = vpop.f32.mrb[0].mxu0
        %v1042 = vadd.f32 %v311, %v1041
        %v1043 = vpop.f32.mrb[0].mxu0
        %v1044 = vadd.f32 %v315, %v1043
        %1045 = vmatprep.mubr.f32.mxu0 0.0
        %1046 = vmatmul.mubr.f32.gmra.mrb[0].mxu0 %v400
        %v1047 = vpop.f32.mrb[0].mxu0
        %v1048 = vadd.f32 %v311, %v1047
        %v1049 = vpop.f32.mrb[0].mxu0
        %v1050 = vadd.f32 %v315, %v1049
        %1051 = vmatprep.mubr.f32.mxu0 0.0
        %1052 = vmatmul.mubr.f32.gmra.mrb[0].mxu0 %v403
        %v1053 = vpop.f32.mrb[0].mxu0
        %v1054 = vadd.f32 %v311, %v1053
        %v1055 = vpop.f32.mrb[0].mxu0
        %v1056 = vadd.f32 %v315, %v1055
        %1057 = vmatprep.mubr.f32.mxu0 0.0
        %1058 = vmatmul.mubr.f32.gmra.mrb[0].mxu0 %v406
        %v1059 = vpop.f32.mrb[0].mxu0
        %v1060 = vadd.f32 %v311, %v1059
        %v1061 = vpop.f32.mrb[0].mxu0
        %v1062 = vadd.f32 %v315, %v1061
        %1063 = vmatprep.mubr.f32.mxu0 0.0
        %1064 = vmatmul.mubr.f32.gmra.mrb[0].mxu0 %v409
        %v1065 = vpop.f32.mrb[0].mxu0
        %v1066 = vadd.f32 %v311, %v1065
        %v1067 = vpop.f32.mrb[0].mxu0
        %v1068 = vadd.f32 %v315, %v1067
        %1069 = vmatprep.mubr.f32.mxu0 0.0
        %1070 = vmatmul.mubr.f32.gmra.mrb[0].mxu0 %v412
        %v1071 = vpop.f32.mrb[0].mxu0
        %v1072 = vadd.f32 %v311, %v1071
        %v1073 = vpop.f32.mrb[0].mxu0
        %v1074 = vadd.f32 %v315, %v1073
        %1075 = vmatprep.mubr.f32.mxu0 0.0
        %1076 = vmatmul.mubr.f32.gmra.mrb[0].mxu0 %v415
        %v1077 = vpop.f32.mrb[0].mxu0
        %v1078 = vadd.f32 %v311, %v1077
        %v1079 = vpop.f32.mrb[0].mxu0
        %v1080 = vadd.f32 %v315, %v1079
        %1081 = vmatprep.mubr.f32.mxu0 0.0
        %1082 = vmatmul.mubr.f32.gmra.mrb[0].mxu0 %v418
        %v1083 = vpop.f32.mrb[0].mxu0
        %v1084 = vadd.f32 %v311, %v1083
        %v1085 = vpop.f32.mrb[0].mxu0
        %v1086 = vadd.f32 %v315, %v1085
        %1087 = vmatprep.mubr.f32.mxu0 0.0
        %1088 = vmatmul.mubr.f32.gmra.mrb[0].mxu0 %v421
        %v1089 = vpop.f32.mrb[0].mxu0
        %v1090 = vadd.f32 %v311, %v1089
        %v1091 = vpop.f32.mrb[0].mxu0
        %v1092 = vadd.f32 %v315, %v1091
        %1093 = vmatprep.mubr.f32.mxu0 0.0
        %1094 = vmatmul.mubr.f32.gmra.mrb[0].mxu0 %v424
        %v1095 = vpop.f32.mrb[0].mxu0
        %v1096 = vadd.f32 %v311, %v1095
        %v1097 = vpop.f32.mrb[0].mxu0
        %v1098 = vadd.f32 %v315, %v1097
        %1099 = vmatprep.mubr.f32.mxu0 0.0
        %1100 = vmatmul.mubr.f32.gmra.mrb[0].mxu0 %v427
        %v1101 = vpop.f32.mrb[0].mxu0
        %v1102 = vadd.f32 %v311, %v1101
        %v1103 = vpop.f32.mrb[0].mxu0
        %v1104 = vadd.f32 %v315, %v1103
        %1105 = vdwg.mxu0
        %1106 = vmatprep.subr.mxu0 %v448
        %1107 = vmatpush1.msra.mxu0 %v446
        %1108 = vmatprep.subr.mxu0 0.0
        %1109 = vmatpush1.msra.mxu0 0.0
        %1110 = vmatprep.subr.mxu0 0.0
        %1111 = vmatpush1.msra.mxu0 0.0
        %1112 = vmatprep.subr.mxu0 0.0
        %1113 = vmatpush1.msra.mxu0 0.0
        %1114 = vmatprep.subr.mxu0 0.0
        %1115 = vmatpush1.msra.mxu0 0.0
        %1116 = vmatprep.subr.mxu0 0.0
        %1117 = vmatpush1.msra.mxu0 0.0
        %1118 = vmatprep.subr.mxu0 0.0
        %1119 = vmatpush1.msra.mxu0 0.0
        %1120 = vmatprep.subr.mxu0 0.0
        %1121 = vmatpush1.msra.mxu0 0.0
        %1122 = vmatprep.subr.mxu0 0.0
        %1123 = vmatpush1.msra.mxu0 0.0
        %1124 = vmatprep.subr.mxu0 0.0
        %1125 = vmatpush1.msra.mxu0 0.0
        %1126 = vmatprep.subr.mxu0 0.0
        %1127 = vmatpush1.msra.mxu0 0.0
        %1128 = vmatprep.subr.mxu0 0.0
        %1129 = vmatpush1.msra.mxu0 0.0
        %1130 = vmatprep.subr.mxu0 0.0
        %1131 = vmatpush1.msra.mxu0 0.0
        %1132 = vmatprep.subr.mxu0 0.0
        %1133 = vmatpush1.msra.mxu0 0.0
        %1134 = vmatprep.subr.mxu0 0.0
        %1135 = vmatpush1.msra.mxu0 0.0
        %1136 = vmatprep.subr.mxu0 0.0
        %1137 = vmatpush1.msra.mxu0 0.0
        %1138 = vmatprep.subr.mxu0 0.0
        %1139 = vmatpush1.msra.mxu0 0.0
        %1140 = vmatprep.subr.mxu0 0.0
        %1141 = vmatpush1.msra.mxu0 0.0
        %1142 = vmatprep.subr.mxu0 0.0
        %1143 = vmatpush1.msra.mxu0 0.0
        %1144 = vmatprep.subr.mxu0 0.0
        %1145 = vmatpush1.msra.mxu0 0.0
        %1146 = vmatprep.subr.mxu0 0.0
        %1147 = vmatpush1.msra.mxu0 0.0
        %1148 = vmatprep.subr.mxu0 0.0
        %1149 = vmatpush1.msra.mxu0 0.0
        %1150 = vmatprep.subr.mxu0 0.0
        %1151 = vmatpush1.msra.mxu0 0.0
        %1152 = vmatprep.subr.mxu0 0.0
        %1153 = vmatpush1.msra.mxu0 0.0
        %1154 = vmatprep.subr.mxu0 0.0
        %1155 = vmatpush1.msra.mxu0 0.0
        %1156 = vmatprep.subr.mxu0 0.0
        %1157 = vmatpush1.msra.mxu0 0.0
        %1158 = vmatprep.subr.mxu0 0.0
        %1159 = vmatpush1.msra.mxu0 0.0
        %1160 = vmatprep.subr.mxu0 0.0
        %1161 = vmatpush1.msra.mxu0 0.0
        %1162 = vmatprep.subr.mxu0 0.0
        %1163 = vmatpush1.msra.mxu0 0.0
        %1164 = vmatprep.subr.mxu0 0.0
        %1165 = vmatpush1.msra.mxu0 0.0
        %1166 = vmatprep.subr.mxu0 0.0
        %1167 = vmatpush1.msra.mxu0 0.0
        %1168 = vmatprep.subr.mxu0 0.0
        %1169 = vmatpush1.msra.mxu0 0.0
        %1170 = vmatprep.mubr.f32.mxu0 0.0
        %1171 = vmatmul.mubr.f32.gmra.mrb[0].mxu0 %v382
        %v1172 = vpop.f32.mrb[0].mxu0
        %v1173 = vadd.f32 %v319, %v1172
        %v1174 = vpop.f32.mrb[0].mxu0
        %v1175 = vadd.f32 %v323, %v1174
        %1176 = vmatprep.mubr.f32.mxu0 0.0
        %1177 = vmatmul.mubr.f32.gmra.mrb[0].mxu0 %v385
        %v1178 = vpop.f32.mrb[0].mxu0
        %v1179 = vadd.f32 %v319, %v1178
        %v1180 = vpop.f32.mrb[0].mxu0
        %v1181 = vadd.f32 %v323, %v1180
        %1182 = vmatprep.mubr.f32.mxu0 0.0
        %1183 = vmatmul.mubr.f32.gmra.mrb[0].mxu0 %v388
        %v1184 = vpop.f32.mrb[0].mxu0
        %v1185 = vadd.f32 %v319, %v1184
        %v1186 = vpop.f32.mrb[0].mxu0
        %v1187 = vadd.f32 %v323, %v1186
        %1188 = vmatprep.mubr.f32.mxu0 0.0
        %1189 = vmatmul.mubr.f32.gmra.mrb[0].mxu0 %v391
        %v1190 = vpop.f32.mrb[0].mxu0
        %v1191 = vadd.f32 %v319, %v1190
        %v1192 = vpop.f32.mrb[0].mxu0
        %v1193 = vadd.f32 %v323, %v1192
        %1194 = vmatprep.mubr.f32.mxu0 0.0
        %1195 = vmatmul.mubr.f32.gmra.mrb[0].mxu0 %v394
        %v1196 = vpop.f32.mrb[0].mxu0
        %v1197 = vadd.f32 %v319, %v1196
        %v1198 = vpop.f32.mrb[0].mxu0
        %v1199 = vadd.f32 %v323, %v1198
        %1200 = vmatprep.mubr.f32.mxu0 0.0
        %1201 = vmatmul.mubr.f32.gmra.mrb[0].mxu0 %v397
        %v1202 = vpop.f32.mrb[0].mxu0
        %v1203 = vadd.f32 %v319, %v1202
        %v1204 = vpop.f32.mrb[0].mxu0
        %v1205 = vadd.f32 %v323, %v1204
        %1206 = vmatprep.mubr.f32.mxu0 0.0
        %1207 = vmatmul.mubr.f32.gmra.mrb[0].mxu0 %v400
        %v1208 = vpop.f32.mrb[0].mxu0
        %v1209 = vadd.f32 %v319, %v1208
        %v1210 = vpop.f32.mrb[0].mxu0
        %v1211 = vadd.f32 %v323, %v1210
        %1212 = vmatprep.mubr.f32.mxu0 0.0
        %1213 = vmatmul.mubr.f32.gmra.mrb[0].mxu0 %v403
        %v1214 = vpop.f32.mrb[0].mxu0
        %v1215 = vadd.f32 %v319, %v1214
        %v1216 = vpop.f32.mrb[0].mxu0
        %v1217 = vadd.f32 %v323, %v1216
        %1218 = vmatprep.mubr.f32.mxu0 0.0
        %1219 = vmatmul.mubr.f32.gmra.mrb[0].mxu0 %v406
        %v1220 = vpop.f32.mrb[0].mxu0
        %v1221 = vadd.f32 %v319, %v1220
        %v1222 = vpop.f32.mrb[0].mxu0
        %v1223 = vadd.f32 %v323, %v1222
        %1224 = vmatprep.mubr.f32.mxu0 0.0
        %1225 = vmatmul.mubr.f32.gmra.mrb[0].mxu0 %v409
        %v1226 = vpop.f32.mrb[0].mxu0
        %v1227 = vadd.f32 %v319, %v1226
        %v1228 = vpop.f32.mrb[0].mxu0
        %v1229 = vadd.f32 %v323, %v1228
        %1230 = vmatprep.mubr.f32.mxu0 0.0
        %1231 = vmatmul.mubr.f32.gmra.mrb[0].mxu0 %v412
        %v1232 = vpop.f32.mrb[0].mxu0
        %v1233 = vadd.f32 %v319, %v1232
        %v1234 = vpop.f32.mrb[0].mxu0
        %v1235 = vadd.f32 %v323, %v1234
        %1236 = vmatprep.mubr.f32.mxu0 0.0
        %1237 = vmatmul.mubr.f32.gmra.mrb[0].mxu0 %v415
        %v1238 = vpop.f32.mrb[0].mxu0
        %v1239 = vadd.f32 %v319, %v1238
        %v1240 = vpop.f32.mrb[0].mxu0
        %v1241 = vadd.f32 %v323, %v1240
        %1242 = vmatprep.mubr.f32.mxu0 0.0
        %1243 = vmatmul.mubr.f32.gmra.mrb[0].mxu0 %v418
        %v1244 = vpop.f32.mrb[0].mxu0
        %v1245 = vadd.f32 %v319, %v1244
        %v1246 = vpop.f32.mrb[0].mxu0
        %v1247 = vadd.f32 %v323, %v1246
        %1248 = vmatprep.mubr.f32.mxu0 0.0
        %1249 = vmatmul.mubr.f32.gmra.mrb[0].mxu0 %v421
        %v1250 = vpop.f32.mrb[0].mxu0
        %v1251 = vadd.f32 %v319, %v1250
        %v1252 = vpop.f32.mrb[0].mxu0
        %v1253 = vadd.f32 %v323, %v1252
        %1254 = vmatprep.mubr.f32.mxu0 0.0
        %1255 = vmatmul.mubr.f32.gmra.mrb[0].mxu0 %v424
        %v1256 = vpop.f32.mrb[0].mxu0
        %v1257 = vadd.f32 %v319, %v1256
        %v1258 = vpop.f32.mrb[0].mxu0
        %v1259 = vadd.f32 %v323, %v1258
        %1260 = vmatprep.mubr.f32.mxu0 0.0
        %1261 = vmatmul.mubr.f32.gmra.mrb[0].mxu0 %v427
        %v1262 = vpop.f32.mrb[0].mxu0
        %v1263 = vadd.f32 %v319, %v1262
        %v1264 = vpop.f32.mrb[0].mxu0
        %v1265 = vadd.f32 %v323, %v1264
        %1266 = vdwg.mxu0
        %1267 = vmatprep.subr.mxu0 %v452
        %1268 = vmatpush1.msra.mxu0 %v450
        %1269 = vmatprep.subr.mxu0 0.0
        %1270 = vmatpush1.msra.mxu0 0.0
        %1271 = vmatprep.subr.mxu0 0.0
        %1272 = vmatpush1.msra.mxu0 0.0
        %1273 = vmatprep.subr.mxu0 0.0
        %1274 = vmatpush1.msra.mxu0 0.0
        %1275 = vmatprep.subr.mxu0 0.0
        %1276 = vmatpush1.msra.mxu0 0.0
        %1277 = vmatprep.subr.mxu0 0.0
        %1278 = vmatpush1.msra.mxu0 0.0
        %1279 = vmatprep.subr.mxu0 0.0
        %1280 = vmatpush1.msra.mxu0 0.0
        %1281 = vmatprep.subr.mxu0 0.0
        %1282 = vmatpush1.msra.mxu0 0.0
        %1283 = vmatprep.subr.mxu0 0.0
        %1284 = vmatpush1.msra.mxu0 0.0
        %1285 = vmatprep.subr.mxu0 0.0
        %1286 = vmatpush1.msra.mxu0 0.0
        %1287 = vmatprep.subr.mxu0 0.0
        %1288 = vmatpush1.msra.mxu0 0.0
        %1289 = vmatprep.subr.mxu0 0.0
        %1290 = vmatpush1.msra.mxu0 0.0
        %1291 = vmatprep.subr.mxu0 0.0
        %1292 = vmatpush1.msra.mxu0 0.0
        %1293 = vmatprep.subr.mxu0 0.0
        %1294 = vmatpush1.msra.mxu0 0.0
        %1295 = vmatprep.subr.mxu0 0.0
        %1296 = vmatpush1.msra.mxu0 0.0
        %1297 = vmatprep.subr.mxu0 0.0
        %1298 = vmatpush1.msra.mxu0 0.0
        %1299 = vmatprep.subr.mxu0 0.0
        %1300 = vmatpush1.msra.mxu0 0.0
        %1301 = vmatprep.subr.mxu0 0.0
        %1302 = vmatpush1.msra.mxu0 0.0
        %1303 = vmatprep.subr.mxu0 0.0
        %1304 = vmatpush1.msra.mxu0 0.0
        %1305 = vmatprep.subr.mxu0 0.0
        %1306 = vmatpush1.msra.mxu0 0.0
        %1307 = vmatprep.subr.mxu0 0.0
        %1308 = vmatpush1.msra.mxu0 0.0
        %1309 = vmatprep.subr.mxu0 0.0
        %1310 = vmatpush1.msra.mxu0 0.0
        %1311 = vmatprep.subr.mxu0 0.0
        %1312 = vmatpush1.msra.mxu0 0.0
        %1313 = vmatprep.subr.mxu0 0.0
        %1314 = vmatpush1.msra.mxu0 0.0
        %1315 = vmatprep.subr.mxu0 0.0
        %1316 = vmatpush1.msra.mxu0 0.0
        %1317 = vmatprep.subr.mxu0 0.0
        %1318 = vmatpush1.msra.mxu0 0.0
        %1319 = vmatprep.subr.mxu0 0.0
        %1320 = vmatpush1.msra.mxu0 0.0
        %1321 = vmatprep.subr.mxu0 0.0
        %1322 = vmatpush1.msra.mxu0 0.0
        %1323 = vmatprep.subr.mxu0 0.0
        %1324 = vmatpush1.msra.mxu0 0.0
        %1325 = vmatprep.subr.mxu0 0.0
        %1326 = vmatpush1.msra.mxu0 0.0
        %1327 = vmatprep.subr.mxu0 0.0
        %1328 = vmatpush1.msra.mxu0 0.0
        %1329 = vmatprep.subr.mxu0 0.0
        %1330 = vmatpush1.msra.mxu0 0.0
        %1331 = vmatprep.mubr.f32.mxu0 0.0
        %1332 = vmatmul.mubr.f32.gmra.mrb[0].mxu0 %v382
        %v1333 = vpop.f32.mrb[0].mxu0
        %v1334 = vadd.f32 %v327, %v1333
        %v1335 = vpop.f32.mrb[0].mxu0
        %v1336 = vadd.f32 %v331, %v1335
        %1337 = vmatprep.mubr.f32.mxu0 0.0
        %1338 = vmatmul.mubr.f32.gmra.mrb[0].mxu0 %v385
        %v1339 = vpop.f32.mrb[0].mxu0
        %v1340 = vadd.f32 %v327, %v1339
        %v1341 = vpop.f32.mrb[0].mxu0
        %v1342 = vadd.f32 %v331, %v1341
        %1343 = vmatprep.mubr.f32.mxu0 0.0
        %1344 = vmatmul.mubr.f32.gmra.mrb[0].mxu0 %v388
        %v1345 = vpop.f32.mrb[0].mxu0
        %v1346 = vadd.f32 %v327, %v1345
        %v1347 = vpop.f32.mrb[0].mxu0
        %v1348 = vadd.f32 %v331, %v1347
        %1349 = vmatprep.mubr.f32.mxu0 0.0
        %1350 = vmatmul.mubr.f32.gmra.mrb[0].mxu0 %v391
        %v1351 = vpop.f32.mrb[0].mxu0
        %v1352 = vadd.f32 %v327, %v1351
        %v1353 = vpop.f32.mrb[0].mxu0
        %v1354 = vadd.f32 %v331, %v1353
        %1355 = vmatprep.mubr.f32.mxu0 0.0
        %1356 = vmatmul.mubr.f32.gmra.mrb[0].mxu0 %v394
        %v1357 = vpop.f32.mrb[0].mxu0
        %v1358 = vadd.f32 %v327, %v1357
        %v1359 = vpop.f32.mrb[0].mxu0
        %v1360 = vadd.f32 %v331, %v1359
        %1361 = vmatprep.mubr.f32.mxu0 0.0
        %1362 = vmatmul.mubr.f32.gmra.mrb[0].mxu0 %v397
        %v1363 = vpop.f32.mrb[0].mxu0
        %v1364 = vadd.f32 %v327, %v1363
        %v1365 = vpop.f32.mrb[0].mxu0
        %v1366 = vadd.f32 %v331, %v1365
        %1367 = vmatprep.mubr.f32.mxu0 0.0
        %1368 = vmatmul.mubr.f32.gmra.mrb[0].mxu0 %v400
        %v1369 = vpop.f32.mrb[0].mxu0
        %v1370 = vadd.f32 %v327, %v1369
        %v1371 = vpop.f32.mrb[0].mxu0
        %v1372 = vadd.f32 %v331, %v1371
        %1373 = vmatprep.mubr.f32.mxu0 0.0
        %1374 = vmatmul.mubr.f32.gmra.mrb[0].mxu0 %v403
        %v1375 = vpop.f32.mrb[0].mxu0
        %v1376 = vadd.f32 %v327, %v1375
        %v1377 = vpop.f32.mrb[0].mxu0
        %v1378 = vadd.f32 %v331, %v1377
        %1379 = vmatprep.mubr.f32.mxu0 0.0
        %1380 = vmatmul.mubr.f32.gmra.mrb[0].mxu0 %v406
        %v1381 = vpop.f32.mrb[0].mxu0
        %v1382 = vadd.f32 %v327, %v1381
        %v1383 = vpop.f32.mrb[0].mxu0
        %v1384 = vadd.f32 %v331, %v1383
        %1385 = vmatprep.mubr.f32.mxu0 0.0
        %1386 = vmatmul.mubr.f32.gmra.mrb[0].mxu0 %v409
        %v1387 = vpop.f32.mrb[0].mxu0
        %v1388 = vadd.f32 %v327, %v1387
        %v1389 = vpop.f32.mrb[0].mxu0
        %v1390 = vadd.f32 %v331, %v1389
        %1391 = vmatprep.mubr.f32.mxu0 0.0
        %1392 = vmatmul.mubr.f32.gmra.mrb[0].mxu0 %v412
        %v1393 = vpop.f32.mrb[0].mxu0
        %v1394 = vadd.f32 %v327, %v1393
        %v1395 = vpop.f32.mrb[0].mxu0
        %v1396 = vadd.f32 %v331, %v1395
        %1397 = vmatprep.mubr.f32.mxu0 0.0
        %1398 = vmatmul.mubr.f32.gmra.mrb[0].mxu0 %v415
        %v1399 = vpop.f32.mrb[0].mxu0
        %v1400 = vadd.f32 %v327, %v1399
        %v1401 = vpop.f32.mrb[0].mxu0
        %v1402 = vadd.f32 %v331, %v1401
        %1403 = vmatprep.mubr.f32.mxu0 0.0
        %1404 = vmatmul.mubr.f32.gmra.mrb[0].mxu0 %v418
        %v1405 = vpop.f32.mrb[0].mxu0
        %v1406 = vadd.f32 %v327, %v1405
        %v1407 = vpop.f32.mrb[0].mxu0
        %v1408 = vadd.f32 %v331, %v1407
        %1409 = vmatprep.mubr.f32.mxu0 0.0
        %1410 = vmatmul.mubr.f32.gmra.mrb[0].mxu0 %v421
        %v1411 = vpop.f32.mrb[0].mxu0
        %v1412 = vadd.f32 %v327, %v1411
        %v1413 = vpop.f32.mrb[0].mxu0
        %v1414 = vadd.f32 %v331, %v1413
        %1415 = vmatprep.mubr.f32.mxu0 0.0
        %1416 = vmatmul.mubr.f32.gmra.mrb[0].mxu0 %v424
        %v1417 = vpop.f32.mrb[0].mxu0
        %v1418 = vadd.f32 %v327, %v1417
        %v1419 = vpop.f32.mrb[0].mxu0
        %v1420 = vadd.f32 %v331, %v1419
        %1421 = vmatprep.mubr.f32.mxu0 0.0
        %1422 = vmatmul.mubr.f32.gmra.mrb[0].mxu0 %v427
        %v1423 = vpop.f32.mrb[0].mxu0
        %v1424 = vadd.f32 %v327, %v1423
        %v1425 = vpop.f32.mrb[0].mxu0
        %v1426 = vadd.f32 %v331, %v1425
        %1427 = vdwg.mxu0
        %1428 = vmatprep.subr.mxu0 %v456
        %1429 = vmatpush1.msra.mxu0 %v454
        %1430 = vmatprep.subr.mxu0 0.0
        %1431 = vmatpush1.msra.mxu0 0.0
        %1432 = vmatprep.subr.mxu0 0.0
        %1433 = vmatpush1.msra.mxu0 0.0
        %1434 = vmatprep.subr.mxu0 0.0
        %1435 = vmatpush1.msra.mxu0 0.0
        %1436 = vmatprep.subr.mxu0 0.0
        %1437 = vmatpush1.msra.mxu0 0.0
        %1438 = vmatprep.subr.mxu0 0.0
        %1439 = vmatpush1.msra.mxu0 0.0
        %1440 = vmatprep.subr.mxu0 0.0
        %1441 = vmatpush1.msra.mxu0 0.0
        %1442 = vmatprep.subr.mxu0 0.0
        %1443 = vmatpush1.msra.mxu0 0.0
        %1444 = vmatprep.subr.mxu0 0.0
        %1445 = vmatpush1.msra.mxu0 0.0
        %1446 = vmatprep.subr.mxu0 0.0
        %1447 = vmatpush1.msra.mxu0 0.0
        %1448 = vmatprep.subr.mxu0 0.0
        %1449 = vmatpush1.msra.mxu0 0.0
        %1450 = vmatprep.subr.mxu0 0.0
        %1451 = vmatpush1.msra.mxu0 0.0
        %1452 = vmatprep.subr.mxu0 0.0
        %1453 = vmatpush1.msra.mxu0 0.0
        %1454 = vmatprep.subr.mxu0 0.0
        %1455 = vmatpush1.msra.mxu0 0.0
        %1456 = vmatprep.subr.mxu0 0.0
        %1457 = vmatpush1.msra.mxu0 0.0
        %1458 = vmatprep.subr.mxu0 0.0
        %1459 = vmatpush1.msra.mxu0 0.0
        %1460 = vmatprep.subr.mxu0 0.0
        %1461 = vmatpush1.msra.mxu0 0.0
        %1462 = vmatprep.subr.mxu0 0.0
        %1463 = vmatpush1.msra.mxu0 0.0
        %1464 = vmatprep.subr.mxu0 0.0
        %1465 = vmatpush1.msra.mxu0 0.0
        %1466 = vmatprep.subr.mxu0 0.0
        %1467 = vmatpush1.msra.mxu0 0.0
        %1468 = vmatprep.subr.mxu0 0.0
        %1469 = vmatpush1.msra.mxu0 0.0
        %1470 = vmatprep.subr.mxu0 0.0
        %1471 = vmatpush1.msra.mxu0 0.0
        %1472 = vmatprep.subr.mxu0 0.0
        %1473 = vmatpush1.msra.mxu0 0.0
        %1474 = vmatprep.subr.mxu0 0.0
        %1475 = vmatpush1.msra.mxu0 0.0
        %1476 = vmatprep.subr.mxu0 0.0
        %1477 = vmatpush1.msra.mxu0 0.0
        %1478 = vmatprep.subr.mxu0 0.0
        %1479 = vmatpush1.msra.mxu0 0.0
        %1480 = vmatprep.subr.mxu0 0.0
        %1481 = vmatpush1.msra.mxu0 0.0
        %1482 = vmatprep.subr.mxu0 0.0
        %1483 = vmatpush1.msra.mxu0 0.0
        %1484 = vmatprep.subr.mxu0 0.0
        %1485 = vmatpush1.msra.mxu0 0.0
        %1486 = vmatprep.subr.mxu0 0.0
        %1487 = vmatpush1.msra.mxu0 0.0
        %1488 = vmatprep.subr.mxu0 0.0
        %1489 = vmatpush1.msra.mxu0 0.0
        %1490 = vmatprep.subr.mxu0 0.0
        %1491 = vmatpush1.msra.mxu0 0.0
        %1492 = vmatprep.mubr.f32.mxu0 0.0
        %1493 = vmatmul.mubr.f32.gmra.mrb[0].mxu0 %v382
        %v1494 = vpop.f32.mrb[0].mxu0
        %v1495 = vadd.f32 %v335, %v1494
        %v1496 = vpop.f32.mrb[0].mxu0
        %v1497 = vadd.f32 %v339, %v1496
        %1498 = vmatprep.mubr.f32.mxu0 0.0
        %1499 = vmatmul.mubr.f32.gmra.mrb[0].mxu0 %v385
        %v1500 = vpop.f32.mrb[0].mxu0
        %v1501 = vadd.f32 %v335, %v1500
        %v1502 = vpop.f32.mrb[0].mxu0
        %v1503 = vadd.f32 %v339, %v1502
        %1504 = vmatprep.mubr.f32.mxu0 0.0
        %1505 = vmatmul.mubr.f32.gmra.mrb[0].mxu0 %v388
        %v1506 = vpop.f32.mrb[0].mxu0
        %v1507 = vadd.f32 %v335, %v1506
        %v1508 = vpop.f32.mrb[0].mxu0
        %v1509 = vadd.f32 %v339, %v1508
        %1510 = vmatprep.mubr.f32.mxu0 0.0
        %1511 = vmatmul.mubr.f32.gmra.mrb[0].mxu0 %v391
        %v1512 = vpop.f32.mrb[0].mxu0
        %v1513 = vadd.f32 %v335, %v1512
        %v1514 = vpop.f32.mrb[0].mxu0
        %v1515 = vadd.f32 %v339, %v1514
        %1516 = vmatprep.mubr.f32.mxu0 0.0
        %1517 = vmatmul.mubr.f32.gmra.mrb[0].mxu0 %v394
        %v1518 = vpop.f32.mrb[0].mxu0
        %v1519 = vadd.f32 %v335, %v1518
        %v1520 = vpop.f32.mrb[0].mxu0
        %v1521 = vadd.f32 %v339, %v1520
        %1522 = vmatprep.mubr.f32.mxu0 0.0
        %1523 = vmatmul.mubr.f32.gmra.mrb[0].mxu0 %v397
        %v1524 = vpop.f32.mrb[0].mxu0
        %v1525 = vadd.f32 %v335, %v1524
        %v1526 = vpop.f32.mrb[0].mxu0
        %v1527 = vadd.f32 %v339, %v1526
        %1528 = vmatprep.mubr.f32.mxu0 0.0
        %1529 = vmatmul.mubr.f32.gmra.mrb[0].mxu0 %v400
        %v1530 = vpop.f32.mrb[0].mxu0
        %v1531 = vadd.f32 %v335, %v1530
        %v1532 = vpop.f32.mrb[0].mxu0
        %v1533 = vadd.f32 %v339, %v1532
        %1534 = vmatprep.mubr.f32.mxu0 0.0
        %1535 = vmatmul.mubr.f32.gmra.mrb[0].mxu0 %v403
        %v1536 = vpop.f32.mrb[0].mxu0
        %v1537 = vadd.f32 %v335, %v1536
        %v1538 = vpop.f32.mrb[0].mxu0
        %v1539 = vadd.f32 %v339, %v1538
        %1540 = vmatprep.mubr.f32.mxu0 0.0
        %1541 = vmatmul.mubr.f32.gmra.mrb[0].mxu0 %v406
        %v1542 = vpop.f32.mrb[0].mxu0
        %v1543 = vadd.f32 %v335, %v1542
        %v1544 = vpop.f32.mrb[0].mxu0
        %v1545 = vadd.f32 %v339, %v1544
        %1546 = vmatprep.mubr.f32.mxu0 0.0
        %1547 = vmatmul.mubr.f32.gmra.mrb[0].mxu0 %v409
        %v1548 = vpop.f32.mrb[0].mxu0
        %v1549 = vadd.f32 %v335, %v1548
        %v1550 = vpop.f32.mrb[0].mxu0
        %v1551 = vadd.f32 %v339, %v1550
        %1552 = vmatprep.mubr.f32.mxu0 0.0
        %1553 = vmatmul.mubr.f32.gmra.mrb[0].mxu0 %v412
        %v1554 = vpop.f32.mrb[0].mxu0
        %v1555 = vadd.f32 %v335, %v1554
        %v1556 = vpop.f32.mrb[0].mxu0
        %v1557 = vadd.f32 %v339, %v1556
        %1558 = vmatprep.mubr.f32.mxu0 0.0
        %1559 = vmatmul.mubr.f32.gmra.mrb[0].mxu0 %v415
        %v1560 = vpop.f32.mrb[0].mxu0
        %v1561 = vadd.f32 %v335, %v1560
        %v1562 = vpop.f32.mrb[0].mxu0
        %v1563 = vadd.f32 %v339, %v1562
        %1564 = vmatprep.mubr.f32.mxu0 0.0
        %1565 = vmatmul.mubr.f32.gmra.mrb[0].mxu0 %v418
        %v1566 = vpop.f32.mrb[0].mxu0
        %v1567 = vadd.f32 %v335, %v1566
        %v1568 = vpop.f32.mrb[0].mxu0
        %v1569 = vadd.f32 %v339, %v1568
        %1570 = vmatprep.mubr.f32.mxu0 0.0
        %1571 = vmatmul.mubr.f32.gmra.mrb[0].mxu0 %v421
        %v1572 = vpop.f32.mrb[0].mxu0
        %v1573 = vadd.f32 %v335, %v1572
        %v1574 = vpop.f32.mrb[0].mxu0
        %v1575 = vadd.f32 %v339, %v1574
        %1576 = vmatprep.mubr.f32.mxu0 0.0
        %1577 = vmatmul.mubr.f32.gmra.mrb[0].mxu0 %v424
        %v1578 = vpop.f32.mrb[0].mxu0
        %v1579 = vadd.f32 %v335, %v1578
        %v1580 = vpop.f32.mrb[0].mxu0
        %v1581 = vadd.f32 %v339, %v1580
        %1582 = vmatprep.mubr.f32.mxu0 0.0
        %1583 = vmatmul.mubr.f32.gmra.mrb[0].mxu0 %v427
        %v1584 = vpop.f32.mrb[0].mxu0
        %v1585 = vadd.f32 %v335, %v1584
        %v1586 = vpop.f32.mrb[0].mxu0
        %v1587 = vadd.f32 %v339, %v1586
        %1588 = vdwg.mxu0
        %1589 = vmatprep.subr.mxu0 %v460
        %1590 = vmatpush1.msra.mxu0 %v458
        %1591 = vmatprep.subr.mxu0 0.0
        %1592 = vmatpush1.msra.mxu0 0.0
        %1593 = vmatprep.subr.mxu0 0.0
        %1594 = vmatpush1.msra.mxu0 0.0
        %1595 = vmatprep.subr.mxu0 0.0
        %1596 = vmatpush1.msra.mxu0 0.0
        %1597 = vmatprep.subr.mxu0 0.0
        %1598 = vmatpush1.msra.mxu0 0.0
        %1599 = vmatprep.subr.mxu0 0.0
        %1600 = vmatpush1.msra.mxu0 0.0
        %1601 = vmatprep.subr.mxu0 0.0
        %1602 = vmatpush1.msra.mxu0 0.0
        %1603 = vmatprep.subr.mxu0 0.0
        %1604 = vmatpush1.msra.mxu0 0.0
        %1605 = vmatprep.subr.mxu0 0.0
        %1606 = vmatpush1.msra.mxu0 0.0
        %1607 = vmatprep.subr.mxu0 0.0
        %1608 = vmatpush1.msra.mxu0 0.0
        %1609 = vmatprep.subr.mxu0 0.0
        %1610 = vmatpush1.msra.mxu0 0.0
        %1611 = vmatprep.subr.mxu0 0.0
        %1612 = vmatpush1.msra.mxu0 0.0
        %1613 = vmatprep.subr.mxu0 0.0
        %1614 = vmatpush1.msra.mxu0 0.0
        %1615 = vmatprep.subr.mxu0 0.0
        %1616 = vmatpush1.msra.mxu0 0.0
        %1617 = vmatprep.subr.mxu0 0.0
        %1618 = vmatpush1.msra.mxu0 0.0
        %1619 = vmatprep.subr.mxu0 0.0
        %1620 = vmatpush1.msra.mxu0 0.0
        %1621 = vmatprep.subr.mxu0 0.0
        %1622 = vmatpush1.msra.mxu0 0.0
        %1623 = vmatprep.subr.mxu0 0.0
        %1624 = vmatpush1.msra.mxu0 0.0
        %1625 = vmatprep.subr.mxu0 0.0
        %1626 = vmatpush1.msra.mxu0 0.0
        %1627 = vmatprep.subr.mxu0 0.0
        %1628 = vmatpush1.msra.mxu0 0.0
        %1629 = vmatprep.subr.mxu0 0.0
        %1630 = vmatpush1.msra.mxu0 0.0
        %1631 = vmatprep.subr.mxu0 0.0
        %1632 = vmatpush1.msra.mxu0 0.0
        %1633 = vmatprep.subr.mxu0 0.0
        %1634 = vmatpush1.msra.mxu0 0.0
        %1635 = vmatprep.subr.mxu0 0.0
        %1636 = vmatpush1.msra.mxu0 0.0
        %1637 = vmatprep.subr.mxu0 0.0
        %1638 = vmatpush1.msra.mxu0 0.0
        %1639 = vmatprep.subr.mxu0 0.0
        %1640 = vmatpush1.msra.mxu0 0.0
        %1641 = vmatprep.subr.mxu0 0.0
        %1642 = vmatpush1.msra.mxu0 0.0
        %1643 = vmatprep.subr.mxu0 0.0
        %1644 = vmatpush1.msra.mxu0 0.0
        %1645 = vmatprep.subr.mxu0 0.0
        %1646 = vmatpush1.msra.mxu0 0.0
        %1647 = vmatprep.subr.mxu0 0.0
        %1648 = vmatpush1.msra.mxu0 0.0
        %1649 = vmatprep.subr.mxu0 0.0
        %1650 = vmatpush1.msra.mxu0 0.0
        %1651 = vmatprep.subr.mxu0 0.0
        %1652 = vmatpush1.msra.mxu0 0.0
        %1653 = vmatprep.mubr.f32.mxu0 0.0
        %1654 = vmatmul.mubr.f32.gmra.mrb[0].mxu0 %v382
        %v1655 = vpop.f32.mrb[0].mxu0
        %v1656 = vadd.f32 %v343, %v1655
        %v1657 = vpop.f32.mrb[0].mxu0
        %v1658 = vadd.f32 %v347, %v1657
        %1659 = vmatprep.mubr.f32.mxu0 0.0
        %1660 = vmatmul.mubr.f32.gmra.mrb[0].mxu0 %v385
        %v1661 = vpop.f32.mrb[0].mxu0
        %v1662 = vadd.f32 %v343, %v1661
        %v1663 = vpop.f32.mrb[0].mxu0
        %v1664 = vadd.f32 %v347, %v1663
        %1665 = vmatprep.mubr.f32.mxu0 0.0
        %1666 = vmatmul.mubr.f32.gmra.mrb[0].mxu0 %v388
        %v1667 = vpop.f32.mrb[0].mxu0
        %v1668 = vadd.f32 %v343, %v1667
        %v1669 = vpop.f32.mrb[0].mxu0
        %v1670 = vadd.f32 %v347, %v1669
        %1671 = vmatprep.mubr.f32.mxu0 0.0
        %1672 = vmatmul.mubr.f32.gmra.mrb[0].mxu0 %v391
        %v1673 = vpop.f32.mrb[0].mxu0
        %v1674 = vadd.f32 %v343, %v1673
        %v1675 = vpop.f32.mrb[0].mxu0
        %v1676 = vadd.f32 %v347, %v1675
        %1677 = vmatprep.mubr.f32.mxu0 0.0
        %1678 = vmatmul.mubr.f32.gmra.mrb[0].mxu0 %v394
        %v1679 = vpop.f32.mrb[0].mxu0
        %v1680 = vadd.f32 %v343, %v1679
        %v1681 = vpop.f32.mrb[0].mxu0
        %v1682 = vadd.f32 %v347, %v1681
        %1683 = vmatprep.mubr.f32.mxu0 0.0
        %1684 = vmatmul.mubr.f32.gmra.mrb[0].mxu0 %v397
        %v1685 = vpop.f32.mrb[0].mxu0
        %v1686 = vadd.f32 %v343, %v1685
        %v1687 = vpop.f32.mrb[0].mxu0
        %v1688 = vadd.f32 %v347, %v1687
        %1689 = vmatprep.mubr.f32.mxu0 0.0
        %1690 = vmatmul.mubr.f32.gmra.mrb[0].mxu0 %v400
        %v1691 = vpop.f32.mrb[0].mxu0
        %v1692 = vadd.f32 %v343, %v1691
        %v1693 = vpop.f32.mrb[0].mxu0
        %v1694 = vadd.f32 %v347, %v1693
        %1695 = vmatprep.mubr.f32.mxu0 0.0
        %1696 = vmatmul.mubr.f32.gmra.mrb[0].mxu0 %v403
        %v1697 = vpop.f32.mrb[0].mxu0
        %v1698 = vadd.f32 %v343, %v1697
        %v1699 = vpop.f32.mrb[0].mxu0
        %v1700 = vadd.f32 %v347, %v1699
        %1701 = vmatprep.mubr.f32.mxu0 0.0
        %1702 = vmatmul.mubr.f32.gmra.mrb[0].mxu0 %v406
        %v1703 = vpop.f32.mrb[0].mxu0
        %v1704 = vadd.f32 %v343, %v1703
        %v1705 = vpop.f32.mrb[0].mxu0
        %v1706 = vadd.f32 %v347, %v1705
        %1707 = vmatprep.mubr.f32.mxu0 0.0
        %1708 = vmatmul.mubr.f32.gmra.mrb[0].mxu0 %v409
        %v1709 = vpop.f32.mrb[0].mxu0
        %v1710 = vadd.f32 %v343, %v1709
        %v1711 = vpop.f32.mrb[0].mxu0
        %v1712 = vadd.f32 %v347, %v1711
        %1713 = vmatprep.mubr.f32.mxu0 0.0
        %1714 = vmatmul.mubr.f32.gmra.mrb[0].mxu0 %v412
        %v1715 = vpop.f32.mrb[0].mxu0
        %v1716 = vadd.f32 %v343, %v1715
        %v1717 = vpop.f32.mrb[0].mxu0
        %v1718 = vadd.f32 %v347, %v1717
        %1719 = vmatprep.mubr.f32.mxu0 0.0
        %1720 = vmatmul.mubr.f32.gmra.mrb[0].mxu0 %v415
        %v1721 = vpop.f32.mrb[0].mxu0
        %v1722 = vadd.f32 %v343, %v1721
        %v1723 = vpop.f32.mrb[0].mxu0
        %v1724 = vadd.f32 %v347, %v1723
        %1725 = vmatprep.mubr.f32.mxu0 0.0
        %1726 = vmatmul.mubr.f32.gmra.mrb[0].mxu0 %v418
        %v1727 = vpop.f32.mrb[0].mxu0
        %v1728 = vadd.f32 %v343, %v1727
        %v1729 = vpop.f32.mrb[0].mxu0
        %v1730 = vadd.f32 %v347, %v1729
        %1731 = vmatprep.mubr.f32.mxu0 0.0
        %1732 = vmatmul.mubr.f32.gmra.mrb[0].mxu0 %v421
        %v1733 = vpop.f32.mrb[0].mxu0
        %v1734 = vadd.f32 %v343, %v1733
        %v1735 = vpop.f32.mrb[0].mxu0
        %v1736 = vadd.f32 %v347, %v1735
        %1737 = vmatprep.mubr.f32.mxu0 0.0
        %1738 = vmatmul.mubr.f32.gmra.mrb[0].mxu0 %v424
        %v1739 = vpop.f32.mrb[0].mxu0
        %v1740 = vadd.f32 %v343, %v1739
        %v1741 = vpop.f32.mrb[0].mxu0
        %v1742 = vadd.f32 %v347, %v1741
        %1743 = vmatprep.mubr.f32.mxu0 0.0
        %1744 = vmatmul.mubr.f32.gmra.mrb[0].mxu0 %v427
        %v1745 = vpop.f32.mrb[0].mxu0
        %v1746 = vadd.f32 %v343, %v1745
        %v1747 = vpop.f32.mrb[0].mxu0
        %v1748 = vadd.f32 %v347, %v1747
        %1749 = vdwg.mxu0
        %v1750 = vmax.f32 %v529, 0.0
        %v1751 = vmax.f32 %v531, 0.0
        %v1752 = vmax.f32 %v690, 0.0
        %v1753 = vmax.f32 %v692, 0.0
        %v1754 = vmax.f32 %v851, 0.0
        %v1755 = vmax.f32 %v853, 0.0
        %v1756 = vmax.f32 %v1012, 0.0
        %v1757 = vmax.f32 %v1014, 0.0
        %v1758 = vmax.f32 %v1173, 0.0
        %v1759 = vmax.f32 %v1175, 0.0
        %v1760 = vmax.f32 %v1334, 0.0
        %v1761 = vmax.f32 %v1336, 0.0
        %v1762 = vmax.f32 %v1495, 0.0
        %v1763 = vmax.f32 %v1497, 0.0
        %v1764 = vmax.f32 %v1656, 0.0
        %v1765 = vmax.f32 %v1658, 0.0
        %v1766 = vmax.f32 %v535, 0.0
        %v1767 = vmax.f32 %v537, 0.0
        %v1768 = vmax.f32 %v696, 0.0
        %v1769 = vmax.f32 %v698, 0.0
        %v1770 = vmax.f32 %v857, 0.0
        %v1771 = vmax.f32 %v859, 0.0
        %v1772 = vmax.f32 %v1018, 0.0
        %v1773 = vmax.f32 %v1020, 0.0
        %v1774 = vmax.f32 %v1179, 0.0
        %v1775 = vmax.f32 %v1181, 0.0
        %v1776 = vmax.f32 %v1340, 0.0
        %v1777 = vmax.f32 %v1342, 0.0
        %v1778 = vmax.f32 %v1501, 0.0
        %v1779 = vmax.f32 %v1503, 0.0
        %v1780 = vmax.f32 %v1662, 0.0
        %v1781 = vmax.f32 %v1664, 0.0
        %v1782 = vmax.f32 %v541, 0.0
        %v1783 = vmax.f32 %v543, 0.0
        %v1784 = vmax.f32 %v702, 0.0
        %v1785 = vmax.f32 %v704, 0.0
        %v1786 = vmax.f32 %v863, 0.0
        %v1787 = vmax.f32 %v865, 0.0
        %v1788 = vmax.f32 %v1024, 0.0
        %v1789 = vmax.f32 %v1026, 0.0
        %v1790 = vmax.f32 %v1185, 0.0
        %v1791 = vmax.f32 %v1187, 0.0
        %v1792 = vmax.f32 %v1346, 0.0
        %v1793 = vmax.f32 %v1348, 0.0
        %v1794 = vmax.f32 %v1507, 0.0
        %v1795 = vmax.f32 %v1509, 0.0
        %v1796 = vmax.f32 %v1668, 0.0
        %v1797 = vmax.f32 %v1670, 0.0
        %v1798 = vmax.f32 %v547, 0.0
        %v1799 = vmax.f32 %v549, 0.0
        %v1800 = vmax.f32 %v708, 0.0
        %v1801 = vmax.f32 %v710, 0.0
        %v1802 = vmax.f32 %v869, 0.0
        %v1803 = vmax.f32 %v871, 0.0
        %v1804 = vmax.f32 %v1030, 0.0
        %v1805 = vmax.f32 %v1032, 0.0
        %v1806 = vmax.f32 %v1191, 0.0
        %v1807 = vmax.f32 %v1193, 0.0
        %v1808 = vmax.f32 %v1352, 0.0
        %v1809 = vmax.f32 %v1354, 0.0
        %v1810 = vmax.f32 %v1513, 0.0
        %v1811 = vmax.f32 %v1515, 0.0
        %v1812 = vmax.f32 %v1674, 0.0
        %v1813 = vmax.f32 %v1676, 0.0
        %v1814 = vmax.f32 %v553, 0.0
        %v1815 = vmax.f32 %v555, 0.0
        %v1816 = vmax.f32 %v714, 0.0
        %v1817 = vmax.f32 %v716, 0.0
        %v1818 = vmax.f32 %v875, 0.0
        %v1819 = vmax.f32 %v877, 0.0
        %v1820 = vmax.f32 %v1036, 0.0
        %v1821 = vmax.f32 %v1038, 0.0
        %v1822 = vmax.f32 %v1197, 0.0
        %v1823 = vmax.f32 %v1199, 0.0
        %v1824 = vmax.f32 %v1358, 0.0
        %v1825 = vmax.f32 %v1360, 0.0
        %v1826 = vmax.f32 %v1519, 0.0
        %v1827 = vmax.f32 %v1521, 0.0
        %v1828 = vmax.f32 %v1680, 0.0
        %v1829 = vmax.f32 %v1682, 0.0
        %v1830 = vmax.f32 %v559, 0.0
        %v1831 = vmax.f32 %v561, 0.0
        %v1832 = vmax.f32 %v720, 0.0
        %v1833 = vmax.f32 %v722, 0.0
        %v1834 = vmax.f32 %v881, 0.0
        %v1835 = vmax.f32 %v883, 0.0
        %v1836 = vmax.f32 %v1042, 0.0
        %v1837 = vmax.f32 %v1044, 0.0
        %v1838 = vmax.f32 %v1203, 0.0
        %v1839 = vmax.f32 %v1205, 0.0
        %v1840 = vmax.f32 %v1364, 0.0
        %v1841 = vmax.f32 %v1366, 0.0
        %v1842 = vmax.f32 %v1525, 0.0
        %v1843 = vmax.f32 %v1527, 0.0
        %v1844 = vmax.f32 %v1686, 0.0
        %v1845 = vmax.f32 %v1688, 0.0
        %v1846 = vmax.f32 %v565, 0.0
        %v1847 = vmax.f32 %v567, 0.0
        %v1848 = vmax.f32 %v726, 0.0
        %v1849 = vmax.f32 %v728, 0.0
        %v1850 = vmax.f32 %v887, 0.0
        %v1851 = vmax.f32 %v889, 0.0
        %v1852 = vmax.f32 %v1048, 0.0
        %v1853 = vmax.f32 %v1050, 0.0
        %v1854 = vmax.f32 %v1209, 0.0
        %v1855 = vmax.f32 %v1211, 0.0
        %v1856 = vmax.f32 %v1370, 0.0
        %v1857 = vmax.f32 %v1372, 0.0
        %v1858 = vmax.f32 %v1531, 0.0
        %v1859 = vmax.f32 %v1533, 0.0
        %v1860 = vmax.f32 %v1692, 0.0
        %v1861 = vmax.f32 %v1694, 0.0
        %v1862 = vmax.f32 %v571, 0.0
        %v1863 = vmax.f32 %v573, 0.0
        %v1864 = vmax.f32 %v732, 0.0
        %v1865 = vmax.f32 %v734, 0.0
        %v1866 = vmax.f32 %v893, 0.0
        %v1867 = vmax.f32 %v895, 0.0
        %v1868 = vmax.f32 %v1054, 0.0
        %v1869 = vmax.f32 %v1056, 0.0
        %v1870 = vmax.f32 %v1215, 0.0
        %v1871 = vmax.f32 %v1217, 0.0
        %v1872 = vmax.f32 %v1376, 0.0
        %v1873 = vmax.f32 %v1378, 0.0
        %v1874 = vmax.f32 %v1537, 0.0
        %v1875 = vmax.f32 %v1539, 0.0
        %v1876 = vmax.f32 %v1698, 0.0
        %v1877 = vmax.f32 %v1700, 0.0
        %v1878 = vmax.f32 %v577, 0.0
        %v1879 = vmax.f32 %v579, 0.0
        %v1880 = vmax.f32 %v738, 0.0
        %v1881 = vmax.f32 %v740, 0.0
        %v1882 = vmax.f32 %v899, 0.0
        %v1883 = vmax.f32 %v901, 0.0
        %v1884 = vmax.f32 %v1060, 0.0
        %v1885 = vmax.f32 %v1062, 0.0
        %v1886 = vmax.f32 %v1221, 0.0
        %v1887 = vmax.f32 %v1223, 0.0
        %v1888 = vmax.f32 %v1382, 0.0
        %v1889 = vmax.f32 %v1384, 0.0
        %v1890 = vmax.f32 %v1543, 0.0
        %v1891 = vmax.f32 %v1545, 0.0
        %v1892 = vmax.f32 %v1704, 0.0
        %v1893 = vmax.f32 %v1706, 0.0
        %v1894 = vmax.f32 %v583, 0.0
        %v1895 = vmax.f32 %v585, 0.0
        %v1896 = vmax.f32 %v744, 0.0
        %v1897 = vmax.f32 %v746, 0.0
        %v1898 = vmax.f32 %v905, 0.0
        %v1899 = vmax.f32 %v907, 0.0
        %v1900 = vmax.f32 %v1066, 0.0
        %v1901 = vmax.f32 %v1068, 0.0
        %v1902 = vmax.f32 %v1227, 0.0
        %v1903 = vmax.f32 %v1229, 0.0
        %v1904 = vmax.f32 %v1388, 0.0
        %v1905 = vmax.f32 %v1390, 0.0
        %v1906 = vmax.f32 %v1549, 0.0
        %v1907 = vmax.f32 %v1551, 0.0
        %v1908 = vmax.f32 %v1710, 0.0
        %v1909 = vmax.f32 %v1712, 0.0
        %v1910 = vmax.f32 %v589, 0.0
        %v1911 = vmax.f32 %v591, 0.0
        %v1912 = vmax.f32 %v750, 0.0
        %v1913 = vmax.f32 %v752, 0.0
        %v1914 = vmax.f32 %v911, 0.0
        %v1915 = vmax.f32 %v913, 0.0
        %v1916 = vmax.f32 %v1072, 0.0
        %v1917 = vmax.f32 %v1074, 0.0
        %v1918 = vmax.f32 %v1233, 0.0
        %v1919 = vmax.f32 %v1235, 0.0
        %v1920 = vmax.f32 %v1394, 0.0
        %v1921 = vmax.f32 %v1396, 0.0
        %v1922 = vmax.f32 %v1555, 0.0
        %v1923 = vmax.f32 %v1557, 0.0
        %v1924 = vmax.f32 %v1716, 0.0
        %v1925 = vmax.f32 %v1718, 0.0
        %v1926 = vmax.f32 %v595, 0.0
        %v1927 = vmax.f32 %v597, 0.0
        %v1928 = vmax.f32 %v756, 0.0
        %v1929 = vmax.f32 %v758, 0.0
        %v1930 = vmax.f32 %v917, 0.0
        %v1931 = vmax.f32 %v919, 0.0
        %v1932 = vmax.f32 %v1078, 0.0
        %v1933 = vmax.f32 %v1080, 0.0
        %v1934 = vmax.f32 %v1239, 0.0
        %v1935 = vmax.f32 %v1241, 0.0
        %v1936 = vmax.f32 %v1400, 0.0
        %v1937 = vmax.f32 %v1402, 0.0
        %v1938 = vmax.f32 %v1561, 0.0
        %v1939 = vmax.f32 %v1563, 0.0
        %v1940 = vmax.f32 %v1722, 0.0
        %v1941 = vmax.f32 %v1724, 0.0
        %v1942 = vmax.f32 %v601, 0.0
        %v1943 = vmax.f32 %v603, 0.0
        %v1944 = vmax.f32 %v762, 0.0
        %v1945 = vmax.f32 %v764, 0.0
        %v1946 = vmax.f32 %v923, 0.0
        %v1947 = vmax.f32 %v925, 0.0
        %v1948 = vmax.f32 %v1084, 0.0
        %v1949 = vmax.f32 %v1086, 0.0
        %v1950 = vmax.f32 %v1245, 0.0
        %v1951 = vmax.f32 %v1247, 0.0
        %v1952 = vmax.f32 %v1406, 0.0
        %v1953 = vmax.f32 %v1408, 0.0
        %v1954 = vmax.f32 %v1567, 0.0
        %v1955 = vmax.f32 %v1569, 0.0
        %v1956 = vmax.f32 %v1728, 0.0
        %v1957 = vmax.f32 %v1730, 0.0
        %v1958 = vmax.f32 %v607, 0.0
        %v1959 = vmax.f32 %v609, 0.0
        %v1960 = vmax.f32 %v768, 0.0
        %v1961 = vmax.f32 %v770, 0.0
        %v1962 = vmax.f32 %v929, 0.0
        %v1963 = vmax.f32 %v931, 0.0
        %v1964 = vmax.f32 %v1090, 0.0
        %v1965 = vmax.f32 %v1092, 0.0
        %v1966 = vmax.f32 %v1251, 0.0
        %v1967 = vmax.f32 %v1253, 0.0
        %v1968 = vmax.f32 %v1412, 0.0
        %v1969 = vmax.f32 %v1414, 0.0
        %v1970 = vmax.f32 %v1573, 0.0
        %v1971 = vmax.f32 %v1575, 0.0
        %v1972 = vmax.f32 %v1734, 0.0
        %v1973 = vmax.f32 %v1736, 0.0
        %v1974 = vmax.f32 %v613, 0.0
        %v1975 = vmax.f32 %v615, 0.0
        %v1976 = vmax.f32 %v774, 0.0
        %v1977 = vmax.f32 %v776, 0.0
        %v1978 = vmax.f32 %v935, 0.0
        %v1979 = vmax.f32 %v937, 0.0
        %v1980 = vmax.f32 %v1096, 0.0
        %v1981 = vmax.f32 %v1098, 0.0
        %v1982 = vmax.f32 %v1257, 0.0
        %v1983 = vmax.f32 %v1259, 0.0
        %v1984 = vmax.f32 %v1418, 0.0
        %v1985 = vmax.f32 %v1420, 0.0
        %v1986 = vmax.f32 %v1579, 0.0
        %v1987 = vmax.f32 %v1581, 0.0
        %v1988 = vmax.f32 %v1740, 0.0
        %v1989 = vmax.f32 %v1742, 0.0
        %v1990 = vmax.f32 %v619, 0.0
        %v1991 = vmax.f32 %v621, 0.0
        %v1992 = vmax.f32 %v780, 0.0
        %v1993 = vmax.f32 %v782, 0.0
        %v1994 = vmax.f32 %v941, 0.0
        %v1995 = vmax.f32 %v943, 0.0
        %v1996 = vmax.f32 %v1102, 0.0
        %v1997 = vmax.f32 %v1104, 0.0
        %v1998 = vmax.f32 %v1263, 0.0
        %v1999 = vmax.f32 %v1265, 0.0
        %v2000 = vmax.f32 %v1424, 0.0
        %v2001 = vmax.f32 %v1426, 0.0
        %v2002 = vmax.f32 %v1585, 0.0
        %v2003 = vmax.f32 %v1587, 0.0
        %v2004 = vmax.f32 %v1746, 0.0
        %v2005 = vmax.f32 %v1748, 0.0
        %v2006 = vld [vmem:[%s3] sm:$0xff]
        %v2007 = vld [vmem:[%s3 + $0x8] sm:$0xff]
        %v2008 = vld [vmem:[%s3 + $0x10] sm:$0xff]
        %v2009 = vld [vmem:[%s3 + $0x18] sm:$0xff]
        %v2010 = vld [vmem:[%s3 + $0x20] sm:$0xff]
        %v2011 = vld [vmem:[%s3 + $0x28] sm:$0xff]
        %v2012 = vld [vmem:[%s3 + $0x30] sm:$0xff]
        %v2013 = vld [vmem:[%s3 + $0x38] sm:$0xff]
        %v2014 = vld [vmem:[%s3 + $0x40] sm:$0xff]
        %v2015 = vld [vmem:[%s3 + $0x48] sm:$0xff]
        %v2016 = vld [vmem:[%s3 + $0x50] sm:$0xff]
        %v2017 = vld [vmem:[%s3 + $0x58] sm:$0xff]
        %v2018 = vld [vmem:[%s3 + $0x60] sm:$0xff]
        %v2019 = vld [vmem:[%s3 + $0x68] sm:$0xff]
        %v2020 = vld [vmem:[%s3 + $0x70] sm:$0xff]
        %v2021 = vld [vmem:[%s3 + $0x78] sm:$0xff]
        %v2022 = vld [vmem:[%s3 + $0x80] sm:$0xff]
        %v2023 = vld [vmem:[%s3 + $0x88] sm:$0xff]
        %v2024 = vld [vmem:[%s3 + $0x90] sm:$0xff]
        %v2025 = vld [vmem:[%s3 + $0x98] sm:$0xff]
        %v2026 = vld [vmem:[%s3 + $0xa0] sm:$0xff]
        %v2027 = vld [vmem:[%s3 + $0xa8] sm:$0xff]
        %v2028 = vld [vmem:[%s3 + $0xb0] sm:$0xff]
        %v2029 = vld [vmem:[%s3 + $0xb8] sm:$0xff]
        %v2030 = vld [vmem:[%s3 + $0xc0] sm:$0xff]
        %v2031 = vld [vmem:[%s3 + $0xc8] sm:$0xff]
        %v2032 = vld [vmem:[%s3 + $0xd0] sm:$0xff]
        %v2033 = vld [vmem:[%s3 + $0xd8] sm:$0xff]
        %v2034 = vld [vmem:[%s3 + $0xe0] sm:$0xff]
        %v2035 = vld [vmem:[%s3 + $0xe8] sm:$0xff]
        %v2036 = vld [vmem:[%s3 + $0xf0] sm:$0xff]
        %v2037 = vld [vmem:[%s3 + $0xf8] sm:$0xff]
        %v2038 = vld [vmem:[%s3 + $0x100] sm:$0xff]
        %v2039 = vld [vmem:[%s3 + $0x108] sm:$0xff]
        %v2040 = vld [vmem:[%s3 + $0x110] sm:$0xff]
        %v2041 = vld [vmem:[%s3 + $0x118] sm:$0xff]
        %v2042 = vld [vmem:[%s3 + $0x120] sm:$0xff]
        %v2043 = vld [vmem:[%s3 + $0x128] sm:$0xff]
        %v2044 = vld [vmem:[%s3 + $0x130] sm:$0xff]
        %v2045 = vld [vmem:[%s3 + $0x138] sm:$0xff]
        %v2046 = vld [vmem:[%s3 + $0x140] sm:$0xff]
        %v2047 = vld [vmem:[%s3 + $0x148] sm:$0xff]
        %v2048 = vld [vmem:[%s3 + $0x150] sm:$0xff]
        %v2049 = vld [vmem:[%s3 + $0x158] sm:$0xff]
        %v2050 = vld [vmem:[%s3 + $0x160] sm:$0xff]
        %v2051 = vld [vmem:[%s3 + $0x168] sm:$0xff]
        %v2052 = vld [vmem:[%s3 + $0x170] sm:$0xff]
        %v2053 = vld [vmem:[%s3 + $0x178] sm:$0xff]
        %v2054 = vld [vmem:[%s3 + $0x180] sm:$0xff]
        %v2055 = vld [vmem:[%s3 + $0x188] sm:$0xff]
        %v2056 = vld [vmem:[%s3 + $0x190] sm:$0xff]
        %v2057 = vld [vmem:[%s3 + $0x198] sm:$0xff]
        %v2058 = vld [vmem:[%s3 + $0x1a0] sm:$0xff]
        %v2059 = vld [vmem:[%s3 + $0x1a8] sm:$0xff]
        %v2060 = vld [vmem:[%s3 + $0x1b0] sm:$0xff]
        %v2061 = vld [vmem:[%s3 + $0x1b8] sm:$0xff]
        %v2062 = vld [vmem:[%s3 + $0x1c0] sm:$0xff]
        %v2063 = vld [vmem:[%s3 + $0x1c8] sm:$0xff]
        %v2064 = vld [vmem:[%s3 + $0x1d0] sm:$0xff]
        %v2065 = vld [vmem:[%s3 + $0x1d8] sm:$0xff]
        %v2066 = vld [vmem:[%s3 + $0x1e0] sm:$0xff]
        %v2067 = vld [vmem:[%s3 + $0x1e8] sm:$0xff]
        %v2068 = vld [vmem:[%s3 + $0x1f0] sm:$0xff]
        %v2069 = vld [vmem:[%s3 + $0x1f8] sm:$0xff]
        %v2070 = vld [vmem:[%s3 + $0x200] sm:$0xff]
        %v2071 = vld [vmem:[%s3 + $0x208] sm:$0xff]
        %v2072 = vld [vmem:[%s3 + $0x210] sm:$0xff]
        %v2073 = vld [vmem:[%s3 + $0x218] sm:$0xff]
        %v2074 = vld [vmem:[%s3 + $0x220] sm:$0xff]
        %v2075 = vld [vmem:[%s3 + $0x228] sm:$0xff]
        %v2076 = vld [vmem:[%s3 + $0x230] sm:$0xff]
        %v2077 = vld [vmem:[%s3 + $0x238] sm:$0xff]
        %v2078 = vld [vmem:[%s3 + $0x240] sm:$0xff]
        %v2079 = vld [vmem:[%s3 + $0x248] sm:$0xff]
        %v2080 = vld [vmem:[%s3 + $0x250] sm:$0xff]
        %v2081 = vld [vmem:[%s3 + $0x258] sm:$0xff]
        %v2082 = vld [vmem:[%s3 + $0x260] sm:$0xff]
        %v2083 = vld [vmem:[%s3 + $0x268] sm:$0xff]
        %v2084 = vld [vmem:[%s3 + $0x270] sm:$0xff]
        %v2085 = vld [vmem:[%s3 + $0x278] sm:$0xff]
        %v2086 = vld [vmem:[%s3 + $0x280] sm:$0xff]
        %v2087 = vld [vmem:[%s3 + $0x288] sm:$0xff]
        %v2088 = vld [vmem:[%s3 + $0x290] sm:$0xff]
        %v2089 = vld [vmem:[%s3 + $0x298] sm:$0xff]
        %v2090 = vld [vmem:[%s3 + $0x2a0] sm:$0xff]
        %v2091 = vld [vmem:[%s3 + $0x2a8] sm:$0xff]
        %v2092 = vld [vmem:[%s3 + $0x2b0] sm:$0xff]
        %v2093 = vld [vmem:[%s3 + $0x2b8] sm:$0xff]
        %v2094 = vld [vmem:[%s3 + $0x2c0] sm:$0xff]
        %v2095 = vld [vmem:[%s3 + $0x2c8] sm:$0xff]
        %v2096 = vld [vmem:[%s3 + $0x2d0] sm:$0xff]
        %v2097 = vld [vmem:[%s3 + $0x2d8] sm:$0xff]
        %v2098 = vld [vmem:[%s3 + $0x2e0] sm:$0xff]
        %v2099 = vld [vmem:[%s3 + $0x2e8] sm:$0xff]
        %v2100 = vld [vmem:[%s3 + $0x2f0] sm:$0xff]
        %v2101 = vld [vmem:[%s3 + $0x2f8] sm:$0xff]
        %v2102 = vld [vmem:[%s3 + $0x300] sm:$0xff]
        %v2103 = vld [vmem:[%s3 + $0x308] sm:$0xff]
        %v2104 = vld [vmem:[%s3 + $0x310] sm:$0xff]
        %v2105 = vld [vmem:[%s3 + $0x318] sm:$0xff]
        %v2106 = vld [vmem:[%s3 + $0x320] sm:$0xff]
        %v2107 = vld [vmem:[%s3 + $0x328] sm:$0xff]
        %v2108 = vld [vmem:[%s3 + $0x330] sm:$0xff]
        %v2109 = vld [vmem:[%s3 + $0x338] sm:$0xff]
        %v2110 = vld [vmem:[%s3 + $0x340] sm:$0xff]
        %v2111 = vld [vmem:[%s3 + $0x348] sm:$0xff]
        %v2112 = vld [vmem:[%s3 + $0x350] sm:$0xff]
        %v2113 = vld [vmem:[%s3 + $0x358] sm:$0xff]
        %v2114 = vld [vmem:[%s3 + $0x360] sm:$0xff]
        %v2115 = vld [vmem:[%s3 + $0x368] sm:$0xff]
        %v2116 = vld [vmem:[%s3 + $0x370] sm:$0xff]
        %v2117 = vld [vmem:[%s3 + $0x378] sm:$0xff]
        %v2118 = vld [vmem:[%s3 + $0x380] sm:$0xff]
        %v2119 = vld [vmem:[%s3 + $0x388] sm:$0xff]
        %v2120 = vld [vmem:[%s3 + $0x390] sm:$0xff]
        %v2121 = vld [vmem:[%s3 + $0x398] sm:$0xff]
        %v2122 = vld [vmem:[%s3 + $0x3a0] sm:$0xff]
        %v2123 = vld [vmem:[%s3 + $0x3a8] sm:$0xff]
        %v2124 = vld [vmem:[%s3 + $0x3b0] sm:$0xff]
        %v2125 = vld [vmem:[%s3 + $0x3b8] sm:$0xff]
        %v2126 = vld [vmem:[%s3 + $0x3c0] sm:$0xff]
        %v2127 = vld [vmem:[%s3 + $0x3c8] sm:$0xff]
        %v2128 = vld [vmem:[%s3 + $0x3d0] sm:$0xff]
        %v2129 = vld [vmem:[%s3 + $0x3d8] sm:$0xff]
        %v2130 = vld [vmem:[%s3 + $0x3e0] sm:$0xff]
        %v2131 = vld [vmem:[%s3 + $0x3e8] sm:$0xff]
        %v2132 = vld [vmem:[%s3 + $0x3f0] sm:$0xff]
        %v2133 = vld [vmem:[%s3 + $0x3f8] sm:$0xff]
        %v2134 = vld [vmem:[%s3 + $0x400] sm:$0xff]
        %v2135 = vld [vmem:[%s3 + $0x408] sm:$0xff]
        %v2136 = vld [vmem:[%s3 + $0x410] sm:$0xff]
        %v2137 = vld [vmem:[%s3 + $0x418] sm:$0xff]
        %v2138 = vld [vmem:[%s3 + $0x420] sm:$0xff]
        %v2139 = vld [vmem:[%s3 + $0x428] sm:$0xff]
        %v2140 = vld [vmem:[%s3 + $0x430] sm:$0xff]
        %v2141 = vld [vmem:[%s3 + $0x438] sm:$0xff]
        %v2142 = vld [vmem:[%s3 + $0x440] sm:$0xff]
        %v2143 = vld [vmem:[%s3 + $0x448] sm:$0xff]
        %v2144 = vld [vmem:[%s3 + $0x450] sm:$0xff]
        %v2145 = vld [vmem:[%s3 + $0x458] sm:$0xff]
        %v2146 = vld [vmem:[%s3 + $0x460] sm:$0xff]
        %v2147 = vld [vmem:[%s3 + $0x468] sm:$0xff]
        %v2148 = vld [vmem:[%s3 + $0x470] sm:$0xff]
        %v2149 = vld [vmem:[%s3 + $0x478] sm:$0xff]
        %v2150 = vld [vmem:[%s3 + $0x480] sm:$0xff]
        %v2151 = vld [vmem:[%s3 + $0x488] sm:$0xff]
        %v2152 = vld [vmem:[%s3 + $0x490] sm:$0xff]
        %v2153 = vld [vmem:[%s3 + $0x498] sm:$0xff]
        %v2154 = vld [vmem:[%s3 + $0x4a0] sm:$0xff]
        %v2155 = vld [vmem:[%s3 + $0x4a8] sm:$0xff]
        %v2156 = vld [vmem:[%s3 + $0x4b0] sm:$0xff]
        %v2157 = vld [vmem:[%s3 + $0x4b8] sm:$0xff]
        %v2158 = vld [vmem:[%s3 + $0x4c0] sm:$0xff]
        %v2159 = vld [vmem:[%s3 + $0x4c8] sm:$0xff]
        %v2160 = vld [vmem:[%s3 + $0x4d0] sm:$0xff]
        %v2161 = vld [vmem:[%s3 + $0x4d8] sm:$0xff]
        %v2162 = vld [vmem:[%s3 + $0x4e0] sm:$0xff]
        %v2163 = vld [vmem:[%s3 + $0x4e8] sm:$0xff]
        %v2164 = vld [vmem:[%s3 + $0x4f0] sm:$0xff]
        %v2165 = vld [vmem:[%s3 + $0x4f8] sm:$0xff]
        %v2166 = vld [vmem:[%s3 + $0x500] sm:$0xff]
        %v2167 = vld [vmem:[%s3 + $0x508] sm:$0xff]
        %v2168 = vld [vmem:[%s3 + $0x510] sm:$0xff]
        %v2169 = vld [vmem:[%s3 + $0x518] sm:$0xff]
        %v2170 = vld [vmem:[%s3 + $0x520] sm:$0xff]
        %v2171 = vld [vmem:[%s3 + $0x528] sm:$0xff]
        %v2172 = vld [vmem:[%s3 + $0x530] sm:$0xff]
        %v2173 = vld [vmem:[%s3 + $0x538] sm:$0xff]
        %v2174 = vld [vmem:[%s3 + $0x540] sm:$0xff]
        %v2175 = vld [vmem:[%s3 + $0x548] sm:$0xff]
        %v2176 = vld [vmem:[%s3 + $0x550] sm:$0xff]
        %v2177 = vld [vmem:[%s3 + $0x558] sm:$0xff]
        %v2178 = vld [vmem:[%s3 + $0x560] sm:$0xff]
        %v2179 = vld [vmem:[%s3 + $0x568] sm:$0xff]
        %v2180 = vld [vmem:[%s3 + $0x570] sm:$0xff]
        %v2181 = vld [vmem:[%s3 + $0x578] sm:$0xff]
        %v2182 = vld [vmem:[%s3 + $0x580] sm:$0xff]
        %v2183 = vld [vmem:[%s3 + $0x588] sm:$0xff]
        %v2184 = vld [vmem:[%s3 + $0x590] sm:$0xff]
        %v2185 = vld [vmem:[%s3 + $0x598] sm:$0xff]
        %v2186 = vld [vmem:[%s3 + $0x5a0] sm:$0xff]
        %v2187 = vld [vmem:[%s3 + $0x5a8] sm:$0xff]
        %v2188 = vld [vmem:[%s3 + $0x5b0] sm:$0xff]
        %v2189 = vld [vmem:[%s3 + $0x5b8] sm:$0xff]
        %v2190 = vld [vmem:[%s3 + $0x5c0] sm:$0xff]
        %v2191 = vld [vmem:[%s3 + $0x5c8] sm:$0xff]
        %v2192 = vld [vmem:[%s3 + $0x5d0] sm:$0xff]
        %v2193 = vld [vmem:[%s3 + $0x5d8] sm:$0xff]
        %v2194 = vld [vmem:[%s3 + $0x5e0] sm:$0xff]
        %v2195 = vld [vmem:[%s3 + $0x5e8] sm:$0xff]
        %v2196 = vld [vmem:[%s3 + $0x5f0] sm:$0xff]
        %v2197 = vld [vmem:[%s3 + $0x5f8] sm:$0xff]
        %v2198 = vld [vmem:[%s3 + $0x600] sm:$0xff]
        %v2199 = vld [vmem:[%s3 + $0x608] sm:$0xff]
        %v2200 = vld [vmem:[%s3 + $0x610] sm:$0xff]
        %v2201 = vld [vmem:[%s3 + $0x618] sm:$0xff]
        %v2202 = vld [vmem:[%s3 + $0x620] sm:$0xff]
        %v2203 = vld [vmem:[%s3 + $0x628] sm:$0xff]
        %v2204 = vld [vmem:[%s3 + $0x630] sm:$0xff]
        %v2205 = vld [vmem:[%s3 + $0x638] sm:$0xff]
        %v2206 = vld [vmem:[%s3 + $0x640] sm:$0xff]
        %v2207 = vld [vmem:[%s3 + $0x648] sm:$0xff]
        %v2208 = vld [vmem:[%s3 + $0x650] sm:$0xff]
        %v2209 = vld [vmem:[%s3 + $0x658] sm:$0xff]
        %v2210 = vld [vmem:[%s3 + $0x660] sm:$0xff]
        %v2211 = vld [vmem:[%s3 + $0x668] sm:$0xff]
        %v2212 = vld [vmem:[%s3 + $0x670] sm:$0xff]
        %v2213 = vld [vmem:[%s3 + $0x678] sm:$0xff]
        %v2214 = vld [vmem:[%s3 + $0x680] sm:$0xff]
        %v2215 = vld [vmem:[%s3 + $0x688] sm:$0xff]
        %v2216 = vld [vmem:[%s3 + $0x690] sm:$0xff]
        %v2217 = vld [vmem:[%s3 + $0x698] sm:$0xff]
        %v2218 = vld [vmem:[%s3 + $0x6a0] sm:$0xff]
        %v2219 = vld [vmem:[%s3 + $0x6a8] sm:$0xff]
        %v2220 = vld [vmem:[%s3 + $0x6b0] sm:$0xff]
        %v2221 = vld [vmem:[%s3 + $0x6b8] sm:$0xff]
        %v2222 = vld [vmem:[%s3 + $0x6c0] sm:$0xff]
        %v2223 = vld [vmem:[%s3 + $0x6c8] sm:$0xff]
        %v2224 = vld [vmem:[%s3 + $0x6d0] sm:$0xff]
        %v2225 = vld [vmem:[%s3 + $0x6d8] sm:$0xff]
        %v2226 = vld [vmem:[%s3 + $0x6e0] sm:$0xff]
        %v2227 = vld [vmem:[%s3 + $0x6e8] sm:$0xff]
        %v2228 = vld [vmem:[%s3 + $0x6f0] sm:$0xff]
        %v2229 = vld [vmem:[%s3 + $0x6f8] sm:$0xff]
        %v2230 = vld [vmem:[%s3 + $0x700] sm:$0xff]
        %v2231 = vld [vmem:[%s3 + $0x708] sm:$0xff]
        %v2232 = vld [vmem:[%s3 + $0x710] sm:$0xff]
        %v2233 = vld [vmem:[%s3 + $0x718] sm:$0xff]
        %v2234 = vld [vmem:[%s3 + $0x720] sm:$0xff]
        %v2235 = vld [vmem:[%s3 + $0x728] sm:$0xff]
        %v2236 = vld [vmem:[%s3 + $0x730] sm:$0xff]
        %v2237 = vld [vmem:[%s3 + $0x738] sm:$0xff]
        %v2238 = vld [vmem:[%s3 + $0x740] sm:$0xff]
        %v2239 = vld [vmem:[%s3 + $0x748] sm:$0xff]
        %v2240 = vld [vmem:[%s3 + $0x750] sm:$0xff]
        %v2241 = vld [vmem:[%s3 + $0x758] sm:$0xff]
        %v2242 = vld [vmem:[%s3 + $0x760] sm:$0xff]
        %v2243 = vld [vmem:[%s3 + $0x768] sm:$0xff]
        %v2244 = vld [vmem:[%s3 + $0x770] sm:$0xff]
        %v2245 = vld [vmem:[%s3 + $0x778] sm:$0xff]
        %v2246 = vld [vmem:[%s3 + $0x780] sm:$0xff]
        %v2247 = vld [vmem:[%s3 + $0x788] sm:$0xff]
        %v2248 = vld [vmem:[%s3 + $0x790] sm:$0xff]
        %v2249 = vld [vmem:[%s3 + $0x798] sm:$0xff]
        %v2250 = vld [vmem:[%s3 + $0x7a0] sm:$0xff]
        %v2251 = vld [vmem:[%s3 + $0x7a8] sm:$0xff]
        %v2252 = vld [vmem:[%s3 + $0x7b0] sm:$0xff]
        %v2253 = vld [vmem:[%s3 + $0x7b8] sm:$0xff]
        %v2254 = vld [vmem:[%s3 + $0x7c0] sm:$0xff]
        %v2255 = vld [vmem:[%s3 + $0x7c8] sm:$0xff]
        %v2256 = vld [vmem:[%s3 + $0x7d0] sm:$0xff]
        %v2257 = vld [vmem:[%s3 + $0x7d8] sm:$0xff]
        %v2258 = vld [vmem:[%s3 + $0x7e0] sm:$0xff]
        %v2259 = vld [vmem:[%s3 + $0x7e8] sm:$0xff]
        %v2260 = vld [vmem:[%s3 + $0x7f0] sm:$0xff]
        %v2261 = vld [vmem:[%s3 + $0x7f8] sm:$0xff]
        %2262 = vmatprep.subr.mxu0 0.0
        %2263 = vmatpush1.msra.mxu0 %v2006
        %2264 = vmatprep.subr.mxu0 0.0
        %2265 = vmatpush1.msra.mxu0 %v2007
        %2266 = vmatprep.subr.mxu0 0.0
        %2267 = vmatpush1.msra.mxu0 %v2008
        %2268 = vmatprep.subr.mxu0 0.0
        %2269 = vmatpush1.msra.mxu0 %v2009
        %2270 = vmatprep.subr.mxu0 0.0
        %2271 = vmatpush1.msra.mxu0 %v2010
        %2272 = vmatprep.subr.mxu0 0.0
        %2273 = vmatpush1.msra.mxu0 %v2011
        %2274 = vmatprep.subr.mxu0 0.0
        %2275 = vmatpush1.msra.mxu0 %v2012
        %2276 = vmatprep.subr.mxu0 0.0
        %2277 = vmatpush1.msra.mxu0 %v2013
        %2278 = vmatprep.subr.mxu0 0.0
        %2279 = vmatpush1.msra.mxu0 %v2014
        %2280 = vmatprep.subr.mxu0 0.0
        %2281 = vmatpush1.msra.mxu0 %v2015
        %2282 = vmatprep.subr.mxu0 0.0
        %2283 = vmatpush1.msra.mxu0 %v2016
        %2284 = vmatprep.subr.mxu0 0.0
        %2285 = vmatpush1.msra.mxu0 %v2017
        %2286 = vmatprep.subr.mxu0 0.0
        %2287 = vmatpush1.msra.mxu0 %v2018
        %2288 = vmatprep.subr.mxu0 0.0
        %2289 = vmatpush1.msra.mxu0 %v2019
        %2290 = vmatprep.subr.mxu0 0.0
        %2291 = vmatpush1.msra.mxu0 %v2020
        %2292 = vmatprep.subr.mxu0 0.0
        %2293 = vmatpush1.msra.mxu0 %v2021
        %2294 = vmatprep.subr.mxu0 0.0
        %2295 = vmatpush1.msra.mxu0 %v2022
        %2296 = vmatprep.subr.mxu0 0.0
        %2297 = vmatpush1.msra.mxu0 %v2023
        %2298 = vmatprep.subr.mxu0 0.0
        %2299 = vmatpush1.msra.mxu0 %v2024
        %2300 = vmatprep.subr.mxu0 0.0
        %2301 = vmatpush1.msra.mxu0 %v2025
        %2302 = vmatprep.subr.mxu0 0.0
        %2303 = vmatpush1.msra.mxu0 %v2026
        %2304 = vmatprep.subr.mxu0 0.0
        %2305 = vmatpush1.msra.mxu0 %v2027
        %2306 = vmatprep.subr.mxu0 0.0
        %2307 = vmatpush1.msra.mxu0 %v2028
        %2308 = vmatprep.subr.mxu0 0.0
        %2309 = vmatpush1.msra.mxu0 %v2029
        %2310 = vmatprep.subr.mxu0 0.0
        %2311 = vmatpush1.msra.mxu0 %v2030
        %2312 = vmatprep.subr.mxu0 0.0
        %2313 = vmatpush1.msra.mxu0 %v2031
        %2314 = vmatprep.subr.mxu0 0.0
        %2315 = vmatpush1.msra.mxu0 %v2032
        %2316 = vmatprep.subr.mxu0 0.0
        %2317 = vmatpush1.msra.mxu0 %v2033
        %2318 = vmatprep.subr.mxu0 0.0
        %2319 = vmatpush1.msra.mxu0 %v2034
        %2320 = vmatprep.subr.mxu0 0.0
        %2321 = vmatpush1.msra.mxu0 %v2035
        %2322 = vmatprep.subr.mxu0 0.0
        %2323 = vmatpush1.msra.mxu0 %v2036
        %2324 = vmatprep.subr.mxu0 0.0
        %2325 = vmatpush1.msra.mxu0 %v2037
        %2326 = vmatprep.mubr.f32.mxu0 %v1751
        %2327 = vmatmul.mubr.f32.gmra.mrb[0].mxu0 %v1750
        %v2328 = vpop.f32.mrb[0].mxu0
        %v2329 = vadd.f32 0.0, %v2328
        %v2330 = vpop.f32.mrb[0].mxu0
        %2331 = vmatprep.mubr.f32.mxu0 %v1767
        %2332 = vmatmul.mubr.f32.gmra.mrb[0].mxu0 %v1766
        %v2333 = vpop.f32.mrb[0].mxu0
        %v2334 = vadd.f32 0.0, %v2333
        %v2335 = vpop.f32.mrb[0].mxu0
        %2336 = vmatprep.mubr.f32.mxu0 %v1783
        %2337 = vmatmul.mubr.f32.gmra.mrb[0].mxu0 %v1782
        %v2338 = vpop.f32.mrb[0].mxu0
        %v2339 = vadd.f32 0.0, %v2338
        %v2340 = vpop.f32.mrb[0].mxu0
        %2341 = vmatprep.mubr.f32.mxu0 %v1799
        %2342 = vmatmul.mubr.f32.gmra.mrb[0].mxu0 %v1798
        %v2343 = vpop.f32.mrb[0].mxu0
        %v2344 = vadd.f32 0.0, %v2343
        %v2345 = vpop.f32.mrb[0].mxu0
        %2346 = vmatprep.mubr.f32.mxu0 %v1815
        %2347 = vmatmul.mubr.f32.gmra.mrb[0].mxu0 %v1814
        %v2348 = vpop.f32.mrb[0].mxu0
        %v2349 = vadd.f32 0.0, %v2348
        %v2350 = vpop.f32.mrb[0].mxu0
        %2351 = vmatprep.mubr.f32.mxu0 %v1831
        %2352 = vmatmul.mubr.f32.gmra.mrb[0].mxu0 %v1830
        %v2353 = vpop.f32.mrb[0].mxu0
        %v2354 = vadd.f32 0.0, %v2353
        %v2355 = vpop.f32.mrb[0].mxu0
        %2356 = vmatprep.mubr.f32.mxu0 %v1847
        %2357 = vmatmul.mubr.f32.gmra.mrb[0].mxu0 %v1846
        %v2358 = vpop.f32.mrb[0].mxu0
        %v2359 = vadd.f32 0.0, %v2358
        %v2360 = vpop.f32.mrb[0].mxu0
        %2361 = vmatprep.mubr.f32.mxu0 %v1863
        %2362 = vmatmul.mubr.f32.gmra.mrb[0].mxu0 %v1862
        %v2363 = vpop.f32.mrb[0].mxu0
        %v2364 = vadd.f32 0.0, %v2363
        %v2365 = vpop.f32.mrb[0].mxu0
        %2366 = vmatprep.mubr.f32.mxu0 %v1879
        %2367 = vmatmul.mubr.f32.gmra.mrb[0].mxu0 %v1878
        %v2368 = vpop.f32.mrb[0].mxu0
        %v2369 = vadd.f32 0.0, %v2368
        %v2370 = vpop.f32.mrb[0].mxu0
        %2371 = vmatprep.mubr.f32.mxu0 %v1895
        %2372 = vmatmul.mubr.f32.gmra.mrb[0].mxu0 %v1894
        %v2373 = vpop.f32.mrb[0].mxu0
        %v2374 = vadd.f32 0.0, %v2373
        %v2375 = vpop.f32.mrb[0].mxu0
        %2376 = vmatprep.mubr.f32.mxu0 %v1911
        %2377 = vmatmul.mubr.f32.gmra.mrb[0].mxu0 %v1910
        %v2378 = vpop.f32.mrb[0].mxu0
        %v2379 = vadd.f32 0.0, %v2378
        %v2380 = vpop.f32.mrb[0].mxu0
        %2381 = vmatprep.mubr.f32.mxu0 %v1927
        %2382 = vmatmul.mubr.f32.gmra.mrb[0].mxu0 %v1926
        %v2383 = vpop.f32.mrb[0].mxu0
        %v2384 = vadd.f32 0.0, %v2383
        %v2385 = vpop.f32.mrb[0].mxu0
        %2386 = vmatprep.mubr.f32.mxu0 %v1943
        %2387 = vmatmul.mubr.f32.gmra.mrb[0].mxu0 %v1942
        %v2388 = vpop.f32.mrb[0].mxu0
        %v2389 = vadd.f32 0.0, %v2388
        %v2390 = vpop.f32.mrb[0].mxu0
        %2391 = vmatprep.mubr.f32.mxu0 %v1959
        %2392 = vmatmul.mubr.f32.gmra.mrb[0].mxu0 %v1958
        %v2393 = vpop.f32.mrb[0].mxu0
        %v2394 = vadd.f32 0.0, %v2393
        %v2395 = vpop.f32.mrb[0].mxu0
        %2396 = vmatprep.mubr.f32.mxu0 %v1975
        %2397 = vmatmul.mubr.f32.gmra.mrb[0].mxu0 %v1974
        %v2398 = vpop.f32.mrb[0].mxu0
        %v2399 = vadd.f32 0.0, %v2398
        %v2400 = vpop.f32.mrb[0].mxu0
        %2401 = vmatprep.mubr.f32.mxu0 %v1991
        %2402 = vmatmul.mubr.f32.gmra.mrb[0].mxu0 %v1990
        %v2403 = vpop.f32.mrb[0].mxu0
        %v2404 = vadd.f32 0.0, %v2403
        %v2405 = vpop.f32.mrb[0].mxu0
        %2406 = vdwg.mxu0
        %2407 = vmatprep.subr.mxu0 0.0
        %2408 = vmatpush1.msra.mxu0 %v2038
        %2409 = vmatprep.subr.mxu0 0.0
        %2410 = vmatpush1.msra.mxu0 %v2039
        %2411 = vmatprep.subr.mxu0 0.0
        %2412 = vmatpush1.msra.mxu0 %v2040
        %2413 = vmatprep.subr.mxu0 0.0
        %2414 = vmatpush1.msra.mxu0 %v2041
        %2415 = vmatprep.subr.mxu0 0.0
        %2416 = vmatpush1.msra.mxu0 %v2042
        %2417 = vmatprep.subr.mxu0 0.0
        %2418 = vmatpush1.msra.mxu0 %v2043
        %2419 = vmatprep.subr.mxu0 0.0
        %2420 = vmatpush1.msra.mxu0 %v2044
        %2421 = vmatprep.subr.mxu0 0.0
        %2422 = vmatpush1.msra.mxu0 %v2045
        %2423 = vmatprep.subr.mxu0 0.0
        %2424 = vmatpush1.msra.mxu0 %v2046
        %2425 = vmatprep.subr.mxu0 0.0
        %2426 = vmatpush1.msra.mxu0 %v2047
        %2427 = vmatprep.subr.mxu0 0.0
        %2428 = vmatpush1.msra.mxu0 %v2048
        %2429 = vmatprep.subr.mxu0 0.0
        %2430 = vmatpush1.msra.mxu0 %v2049
        %2431 = vmatprep.subr.mxu0 0.0
        %2432 = vmatpush1.msra.mxu0 %v2050
        %2433 = vmatprep.subr.mxu0 0.0
        %2434 = vmatpush1.msra.mxu0 %v2051
        %2435 = vmatprep.subr.mxu0 0.0
        %2436 = vmatpush1.msra.mxu0 %v2052
        %2437 = vmatprep.subr.mxu0 0.0
        %2438 = vmatpush1.msra.mxu0 %v2053
        %2439 = vmatprep.subr.mxu0 0.0
        %2440 = vmatpush1.msra.mxu0 %v2054
        %2441 = vmatprep.subr.mxu0 0.0
        %2442 = vmatpush1.msra.mxu0 %v2055
        %2443 = vmatprep.subr.mxu0 0.0
        %2444 = vmatpush1.msra.mxu0 %v2056
        %2445 = vmatprep.subr.mxu0 0.0
        %2446 = vmatpush1.msra.mxu0 %v2057
        %2447 = vmatprep.subr.mxu0 0.0
        %2448 = vmatpush1.msra.mxu0 %v2058
        %2449 = vmatprep.subr.mxu0 0.0
        %2450 = vmatpush1.msra.mxu0 %v2059
        %2451 = vmatprep.subr.mxu0 0.0
        %2452 = vmatpush1.msra.mxu0 %v2060
        %2453 = vmatprep.subr.mxu0 0.0
        %2454 = vmatpush1.msra.mxu0 %v2061
        %2455 = vmatprep.subr.mxu0 0.0
        %2456 = vmatpush1.msra.mxu0 %v2062
        %2457 = vmatprep.subr.mxu0 0.0
        %2458 = vmatpush1.msra.mxu0 %v2063
        %2459 = vmatprep.subr.mxu0 0.0
        %2460 = vmatpush1.msra.mxu0 %v2064
        %2461 = vmatprep.subr.mxu0 0.0
        %2462 = vmatpush1.msra.mxu0 %v2065
        %2463 = vmatprep.subr.mxu0 0.0
        %2464 = vmatpush1.msra.mxu0 %v2066
        %2465 = vmatprep.subr.mxu0 0.0
        %2466 = vmatpush1.msra.mxu0 %v2067
        %2467 = vmatprep.subr.mxu0 0.0
        %2468 = vmatpush1.msra.mxu0 %v2068
        %2469 = vmatprep.subr.mxu0 0.0
        %2470 = vmatpush1.msra.mxu0 %v2069
        %2471 = vmatprep.mubr.f32.mxu0 %v1753
        %2472 = vmatmul.mubr.f32.gmra.mrb[0].mxu0 %v1752
        %v2473 = vpop.f32.mrb[0].mxu0
        %v2474 = vadd.f32 %v2329, %v2473
        %v2475 = vpop.f32.mrb[0].mxu0
        %2476 = vmatprep.mubr.f32.mxu0 %v1769
        %2477 = vmatmul.mubr.f32.gmra.mrb[0].mxu0 %v1768
        %v2478 = vpop.f32.mrb[0].mxu0
        %v2479 = vadd.f32 %v2334, %v2478
        %v2480 = vpop.f32.mrb[0].mxu0
        %2481 = vmatprep.mubr.f32.mxu0 %v1785
        %2482 = vmatmul.mubr.f32.gmra.mrb[0].mxu0 %v1784
        %v2483 = vpop.f32.mrb[0].mxu0
        %v2484 = vadd.f32 %v2339, %v2483
        %v2485 = vpop.f32.mrb[0].mxu0
        %2486 = vmatprep.mubr.f32.mxu0 %v1801
        %2487 = vmatmul.mubr.f32.gmra.mrb[0].mxu0 %v1800
        %v2488 = vpop.f32.mrb[0].mxu0
        %v2489 = vadd.f32 %v2344, %v2488
        %v2490 = vpop.f32.mrb[0].mxu0
        %2491 = vmatprep.mubr.f32.mxu0 %v1817
        %2492 = vmatmul.mubr.f32.gmra.mrb[0].mxu0 %v1816
        %v2493 = vpop.f32.mrb[0].mxu0
        %v2494 = vadd.f32 %v2349, %v2493
        %v2495 = vpop.f32.mrb[0].mxu0
        %2496 = vmatprep.mubr.f32.mxu0 %v1833
        %2497 = vmatmul.mubr.f32.gmra.mrb[0].mxu0 %v1832
        %v2498 = vpop.f32.mrb[0].mxu0
        %v2499 = vadd.f32 %v2354, %v2498
        %v2500 = vpop.f32.mrb[0].mxu0
        %2501 = vmatprep.mubr.f32.mxu0 %v1849
        %2502 = vmatmul.mubr.f32.gmra.mrb[0].mxu0 %v1848
        %v2503 = vpop.f32.mrb[0].mxu0
        %v2504 = vadd.f32 %v2359, %v2503
        %v2505 = vpop.f32.mrb[0].mxu0
        %2506 = vmatprep.mubr.f32.mxu0 %v1865
        %2507 = vmatmul.mubr.f32.gmra.mrb[0].mxu0 %v1864
        %v2508 = vpop.f32.mrb[0].mxu0
        %v2509 = vadd.f32 %v2364, %v2508
        %v2510 = vpop.f32.mrb[0].mxu0
        %2511 = vmatprep.mubr.f32.mxu0 %v1881
        %2512 = vmatmul.mubr.f32.gmra.mrb[0].mxu0 %v1880
        %v2513 = vpop.f32.mrb[0].mxu0
        %v2514 = vadd.f32 %v2369, %v2513
        %v2515 = vpop.f32.mrb[0].mxu0
        %2516 = vmatprep.mubr.f32.mxu0 %v1897
        %2517 = vmatmul.mubr.f32.gmra.mrb[0].mxu0 %v1896
        %v2518 = vpop.f32.mrb[0].mxu0
        %v2519 = vadd.f32 %v2374, %v2518
        %v2520 = vpop.f32.mrb[0].mxu0
        %2521 = vmatprep.mubr.f32.mxu0 %v1913
        %2522 = vmatmul.mubr.f32.gmra.mrb[0].mxu0 %v1912
        %v2523 = vpop.f32.mrb[0].mxu0
        %v2524 = vadd.f32 %v2379, %v2523
        %v2525 = vpop.f32.mrb[0].mxu0
        %2526 = vmatprep.mubr.f32.mxu0 %v1929
        %2527 = vmatmul.mubr.f32.gmra.mrb[0].mxu0 %v1928
        %v2528 = vpop.f32.mrb[0].mxu0
        %v2529 = vadd.f32 %v2384, %v2528
        %v2530 = vpop.f32.mrb[0].mxu0
        %2531 = vmatprep.mubr.f32.mxu0 %v1945
        %2532 = vmatmul.mubr.f32.gmra.mrb[0].mxu0 %v1944
        %v2533 = vpop.f32.mrb[0].mxu0
        %v2534 = vadd.f32 %v2389, %v2533
        %v2535 = vpop.f32.mrb[0].mxu0
        %2536 = vmatprep.mubr.f32.mxu0 %v1961
        %2537 = vmatmul.mubr.f32.gmra.mrb[0].mxu0 %v1960
        %v2538 = vpop.f32.mrb[0].mxu0
        %v2539 = vadd.f32 %v2394, %v2538
        %v2540 = vpop.f32.mrb[0].mxu0
        %2541 = vmatprep.mubr.f32.mxu0 %v1977
        %2542 = vmatmul.mubr.f32.gmra.mrb[0].mxu0 %v1976
        %v2543 = vpop.f32.mrb[0].mxu0
        %v2544 = vadd.f32 %v2399, %v2543
        %v2545 = vpop.f32.mrb[0].mxu0
        %2546 = vmatprep.mubr.f32.mxu0 %v1993
        %2547 = vmatmul.mubr.f32.gmra.mrb[0].mxu0 %v1992
        %v2548 = vpop.f32.mrb[0].mxu0
        %v2549 = vadd.f32 %v2404, %v2548
        %v2550 = vpop.f32.mrb[0].mxu0
        %2551 = vdwg.mxu0
        %2552 = vmatprep.subr.mxu0 0.0
        %2553 = vmatpush1.msra.mxu0 %v2070
        %2554 = vmatprep.subr.mxu0 0.0
        %2555 = vmatpush1.msra.mxu0 %v2071
        %2556 = vmatprep.subr.mxu0 0.0
        %2557 = vmatpush1.msra.mxu0 %v2072
        %2558 = vmatprep.subr.mxu0 0.0
        %2559 = vmatpush1.msra.mxu0 %v2073
        %2560 = vmatprep.subr.mxu0 0.0
        %2561 = vmatpush1.msra.mxu0 %v2074
        %2562 = vmatprep.subr.mxu0 0.0
        %2563 = vmatpush1.msra.mxu0 %v2075
        %2564 = vmatprep.subr.mxu0 0.0
        %2565 = vmatpush1.msra.mxu0 %v2076
        %2566 = vmatprep.subr.mxu0 0.0
        %2567 = vmatpush1.msra.mxu0 %v2077
        %2568 = vmatprep.subr.mxu0 0.0
        %2569 = vmatpush1.msra.mxu0 %v2078
        %2570 = vmatprep.subr.mxu0 0.0
        %2571 = vmatpush1.msra.mxu0 %v2079
        %2572 = vmatprep.subr.mxu0 0.0
        %2573 = vmatpush1.msra.mxu0 %v2080
        %2574 = vmatprep.subr.mxu0 0.0
        %2575 = vmatpush1.msra.mxu0 %v2081
        %2576 = vmatprep.subr.mxu0 0.0
        %2577 = vmatpush1.msra.mxu0 %v2082
        %2578 = vmatprep.subr.mxu0 0.0
        %2579 = vmatpush1.msra.mxu0 %v2083
        %2580 = vmatprep.subr.mxu0 0.0
        %2581 = vmatpush1.msra.mxu0 %v2084
        %2582 = vmatprep.subr.mxu0 0.0
        %2583 = vmatpush1.msra.mxu0 %v2085
        %2584 = vmatprep.subr.mxu0 0.0
        %2585 = vmatpush1.msra.mxu0 %v2086
        %2586 = vmatprep.subr.mxu0 0.0
        %2587 = vmatpush1.msra.mxu0 %v2087
        %2588 = vmatprep.subr.mxu0 0.0
        %2589 = vmatpush1.msra.mxu0 %v2088
        %2590 = vmatprep.subr.mxu0 0.0
        %2591 = vmatpush1.msra.mxu0 %v2089
        %2592 = vmatprep.subr.mxu0 0.0
        %2593 = vmatpush1.msra.mxu0 %v2090
        %2594 = vmatprep.subr.mxu0 0.0
        %2595 = vmatpush1.msra.mxu0 %v2091
        %2596 = vmatprep.subr.mxu0 0.0
        %2597 = vmatpush1.msra.mxu0 %v2092
        %2598 = vmatprep.subr.mxu0 0.0
        %2599 = vmatpush1.msra.mxu0 %v2093
        %2600 = vmatprep.subr.mxu0 0.0
        %2601 = vmatpush1.msra.mxu0 %v2094
        %2602 = vmatprep.subr.mxu0 0.0
        %2603 = vmatpush1.msra.mxu0 %v2095
        %2604 = vmatprep.subr.mxu0 0.0
        %2605 = vmatpush1.msra.mxu0 %v2096
        %2606 = vmatprep.subr.mxu0 0.0
        %2607 = vmatpush1.msra.mxu0 %v2097
        %2608 = vmatprep.subr.mxu0 0.0
        %2609 = vmatpush1.msra.mxu0 %v2098
        %2610 = vmatprep.subr.mxu0 0.0
        %2611 = vmatpush1.msra.mxu0 %v2099
        %2612 = vmatprep.subr.mxu0 0.0
        %2613 = vmatpush1.msra.mxu0 %v2100
        %2614 = vmatprep.subr.mxu0 0.0
        %2615 = vmatpush1.msra.mxu0 %v2101
        %2616 = vmatprep.mubr.f32.mxu0 %v1755
        %2617 = vmatmul.mubr.f32.gmra.mrb[0].mxu0 %v1754
        %v2618 = vpop.f32.mrb[0].mxu0
        %v2619 = vadd.f32 %v2474, %v2618
        %v2620 = vpop.f32.mrb[0].mxu0
        %2621 = vmatprep.mubr.f32.mxu0 %v1771
        %2622 = vmatmul.mubr.f32.gmra.mrb[0].mxu0 %v1770
        %v2623 = vpop.f32.mrb[0].mxu0
        %v2624 = vadd.f32 %v2479, %v2623
        %v2625 = vpop.f32.mrb[0].mxu0
        %2626 = vmatprep.mubr.f32.mxu0 %v1787
        %2627 = vmatmul.mubr.f32.gmra.mrb[0].mxu0 %v1786
        %v2628 = vpop.f32.mrb[0].mxu0
        %v2629 = vadd.f32 %v2484, %v2628
        %v2630 = vpop.f32.mrb[0].mxu0
        %2631 = vmatprep.mubr.f32.mxu0 %v1803
        %2632 = vmatmul.mubr.f32.gmra.mrb[0].mxu0 %v1802
        %v2633 = vpop.f32.mrb[0].mxu0
        %v2634 = vadd.f32 %v2489, %v2633
        %v2635 = vpop.f32.mrb[0].mxu0
        %2636 = vmatprep.mubr.f32.mxu0 %v1819
        %2637 = vmatmul.mubr.f32.gmra.mrb[0].mxu0 %v1818
        %v2638 = vpop.f32.mrb[0].mxu0
        %v2639 = vadd.f32 %v2494, %v2638
        %v2640 = vpop.f32.mrb[0].mxu0
        %2641 = vmatprep.mubr.f32.mxu0 %v1835
        %2642 = vmatmul.mubr.f32.gmra.mrb[0].mxu0 %v1834
        %v2643 = vpop.f32.mrb[0].mxu0
        %v2644 = vadd.f32 %v2499, %v2643
        %v2645 = vpop.f32.mrb[0].mxu0
        %2646 = vmatprep.mubr.f32.mxu0 %v1851
        %2647 = vmatmul.mubr.f32.gmra.mrb[0].mxu0 %v1850
        %v2648 = vpop.f32.mrb[0].mxu0
        %v2649 = vadd.f32 %v2504, %v2648
        %v2650 = vpop.f32.mrb[0].mxu0
        %2651 = vmatprep.mubr.f32.mxu0 %v1867
        %2652 = vmatmul.mubr.f32.gmra.mrb[0].mxu0 %v1866
        %v2653 = vpop.f32.mrb[0].mxu0
        %v2654 = vadd.f32 %v2509, %v2653
        %v2655 = vpop.f32.mrb[0].mxu0
        %2656 = vmatprep.mubr.f32.mxu0 %v1883
        %2657 = vmatmul.mubr.f32.gmra.mrb[0].mxu0 %v1882
        %v2658 = vpop.f32.mrb[0].mxu0
        %v2659 = vadd.f32 %v2514, %v2658
        %v2660 = vpop.f32.mrb[0].mxu0
        %2661 = vmatprep.mubr.f32.mxu0 %v1899
        %2662 = vmatmul.mubr.f32.gmra.mrb[0].mxu0 %v1898
        %v2663 = vpop.f32.mrb[0].mxu0
        %v2664 = vadd.f32 %v2519, %v2663
        %v2665 = vpop.f32.mrb[0].mxu0
        %2666 = vmatprep.mubr.f32.mxu0 %v1915
        %2667 = vmatmul.mubr.f32.gmra.mrb[0].mxu0 %v1914
        %v2668 = vpop.f32.mrb[0].mxu0
        %v2669 = vadd.f32 %v2524, %v2668
        %v2670 = vpop.f32.mrb[0].mxu0
        %2671 = vmatprep.mubr.f32.mxu0 %v1931
        %2672 = vmatmul.mubr.f32.gmra.mrb[0].mxu0 %v1930
        %v2673 = vpop.f32.mrb[0].mxu0
        %v2674 = vadd.f32 %v2529, %v2673
        %v2675 = vpop.f32.mrb[0].mxu0
        %2676 = vmatprep.mubr.f32.mxu0 %v1947
        %2677 = vmatmul.mubr.f32.gmra.mrb[0].mxu0 %v1946
        %v2678 = vpop.f32.mrb[0].mxu0
        %v2679 = vadd.f32 %v2534, %v2678
        %v2680 = vpop.f32.mrb[0].mxu0
        %2681 = vmatprep.mubr.f32.mxu0 %v1963
        %2682 = vmatmul.mubr.f32.gmra.mrb[0].mxu0 %v1962
        %v2683 = vpop.f32.mrb[0].mxu0
        %v2684 = vadd.f32 %v2539, %v2683
        %v2685 = vpop.f32.mrb[0].mxu0
        %2686 = vmatprep.mubr.f32.mxu0 %v1979
        %2687 = vmatmul.mubr.f32.gmra.mrb[0].mxu0 %v1978
        %v2688 = vpop.f32.mrb[0].mxu0
        %v2689 = vadd.f32 %v2544, %v2688
        %v2690 = vpop.f32.mrb[0].mxu0
        %2691 = vmatprep.mubr.f32.mxu0 %v1995
        %2692 = vmatmul.mubr.f32.gmra.mrb[0].mxu0 %v1994
        %v2693 = vpop.f32.mrb[0].mxu0
        %v2694 = vadd.f32 %v2549, %v2693
        %v2695 = vpop.f32.mrb[0].mxu0
        %2696 = vdwg.mxu0
        %2697 = vmatprep.subr.mxu0 0.0
        %2698 = vmatpush1.msra.mxu0 %v2102
        %2699 = vmatprep.subr.mxu0 0.0
        %2700 = vmatpush1.msra.mxu0 %v2103
        %2701 = vmatprep.subr.mxu0 0.0
        %2702 = vmatpush1.msra.mxu0 %v2104
        %2703 = vmatprep.subr.mxu0 0.0
        %2704 = vmatpush1.msra.mxu0 %v2105
        %2705 = vmatprep.subr.mxu0 0.0
        %2706 = vmatpush1.msra.mxu0 %v2106
        %2707 = vmatprep.subr.mxu0 0.0
        %2708 = vmatpush1.msra.mxu0 %v2107
        %2709 = vmatprep.subr.mxu0 0.0
        %2710 = vmatpush1.msra.mxu0 %v2108
        %2711 = vmatprep.subr.mxu0 0.0
        %2712 = vmatpush1.msra.mxu0 %v2109
        %2713 = vmatprep.subr.mxu0 0.0
        %2714 = vmatpush1.msra.mxu0 %v2110
        %2715 = vmatprep.subr.mxu0 0.0
        %2716 = vmatpush1.msra.mxu0 %v2111
        %2717 = vmatprep.subr.mxu0 0.0
        %2718 = vmatpush1.msra.mxu0 %v2112
        %2719 = vmatprep.subr.mxu0 0.0
        %2720 = vmatpush1.msra.mxu0 %v2113
        %2721 = vmatprep.subr.mxu0 0.0
        %2722 = vmatpush1.msra.mxu0 %v2114
        %2723 = vmatprep.subr.mxu0 0.0
        %2724 = vmatpush1.msra.mxu0 %v2115
        %2725 = vmatprep.subr.mxu0 0.0
        %2726 = vmatpush1.msra.mxu0 %v2116
        %2727 = vmatprep.subr.mxu0 0.0
        %2728 = vmatpush1.msra.mxu0 %v2117
        %2729 = vmatprep.subr.mxu0 0.0
        %2730 = vmatpush1.msra.mxu0 %v2118
        %2731 = vmatprep.subr.mxu0 0.0
        %2732 = vmatpush1.msra.mxu0 %v2119
        %2733 = vmatprep.subr.mxu0 0.0
        %2734 = vmatpush1.msra.mxu0 %v2120
        %2735 = vmatprep.subr.mxu0 0.0
        %2736 = vmatpush1.msra.mxu0 %v2121
        %2737 = vmatprep.subr.mxu0 0.0
        %2738 = vmatpush1.msra.mxu0 %v2122
        %2739 = vmatprep.subr.mxu0 0.0
        %2740 = vmatpush1.msra.mxu0 %v2123
        %2741 = vmatprep.subr.mxu0 0.0
        %2742 = vmatpush1.msra.mxu0 %v2124
        %2743 = vmatprep.subr.mxu0 0.0
        %2744 = vmatpush1.msra.mxu0 %v2125
        %2745 = vmatprep.subr.mxu0 0.0
        %2746 = vmatpush1.msra.mxu0 %v2126
        %2747 = vmatprep.subr.mxu0 0.0
        %2748 = vmatpush1.msra.mxu0 %v2127
        %2749 = vmatprep.subr.mxu0 0.0
        %2750 = vmatpush1.msra.mxu0 %v2128
        %2751 = vmatprep.subr.mxu0 0.0
        %2752 = vmatpush1.msra.mxu0 %v2129
        %2753 = vmatprep.subr.mxu0 0.0
        %2754 = vmatpush1.msra.mxu0 %v2130
        %2755 = vmatprep.subr.mxu0 0.0
        %2756 = vmatpush1.msra.mxu0 %v2131
        %2757 = vmatprep.subr.mxu0 0.0
        %2758 = vmatpush1.msra.mxu0 %v2132
        %2759 = vmatprep.subr.mxu0 0.0
        %2760 = vmatpush1.msra.mxu0 %v2133
        %2761 = vmatprep.mubr.f32.mxu0 %v1757
        %2762 = vmatmul.mubr.f32.gmra.mrb[0].mxu0 %v1756
        %v2763 = vpop.f32.mrb[0].mxu0
        %v2764 = vadd.f32 %v2619, %v2763
        %v2765 = vpop.f32.mrb[0].mxu0
        %2766 = vmatprep.mubr.f32.mxu0 %v1773
        %2767 = vmatmul.mubr.f32.gmra.mrb[0].mxu0 %v1772
        %v2768 = vpop.f32.mrb[0].mxu0
        %v2769 = vadd.f32 %v2624, %v2768
        %v2770 = vpop.f32.mrb[0].mxu0
        %2771 = vmatprep.mubr.f32.mxu0 %v1789
        %2772 = vmatmul.mubr.f32.gmra.mrb[0].mxu0 %v1788
        %v2773 = vpop.f32.mrb[0].mxu0
        %v2774 = vadd.f32 %v2629, %v2773
        %v2775 = vpop.f32.mrb[0].mxu0
        %2776 = vmatprep.mubr.f32.mxu0 %v1805
        %2777 = vmatmul.mubr.f32.gmra.mrb[0].mxu0 %v1804
        %v2778 = vpop.f32.mrb[0].mxu0
        %v2779 = vadd.f32 %v2634, %v2778
        %v2780 = vpop.f32.mrb[0].mxu0
        %2781 = vmatprep.mubr.f32.mxu0 %v1821
        %2782 = vmatmul.mubr.f32.gmra.mrb[0].mxu0 %v1820
        %v2783 = vpop.f32.mrb[0].mxu0
        %v2784 = vadd.f32 %v2639, %v2783
        %v2785 = vpop.f32.mrb[0].mxu0
        %2786 = vmatprep.mubr.f32.mxu0 %v1837
        %2787 = vmatmul.mubr.f32.gmra.mrb[0].mxu0 %v1836
        %v2788 = vpop.f32.mrb[0].mxu0
        %v2789 = vadd.f32 %v2644, %v2788
        %v2790 = vpop.f32.mrb[0].mxu0
        %2791 = vmatprep.mubr.f32.mxu0 %v1853
        %2792 = vmatmul.mubr.f32.gmra.mrb[0].mxu0 %v1852
        %v2793 = vpop.f32.mrb[0].mxu0
        %v2794 = vadd.f32 %v2649, %v2793
        %v2795 = vpop.f32.mrb[0].mxu0
        %2796 = vmatprep.mubr.f32.mxu0 %v1869
        %2797 = vmatmul.mubr.f32.gmra.mrb[0].mxu0 %v1868
        %v2798 = vpop.f32.mrb[0].mxu0
        %v2799 = vadd.f32 %v2654, %v2798
        %v2800 = vpop.f32.mrb[0].mxu0
        %2801 = vmatprep.mubr.f32.mxu0 %v1885
        %2802 = vmatmul.mubr.f32.gmra.mrb[0].mxu0 %v1884
        %v2803 = vpop.f32.mrb[0].mxu0
        %v2804 = vadd.f32 %v2659, %v2803
        %v2805 = vpop.f32.mrb[0].mxu0
        %2806 = vmatprep.mubr.f32.mxu0 %v1901
        %2807 = vmatmul.mubr.f32.gmra.mrb[0].mxu0 %v1900
        %v2808 = vpop.f32.mrb[0].mxu0
        %v2809 = vadd.f32 %v2664, %v2808
        %v2810 = vpop.f32.mrb[0].mxu0
        %2811 = vmatprep.mubr.f32.mxu0 %v1917
        %2812 = vmatmul.mubr.f32.gmra.mrb[0].mxu0 %v1916
        %v2813 = vpop.f32.mrb[0].mxu0
        %v2814 = vadd.f32 %v2669, %v2813
        %v2815 = vpop.f32.mrb[0].mxu0
        %2816 = vmatprep.mubr.f32.mxu0 %v1933
        %2817 = vmatmul.mubr.f32.gmra.mrb[0].mxu0 %v1932
        %v2818 = vpop.f32.mrb[0].mxu0
        %v2819 = vadd.f32 %v2674, %v2818
        %v2820 = vpop.f32.mrb[0].mxu0
        %2821 = vmatprep.mubr.f32.mxu0 %v1949
        %2822 = vmatmul.mubr.f32.gmra.mrb[0].mxu0 %v1948
        %v2823 = vpop.f32.mrb[0].mxu0
        %v2824 = vadd.f32 %v2679, %v2823
        %v2825 = vpop.f32.mrb[0].mxu0
        %2826 = vmatprep.mubr.f32.mxu0 %v1965
        %2827 = vmatmul.mubr.f32.gmra.mrb[0].mxu0 %v1964
        %v2828 = vpop.f32.mrb[0].mxu0
        %v2829 = vadd.f32 %v2684, %v2828
        %v2830 = vpop.f32.mrb[0].mxu0
        %2831 = vmatprep.mubr.f32.mxu0 %v1981
        %2832 = vmatmul.mubr.f32.gmra.mrb[0].mxu0 %v1980
        %v2833 = vpop.f32.mrb[0].mxu0
        %v2834 = vadd.f32 %v2689, %v2833
        %v2835 = vpop.f32.mrb[0].mxu0
        %2836 = vmatprep.mubr.f32.mxu0 %v1997
        %2837 = vmatmul.mubr.f32.gmra.mrb[0].mxu0 %v1996
        %v2838 = vpop.f32.mrb[0].mxu0
        %v2839 = vadd.f32 %v2694, %v2838
        %v2840 = vpop.f32.mrb[0].mxu0
        %2841 = vdwg.mxu0
        %2842 = vmatprep.subr.mxu0 0.0
        %2843 = vmatpush1.msra.mxu0 %v2134
        %2844 = vmatprep.subr.mxu0 0.0
        %2845 = vmatpush1.msra.mxu0 %v2135
        %2846 = vmatprep.subr.mxu0 0.0
        %2847 = vmatpush1.msra.mxu0 %v2136
        %2848 = vmatprep.subr.mxu0 0.0
        %2849 = vmatpush1.msra.mxu0 %v2137
        %2850 = vmatprep.subr.mxu0 0.0
        %2851 = vmatpush1.msra.mxu0 %v2138
        %2852 = vmatprep.subr.mxu0 0.0
        %2853 = vmatpush1.msra.mxu0 %v2139
        %2854 = vmatprep.subr.mxu0 0.0
        %2855 = vmatpush1.msra.mxu0 %v2140
        %2856 = vmatprep.subr.mxu0 0.0
        %2857 = vmatpush1.msra.mxu0 %v2141
        %2858 = vmatprep.subr.mxu0 0.0
        %2859 = vmatpush1.msra.mxu0 %v2142
        %2860 = vmatprep.subr.mxu0 0.0
        %2861 = vmatpush1.msra.mxu0 %v2143
        %2862 = vmatprep.subr.mxu0 0.0
        %2863 = vmatpush1.msra.mxu0 %v2144
        %2864 = vmatprep.subr.mxu0 0.0
        %2865 = vmatpush1.msra.mxu0 %v2145
        %2866 = vmatprep.subr.mxu0 0.0
        %2867 = vmatpush1.msra.mxu0 %v2146
        %2868 = vmatprep.subr.mxu0 0.0
        %2869 = vmatpush1.msra.mxu0 %v2147
        %2870 = vmatprep.subr.mxu0 0.0
        %2871 = vmatpush1.msra.mxu0 %v2148
        %2872 = vmatprep.subr.mxu0 0.0
        %2873 = vmatpush1.msra.mxu0 %v2149
        %2874 = vmatprep.subr.mxu0 0.0
        %2875 = vmatpush1.msra.mxu0 %v2150
        %2876 = vmatprep.subr.mxu0 0.0
        %2877 = vmatpush1.msra.mxu0 %v2151
        %2878 = vmatprep.subr.mxu0 0.0
        %2879 = vmatpush1.msra.mxu0 %v2152
        %2880 = vmatprep.subr.mxu0 0.0
        %2881 = vmatpush1.msra.mxu0 %v2153
        %2882 = vmatprep.subr.mxu0 0.0
        %2883 = vmatpush1.msra.mxu0 %v2154
        %2884 = vmatprep.subr.mxu0 0.0
        %2885 = vmatpush1.msra.mxu0 %v2155
        %2886 = vmatprep.subr.mxu0 0.0
        %2887 = vmatpush1.msra.mxu0 %v2156
        %2888 = vmatprep.subr.mxu0 0.0
        %2889 = vmatpush1.msra.mxu0 %v2157
        %2890 = vmatprep.subr.mxu0 0.0
        %2891 = vmatpush1.msra.mxu0 %v2158
        %2892 = vmatprep.subr.mxu0 0.0
        %2893 = vmatpush1.msra.mxu0 %v2159
        %2894 = vmatprep.subr.mxu0 0.0
        %2895 = vmatpush1.msra.mxu0 %v2160
        %2896 = vmatprep.subr.mxu0 0.0
        %2897 = vmatpush1.msra.mxu0 %v2161
        %2898 = vmatprep.subr.mxu0 0.0
        %2899 = vmatpush1.msra.mxu0 %v2162
        %2900 = vmatprep.subr.mxu0 0.0
        %2901 = vmatpush1.msra.mxu0 %v2163
        %2902 = vmatprep.subr.mxu0 0.0
        %2903 = vmatpush1.msra.mxu0 %v2164
        %2904 = vmatprep.subr.mxu0 0.0
        %2905 = vmatpush1.msra.mxu0 %v2165
        %2906 = vmatprep.mubr.f32.mxu0 %v1759
        %2907 = vmatmul.mubr.f32.gmra.mrb[0].mxu0 %v1758
        %v2908 = vpop.f32.mrb[0].mxu0
        %v2909 = vadd.f32 %v2764, %v2908
        %v2910 = vpop.f32.mrb[0].mxu0
        %2911 = vmatprep.mubr.f32.mxu0 %v1775
        %2912 = vmatmul.mubr.f32.gmra.mrb[0].mxu0 %v1774
        %v2913 = vpop.f32.mrb[0].mxu0
        %v2914 = vadd.f32 %v2769, %v2913
        %v2915 = vpop.f32.mrb[0].mxu0
        %2916 = vmatprep.mubr.f32.mxu0 %v1791
        %2917 = vmatmul.mubr.f32.gmra.mrb[0].mxu0 %v1790
        %v2918 = vpop.f32.mrb[0].mxu0
        %v2919 = vadd.f32 %v2774, %v2918
        %v2920 = vpop.f32.mrb[0].mxu0
        %2921 = vmatprep.mubr.f32.mxu0 %v1807
        %2922 = vmatmul.mubr.f32.gmra.mrb[0].mxu0 %v1806
        %v2923 = vpop.f32.mrb[0].mxu0
        %v2924 = vadd.f32 %v2779, %v2923
        %v2925 = vpop.f32.mrb[0].mxu0
        %2926 = vmatprep.mubr.f32.mxu0 %v1823
        %2927 = vmatmul.mubr.f32.gmra.mrb[0].mxu0 %v1822
        %v2928 = vpop.f32.mrb[0].mxu0
        %v2929 = vadd.f32 %v2784, %v2928
        %v2930 = vpop.f32.mrb[0].mxu0
        %2931 = vmatprep.mubr.f32.mxu0 %v1839
        %2932 = vmatmul.mubr.f32.gmra.mrb[0].mxu0 %v1838
        %v2933 = vpop.f32.mrb[0].mxu0
        %v2934 = vadd.f32 %v2789, %v2933
        %v2935 = vpop.f32.mrb[0].mxu0
        %2936 = vmatprep.mubr.f32.mxu0 %v1855
        %2937 = vmatmul.mubr.f32.gmra.mrb[0].mxu0 %v1854
        %v2938 = vpop.f32.mrb[0].mxu0
        %v2939 = vadd.f32 %v2794, %v2938
        %v2940 = vpop.f32.mrb[0].mxu0
        %2941 = vmatprep.mubr.f32.mxu0 %v1871
        %2942 = vmatmul.mubr.f32.gmra.mrb[0].mxu0 %v1870
        %v2943 = vpop.f32.mrb[0].mxu0
        %v2944 = vadd.f32 %v2799, %v2943
        %v2945 = vpop.f32.mrb[0].mxu0
        %2946 = vmatprep.mubr.f32.mxu0 %v1887
        %2947 = vmatmul.mubr.f32.gmra.mrb[0].mxu0 %v1886
        %v2948 = vpop.f32.mrb[0].mxu0
        %v2949 = vadd.f32 %v2804, %v2948
        %v2950 = vpop.f32.mrb[0].mxu0
        %2951 = vmatprep.mubr.f32.mxu0 %v1903
        %2952 = vmatmul.mubr.f32.gmra.mrb[0].mxu0 %v1902
        %v2953 = vpop.f32.mrb[0].mxu0
        %v2954 = vadd.f32 %v2809, %v2953
        %v2955 = vpop.f32.mrb[0].mxu0
        %2956 = vmatprep.mubr.f32.mxu0 %v1919
        %2957 = vmatmul.mubr.f32.gmra.mrb[0].mxu0 %v1918
        %v2958 = vpop.f32.mrb[0].mxu0
        %v2959 = vadd.f32 %v2814, %v2958
        %v2960 = vpop.f32.mrb[0].mxu0
        %2961 = vmatprep.mubr.f32.mxu0 %v1935
        %2962 = vmatmul.mubr.f32.gmra.mrb[0].mxu0 %v1934
        %v2963 = vpop.f32.mrb[0].mxu0
        %v2964 = vadd.f32 %v2819, %v2963
        %v2965 = vpop.f32.mrb[0].mxu0
        %2966 = vmatprep.mubr.f32.mxu0 %v1951
        %2967 = vmatmul.mubr.f32.gmra.mrb[0].mxu0 %v1950
        %v2968 = vpop.f32.mrb[0].mxu0
        %v2969 = vadd.f32 %v2824, %v2968
        %v2970 = vpop.f32.mrb[0].mxu0
        %2971 = vmatprep.mubr.f32.mxu0 %v1967
        %2972 = vmatmul.mubr.f32.gmra.mrb[0].mxu0 %v1966
        %v2973 = vpop.f32.mrb[0].mxu0
        %v2974 = vadd.f32 %v2829, %v2973
        %v2975 = vpop.f32.mrb[0].mxu0
        %2976 = vmatprep.mubr.f32.mxu0 %v1983
        %2977 = vmatmul.mubr.f32.gmra.mrb[0].mxu0 %v1982
        %v2978 = vpop.f32.mrb[0].mxu0
        %v2979 = vadd.f32 %v2834, %v2978
        %v2980 = vpop.f32.mrb[0].mxu0
        %2981 = vmatprep.mubr.f32.mxu0 %v1999
        %2982 = vmatmul.mubr.f32.gmra.mrb[0].mxu0 %v1998
        %v2983 = vpop.f32.mrb[0].mxu0
        %v2984 = vadd.f32 %v2839, %v2983
        %v2985 = vpop.f32.mrb[0].mxu0
        %2986 = vdwg.mxu0
        %2987 = vmatprep.subr.mxu0 0.0
        %2988 = vmatpush1.msra.mxu0 %v2166
        %2989 = vmatprep.subr.mxu0 0.0
        %2990 = vmatpush1.msra.mxu0 %v2167
        %2991 = vmatprep.subr.mxu0 0.0
        %2992 = vmatpush1.msra.mxu0 %v2168
        %2993 = vmatprep.subr.mxu0 0.0
        %2994 = vmatpush1.msra.mxu0 %v2169
        %2995 = vmatprep.subr.mxu0 0.0
        %2996 = vmatpush1.msra.mxu0 %v2170
        %2997 = vmatprep.subr.mxu0 0.0
        %2998 = vmatpush1.msra.mxu0 %v2171
        %2999 = vmatprep.subr.mxu0 0.0
        %3000 = vmatpush1.msra.mxu0 %v2172
        %3001 = vmatprep.subr.mxu0 0.0
        %3002 = vmatpush1.msra.mxu0 %v2173
        %3003 = vmatprep.subr.mxu0 0.0
        %3004 = vmatpush1.msra.mxu0 %v2174
        %3005 = vmatprep.subr.mxu0 0.0
        %3006 = vmatpush1.msra.mxu0 %v2175
        %3007 = vmatprep.subr.mxu0 0.0
        %3008 = vmatpush1.msra.mxu0 %v2176
        %3009 = vmatprep.subr.mxu0 0.0
        %3010 = vmatpush1.msra.mxu0 %v2177
        %3011 = vmatprep.subr.mxu0 0.0
        %3012 = vmatpush1.msra.mxu0 %v2178
        %3013 = vmatprep.subr.mxu0 0.0
        %3014 = vmatpush1.msra.mxu0 %v2179
        %3015 = vmatprep.subr.mxu0 0.0
        %3016 = vmatpush1.msra.mxu0 %v2180
        %3017 = vmatprep.subr.mxu0 0.0
        %3018 = vmatpush1.msra.mxu0 %v2181
        %3019 = vmatprep.subr.mxu0 0.0
        %3020 = vmatpush1.msra.mxu0 %v2182
        %3021 = vmatprep.subr.mxu0 0.0
        %3022 = vmatpush1.msra.mxu0 %v2183
        %3023 = vmatprep.subr.mxu0 0.0
        %3024 = vmatpush1.msra.mxu0 %v2184
        %3025 = vmatprep.subr.mxu0 0.0
        %3026 = vmatpush1.msra.mxu0 %v2185
        %3027 = vmatprep.subr.mxu0 0.0
        %3028 = vmatpush1.msra.mxu0 %v2186
        %3029 = vmatprep.subr.mxu0 0.0
        %3030 = vmatpush1.msra.mxu0 %v2187
        %3031 = vmatprep.subr.mxu0 0.0
        %3032 = vmatpush1.msra.mxu0 %v2188
        %3033 = vmatprep.subr.mxu0 0.0
        %3034 = vmatpush1.msra.mxu0 %v2189
        %3035 = vmatprep.subr.mxu0 0.0
        %3036 = vmatpush1.msra.mxu0 %v2190
        %3037 = vmatprep.subr.mxu0 0.0
        %3038 = vmatpush1.msra.mxu0 %v2191
        %3039 = vmatprep.subr.mxu0 0.0
        %3040 = vmatpush1.msra.mxu0 %v2192
        %3041 = vmatprep.subr.mxu0 0.0
        %3042 = vmatpush1.msra.mxu0 %v2193
        %3043 = vmatprep.subr.mxu0 0.0
        %3044 = vmatpush1.msra.mxu0 %v2194
        %3045 = vmatprep.subr.mxu0 0.0
        %3046 = vmatpush1.msra.mxu0 %v2195
        %3047 = vmatprep.subr.mxu0 0.0
        %3048 = vmatpush1.msra.mxu0 %v2196
        %3049 = vmatprep.subr.mxu0 0.0
        %3050 = vmatpush1.msra.mxu0 %v2197
        %3051 = vmatprep.mubr.f32.mxu0 %v1761
        %3052 = vmatmul.mubr.f32.gmra.mrb[0].mxu0 %v1760
        %v3053 = vpop.f32.mrb[0].mxu0
        %v3054 = vadd.f32 %v2909, %v3053
        %v3055 = vpop.f32.mrb[0].mxu0
        %3056 = vmatprep.mubr.f32.mxu0 %v1777
        %3057 = vmatmul.mubr.f32.gmra.mrb[0].mxu0 %v1776
        %v3058 = vpop.f32.mrb[0].mxu0
        %v3059 = vadd.f32 %v2914, %v3058
        %v3060 = vpop.f32.mrb[0].mxu0
        %3061 = vmatprep.mubr.f32.mxu0 %v1793
        %3062 = vmatmul.mubr.f32.gmra.mrb[0].mxu0 %v1792
        %v3063 = vpop.f32.mrb[0].mxu0
        %v3064 = vadd.f32 %v2919, %v3063
        %v3065 = vpop.f32.mrb[0].mxu0
        %3066 = vmatprep.mubr.f32.mxu0 %v1809
        %3067 = vmatmul.mubr.f32.gmra.mrb[0].mxu0 %v1808
        %v3068 = vpop.f32.mrb[0].mxu0
        %v3069 = vadd.f32 %v2924, %v3068
        %v3070 = vpop.f32.mrb[0].mxu0
        %3071 = vmatprep.mubr.f32.mxu0 %v1825
        %3072 = vmatmul.mubr.f32.gmra.mrb[0].mxu0 %v1824
        %v3073 = vpop.f32.mrb[0].mxu0
        %v3074 = vadd.f32 %v2929, %v3073
        %v3075 = vpop.f32.mrb[0].mxu0
        %3076 = vmatprep.mubr.f32.mxu0 %v1841
        %3077 = vmatmul.mubr.f32.gmra.mrb[0].mxu0 %v1840
        %v3078 = vpop.f32.mrb[0].mxu0
        %v3079 = vadd.f32 %v2934, %v3078
        %v3080 = vpop.f32.mrb[0].mxu0
        %3081 = vmatprep.mubr.f32.mxu0 %v1857
        %3082 = vmatmul.mubr.f32.gmra.mrb[0].mxu0 %v1856
        %v3083 = vpop.f32.mrb[0].mxu0
        %v3084 = vadd.f32 %v2939, %v3083
        %v3085 = vpop.f32.mrb[0].mxu0
        %3086 = vmatprep.mubr.f32.mxu0 %v1873
        %3087 = vmatmul.mubr.f32.gmra.mrb[0].mxu0 %v1872
        %v3088 = vpop.f32.mrb[0].mxu0
        %v3089 = vadd.f32 %v2944, %v3088
        %v3090 = vpop.f32.mrb[0].mxu0
        %3091 = vmatprep.mubr.f32.mxu0 %v1889
        %3092 = vmatmul.mubr.f32.gmra.mrb[0].mxu0 %v1888
        %v3093 = vpop.f32.mrb[0].mxu0
        %v3094 = vadd.f32 %v2949, %v3093
        %v3095 = vpop.f32.mrb[0].mxu0
        %3096 = vmatprep.mubr.f32.mxu0 %v1905
        %3097 = vmatmul.mubr.f32.gmra.mrb[0].mxu0 %v1904
        %v3098 = vpop.f32.mrb[0].mxu0
        %v3099 = vadd.f32 %v2954, %v3098
        %v3100 = vpop.f32.mrb[0].mxu0
        %3101 = vmatprep.mubr.f32.mxu0 %v1921
        %3102 = vmatmul.mubr.f32.gmra.mrb[0].mxu0 %v1920
        %v3103 = vpop.f32.mrb[0].mxu0
        %v3104 = vadd.f32 %v2959, %v3103
        %v3105 = vpop.f32.mrb[0].mxu0
        %3106 = vmatprep.mubr.f32.mxu0 %v1937
        %3107 = vmatmul.mubr.f32.gmra.mrb[0].mxu0 %v1936
        %v3108 = vpop.f32.mrb[0].mxu0
        %v3109 = vadd.f32 %v2964, %v3108
        %v3110 = vpop.f32.mrb[0].mxu0
        %3111 = vmatprep.mubr.f32.mxu0 %v1953
        %3112 = vmatmul.mubr.f32.gmra.mrb[0].mxu0 %v1952
        %v3113 = vpop.f32.mrb[0].mxu0
        %v3114 = vadd.f32 %v2969, %v3113
        %v3115 = vpop.f32.mrb[0].mxu0
        %3116 = vmatprep.mubr.f32.mxu0 %v1969
        %3117 = vmatmul.mubr.f32.gmra.mrb[0].mxu0 %v1968
        %v3118 = vpop.f32.mrb[0].mxu0
        %v3119 = vadd.f32 %v2974, %v3118
        %v3120 = vpop.f32.mrb[0].mxu0
        %3121 = vmatprep.mubr.f32.mxu0 %v1985
        %3122 = vmatmul.mubr.f32.gmra.mrb[0].mxu0 %v1984
        %v3123 = vpop.f32.mrb[0].mxu0
        %v3124 = vadd.f32 %v2979, %v3123
        %v3125 = vpop.f32.mrb[0].mxu0
        %3126 = vmatprep.mubr.f32.mxu0 %v2001
        %3127 = vmatmul.mubr.f32.gmra.mrb[0].mxu0 %v2000
        %v3128 = vpop.f32.mrb[0].mxu0
        %v3129 = vadd.f32 %v2984, %v3128
        %v3130 = vpop.f32.mrb[0].mxu0
        %3131 = vdwg.mxu0
        %3132 = vmatprep.subr.mxu0 0.0
        %3133 = vmatpush1.msra.mxu0 %v2198
        %3134 = vmatprep.subr.mxu0 0.0
        %3135 = vmatpush1.msra.mxu0 %v2199
        %3136 = vmatprep.subr.mxu0 0.0
        %3137 = vmatpush1.msra.mxu0 %v2200
        %3138 = vmatprep.subr.mxu0 0.0
        %3139 = vmatpush1.msra.mxu0 %v2201
        %3140 = vmatprep.subr.mxu0 0.0
        %3141 = vmatpush1.msra.mxu0 %v2202
        %3142 = vmatprep.subr.mxu0 0.0
        %3143 = vmatpush1.msra.mxu0 %v2203
        %3144 = vmatprep.subr.mxu0 0.0
        %3145 = vmatpush1.msra.mxu0 %v2204
        %3146 = vmatprep.subr.mxu0 0.0
        %3147 = vmatpush1.msra.mxu0 %v2205
        %3148 = vmatprep.subr.mxu0 0.0
        %3149 = vmatpush1.msra.mxu0 %v2206
        %3150 = vmatprep.subr.mxu0 0.0
        %3151 = vmatpush1.msra.mxu0 %v2207
        %3152 = vmatprep.subr.mxu0 0.0
        %3153 = vmatpush1.msra.mxu0 %v2208
        %3154 = vmatprep.subr.mxu0 0.0
        %3155 = vmatpush1.msra.mxu0 %v2209
        %3156 = vmatprep.subr.mxu0 0.0
        %3157 = vmatpush1.msra.mxu0 %v2210
        %3158 = vmatprep.subr.mxu0 0.0
        %3159 = vmatpush1.msra.mxu0 %v2211
        %3160 = vmatprep.subr.mxu0 0.0
        %3161 = vmatpush1.msra.mxu0 %v2212
        %3162 = vmatprep.subr.mxu0 0.0
        %3163 = vmatpush1.msra.mxu0 %v2213
        %3164 = vmatprep.subr.mxu0 0.0
        %3165 = vmatpush1.msra.mxu0 %v2214
        %3166 = vmatprep.subr.mxu0 0.0
        %3167 = vmatpush1.msra.mxu0 %v2215
        %3168 = vmatprep.subr.mxu0 0.0
        %3169 = vmatpush1.msra.mxu0 %v2216
        %3170 = vmatprep.subr.mxu0 0.0
        %3171 = vmatpush1.msra.mxu0 %v2217
        %3172 = vmatprep.subr.mxu0 0.0
        %3173 = vmatpush1.msra.mxu0 %v2218
        %3174 = vmatprep.subr.mxu0 0.0
        %3175 = vmatpush1.msra.mxu0 %v2219
        %3176 = vmatprep.subr.mxu0 0.0
        %3177 = vmatpush1.msra.mxu0 %v2220
        %3178 = vmatprep.subr.mxu0 0.0
        %3179 = vmatpush1.msra.mxu0 %v2221
        %3180 = vmatprep.subr.mxu0 0.0
        %3181 = vmatpush1.msra.mxu0 %v2222
        %3182 = vmatprep.subr.mxu0 0.0
        %3183 = vmatpush1.msra.mxu0 %v2223
        %3184 = vmatprep.subr.mxu0 0.0
        %3185 = vmatpush1.msra.mxu0 %v2224
        %3186 = vmatprep.subr.mxu0 0.0
        %3187 = vmatpush1.msra.mxu0 %v2225
        %3188 = vmatprep.subr.mxu0 0.0
        %3189 = vmatpush1.msra.mxu0 %v2226
        %3190 = vmatprep.subr.mxu0 0.0
        %3191 = vmatpush1.msra.mxu0 %v2227
        %3192 = vmatprep.subr.mxu0 0.0
        %3193 = vmatpush1.msra.mxu0 %v2228
        %3194 = vmatprep.subr.mxu0 0.0
        %3195 = vmatpush1.msra.mxu0 %v2229
        %3196 = vmatprep.mubr.f32.mxu0 %v1763
        %3197 = vmatmul.mubr.f32.gmra.mrb[0].mxu0 %v1762
        %v3198 = vpop.f32.mrb[0].mxu0
        %v3199 = vadd.f32 %v3054, %v3198
        %v3200 = vpop.f32.mrb[0].mxu0
        %3201 = vmatprep.mubr.f32.mxu0 %v1779
        %3202 = vmatmul.mubr.f32.gmra.mrb[0].mxu0 %v1778
        %v3203 = vpop.f32.mrb[0].mxu0
        %v3204 = vadd.f32 %v3059, %v3203
        %v3205 = vpop.f32.mrb[0].mxu0
        %3206 = vmatprep.mubr.f32.mxu0 %v1795
        %3207 = vmatmul.mubr.f32.gmra.mrb[0].mxu0 %v1794
        %v3208 = vpop.f32.mrb[0].mxu0
        %v3209 = vadd.f32 %v3064, %v3208
        %v3210 = vpop.f32.mrb[0].mxu0
        %3211 = vmatprep.mubr.f32.mxu0 %v1811
        %3212 = vmatmul.mubr.f32.gmra.mrb[0].mxu0 %v1810
        %v3213 = vpop.f32.mrb[0].mxu0
        %v3214 = vadd.f32 %v3069, %v3213
        %v3215 = vpop.f32.mrb[0].mxu0
        %3216 = vmatprep.mubr.f32.mxu0 %v1827
        %3217 = vmatmul.mubr.f32.gmra.mrb[0].mxu0 %v1826
        %v3218 = vpop.f32.mrb[0].mxu0
        %v3219 = vadd.f32 %v3074, %v3218
        %v3220 = vpop.f32.mrb[0].mxu0
        %3221 = vmatprep.mubr.f32.mxu0 %v1843
        %3222 = vmatmul.mubr.f32.gmra.mrb[0].mxu0 %v1842
        %v3223 = vpop.f32.mrb[0].mxu0
        %v3224 = vadd.f32 %v3079, %v3223
        %v3225 = vpop.f32.mrb[0].mxu0
        %3226 = vmatprep.mubr.f32.mxu0 %v1859
        %3227 = vmatmul.mubr.f32.gmra.mrb[0].mxu0 %v1858
        %v3228 = vpop.f32.mrb[0].mxu0
        %v3229 = vadd.f32 %v3084, %v3228
        %v3230 = vpop.f32.mrb[0].mxu0
        %3231 = vmatprep.mubr.f32.mxu0 %v1875
        %3232 = vmatmul.mubr.f32.gmra.mrb[0].mxu0 %v1874
        %v3233 = vpop.f32.mrb[0].mxu0
        %v3234 = vadd.f32 %v3089, %v3233
        %v3235 = vpop.f32.mrb[0].mxu0
        %3236 = vmatprep.mubr.f32.mxu0 %v1891
        %3237 = vmatmul.mubr.f32.gmra.mrb[0].mxu0 %v1890
        %v3238 = vpop.f32.mrb[0].mxu0
        %v3239 = vadd.f32 %v3094, %v3238
        %v3240 = vpop.f32.mrb[0].mxu0
        %3241 = vmatprep.mubr.f32.mxu0 %v1907
        %3242 = vmatmul.mubr.f32.gmra.mrb[0].mxu0 %v1906
        %v3243 = vpop.f32.mrb[0].mxu0
        %v3244 = vadd.f32 %v3099, %v3243
        %v3245 = vpop.f32.mrb[0].mxu0
        %3246 = vmatprep.mubr.f32.mxu0 %v1923
        %3247 = vmatmul.mubr.f32.gmra.mrb[0].mxu0 %v1922
        %v3248 = vpop.f32.mrb[0].mxu0
        %v3249 = vadd.f32 %v3104, %v3248
        %v3250 = vpop.f32.mrb[0].mxu0
        %3251 = vmatprep.mubr.f32.mxu0 %v1939
        %3252 = vmatmul.mubr.f32.gmra.mrb[0].mxu0 %v1938
        %v3253 = vpop.f32.mrb[0].mxu0
        %v3254 = vadd.f32 %v3109, %v3253
        %v3255 = vpop.f32.mrb[0].mxu0
        %3256 = vmatprep.mubr.f32.mxu0 %v1955
        %3257 = vmatmul.mubr.f32.gmra.mrb[0].mxu0 %v1954
        %v3258 = vpop.f32.mrb[0].mxu0
        %v3259 = vadd.f32 %v3114, %v3258
        %v3260 = vpop.f32.mrb[0].mxu0
        %3261 = vmatprep.mubr.f32.mxu0 %v1971
        %3262 = vmatmul.mubr.f32.gmra.mrb[0].mxu0 %v1970
        %v3263 = vpop.f32.mrb[0].mxu0
        %v3264 = vadd.f32 %v3119, %v3263
        %v3265 = vpop.f32.mrb[0].mxu0
        %3266 = vmatprep.mubr.f32.mxu0 %v1987
        %3267 = vmatmul.mubr.f32.gmra.mrb[0].mxu0 %v1986
        %v3268 = vpop.f32.mrb[0].mxu0
        %v3269 = vadd.f32 %v3124, %v3268
        %v3270 = vpop.f32.mrb[0].mxu0
        %3271 = vmatprep.mubr.f32.mxu0 %v2003
        %3272 = vmatmul.mubr.f32.gmra.mrb[0].mxu0 %v2002
        %v3273 = vpop.f32.mrb[0].mxu0
        %v3274 = vadd.f32 %v3129, %v3273
        %v3275 = vpop.f32.mrb[0].mxu0
        %3276 = vdwg.mxu0
        %3277 = vmatprep.subr.mxu0 0.0
        %3278 = vmatpush1.msra.mxu0 %v2230
        %3279 = vmatprep.subr.mxu0 0.0
        %3280 = vmatpush1.msra.mxu0 %v2231
        %3281 = vmatprep.subr.mxu0 0.0
        %3282 = vmatpush1.msra.mxu0 %v2232
        %3283 = vmatprep.subr.mxu0 0.0
        %3284 = vmatpush1.msra.mxu0 %v2233
        %3285 = vmatprep.subr.mxu0 0.0
        %3286 = vmatpush1.msra.mxu0 %v2234
        %3287 = vmatprep.subr.mxu0 0.0
        %3288 = vmatpush1.msra.mxu0 %v2235
        %3289 = vmatprep.subr.mxu0 0.0
        %3290 = vmatpush1.msra.mxu0 %v2236
        %3291 = vmatprep.subr.mxu0 0.0
        %3292 = vmatpush1.msra.mxu0 %v2237
        %3293 = vmatprep.subr.mxu0 0.0
        %3294 = vmatpush1.msra.mxu0 %v2238
        %3295 = vmatprep.subr.mxu0 0.0
        %3296 = vmatpush1.msra.mxu0 %v2239
        %3297 = vmatprep.subr.mxu0 0.0
        %3298 = vmatpush1.msra.mxu0 %v2240
        %3299 = vmatprep.subr.mxu0 0.0
        %3300 = vmatpush1.msra.mxu0 %v2241
        %3301 = vmatprep.subr.mxu0 0.0
        %3302 = vmatpush1.msra.mxu0 %v2242
        %3303 = vmatprep.subr.mxu0 0.0
        %3304 = vmatpush1.msra.mxu0 %v2243
        %3305 = vmatprep.subr.mxu0 0.0
        %3306 = vmatpush1.msra.mxu0 %v2244
        %3307 = vmatprep.subr.mxu0 0.0
        %3308 = vmatpush1.msra.mxu0 %v2245
        %3309 = vmatprep.subr.mxu0 0.0
        %3310 = vmatpush1.msra.mxu0 %v2246
        %3311 = vmatprep.subr.mxu0 0.0
        %3312 = vmatpush1.msra.mxu0 %v2247
        %3313 = vmatprep.subr.mxu0 0.0
        %3314 = vmatpush1.msra.mxu0 %v2248
        %3315 = vmatprep.subr.mxu0 0.0
        %3316 = vmatpush1.msra.mxu0 %v2249
        %3317 = vmatprep.subr.mxu0 0.0
        %3318 = vmatpush1.msra.mxu0 %v2250
        %3319 = vmatprep.subr.mxu0 0.0
        %3320 = vmatpush1.msra.mxu0 %v2251
        %3321 = vmatprep.subr.mxu0 0.0
        %3322 = vmatpush1.msra.mxu0 %v2252
        %3323 = vmatprep.subr.mxu0 0.0
        %3324 = vmatpush1.msra.mxu0 %v2253
        %3325 = vmatprep.subr.mxu0 0.0
        %3326 = vmatpush1.msra.mxu0 %v2254
        %3327 = vmatprep.subr.mxu0 0.0
        %3328 = vmatpush1.msra.mxu0 %v2255
        %3329 = vmatprep.subr.mxu0 0.0
        %3330 = vmatpush1.msra.mxu0 %v2256
        %3331 = vmatprep.subr.mxu0 0.0
        %3332 = vmatpush1.msra.mxu0 %v2257
        %3333 = vmatprep.subr.mxu0 0.0
        %3334 = vmatpush1.msra.mxu0 %v2258
        %3335 = vmatprep.subr.mxu0 0.0
        %3336 = vmatpush1.msra.mxu0 %v2259
        %3337 = vmatprep.subr.mxu0 0.0
        %3338 = vmatpush1.msra.mxu0 %v2260
        %3339 = vmatprep.subr.mxu0 0.0
        %3340 = vmatpush1.msra.mxu0 %v2261
        %3341 = vmatprep.mubr.f32.mxu0 %v1765
        %3342 = vmatmul.mubr.f32.gmra.mrb[0].mxu0 %v1764
        %v3343 = vpop.f32.mrb[0].mxu0
        %v3344 = vadd.f32 %v3199, %v3343
        %v3345 = vpop.f32.mrb[0].mxu0
        %3346 = vmatprep.mubr.f32.mxu0 %v1781
        %3347 = vmatmul.mubr.f32.gmra.mrb[0].mxu0 %v1780
        %v3348 = vpop.f32.mrb[0].mxu0
        %v3349 = vadd.f32 %v3204, %v3348
        %v3350 = vpop.f32.mrb[0].mxu0
        %3351 = vmatprep.mubr.f32.mxu0 %v1797
        %3352 = vmatmul.mubr.f32.gmra.mrb[0].mxu0 %v1796
        %v3353 = vpop.f32.mrb[0].mxu0
        %v3354 = vadd.f32 %v3209, %v3353
        %v3355 = vpop.f32.mrb[0].mxu0
        %3356 = vmatprep.mubr.f32.mxu0 %v1813
        %3357 = vmatmul.mubr.f32.gmra.mrb[0].mxu0 %v1812
        %v3358 = vpop.f32.mrb[0].mxu0
        %v3359 = vadd.f32 %v3214, %v3358
        %v3360 = vpop.f32.mrb[0].mxu0
        %3361 = vmatprep.mubr.f32.mxu0 %v1829
        %3362 = vmatmul.mubr.f32.gmra.mrb[0].mxu0 %v1828
        %v3363 = vpop.f32.mrb[0].mxu0
        %v3364 = vadd.f32 %v3219, %v3363
        %v3365 = vpop.f32.mrb[0].mxu0
        %3366 = vmatprep.mubr.f32.mxu0 %v1845
        %3367 = vmatmul.mubr.f32.gmra.mrb[0].mxu0 %v1844
        %v3368 = vpop.f32.mrb[0].mxu0
        %v3369 = vadd.f32 %v3224, %v3368
        %v3370 = vpop.f32.mrb[0].mxu0
        %3371 = vmatprep.mubr.f32.mxu0 %v1861
        %3372 = vmatmul.mubr.f32.gmra.mrb[0].mxu0 %v1860
        %v3373 = vpop.f32.mrb[0].mxu0
        %v3374 = vadd.f32 %v3229, %v3373
        %v3375 = vpop.f32.mrb[0].mxu0
        %3376 = vmatprep.mubr.f32.mxu0 %v1877
        %3377 = vmatmul.mubr.f32.gmra.mrb[0].mxu0 %v1876
        %v3378 = vpop.f32.mrb[0].mxu0
        %v3379 = vadd.f32 %v3234, %v3378
        %v3380 = vpop.f32.mrb[0].mxu0
        %3381 = vmatprep.mubr.f32.mxu0 %v1893
        %3382 = vmatmul.mubr.f32.gmra.mrb[0].mxu0 %v1892
        %v3383 = vpop.f32.mrb[0].mxu0
        %v3384 = vadd.f32 %v3239, %v3383
        %v3385 = vpop.f32.mrb[0].mxu0
        %3386 = vmatprep.mubr.f32.mxu0 %v1909
        %3387 = vmatmul.mubr.f32.gmra.mrb[0].mxu0 %v1908
        %v3388 = vpop.f32.mrb[0].mxu0
        %v3389 = vadd.f32 %v3244, %v3388
        %v3390 = vpop.f32.mrb[0].mxu0
        %3391 = vmatprep.mubr.f32.mxu0 %v1925
        %3392 = vmatmul.mubr.f32.gmra.mrb[0].mxu0 %v1924
        %v3393 = vpop.f32.mrb[0].mxu0
        %v3394 = vadd.f32 %v3249, %v3393
        %v3395 = vpop.f32.mrb[0].mxu0
        %3396 = vmatprep.mubr.f32.mxu0 %v1941
        %3397 = vmatmul.mubr.f32.gmra.mrb[0].mxu0 %v1940
        %v3398 = vpop.f32.mrb[0].mxu0
        %v3399 = vadd.f32 %v3254, %v3398
        %v3400 = vpop.f32.mrb[0].mxu0
        %3401 = vmatprep.mubr.f32.mxu0 %v1957
        %3402 = vmatmul.mubr.f32.gmra.mrb[0].mxu0 %v1956
        %v3403 = vpop.f32.mrb[0].mxu0
        %v3404 = vadd.f32 %v3259, %v3403
        %v3405 = vpop.f32.mrb[0].mxu0
        %3406 = vmatprep.mubr.f32.mxu0 %v1973
        %3407 = vmatmul.mubr.f32.gmra.mrb[0].mxu0 %v1972
        %v3408 = vpop.f32.mrb[0].mxu0
        %v3409 = vadd.f32 %v3264, %v3408
        %v3410 = vpop.f32.mrb[0].mxu0
        %3411 = vmatprep.mubr.f32.mxu0 %v1989
        %3412 = vmatmul.mubr.f32.gmra.mrb[0].mxu0 %v1988
        %v3413 = vpop.f32.mrb[0].mxu0
        %v3414 = vadd.f32 %v3269, %v3413
        %v3415 = vpop.f32.mrb[0].mxu0
        %3416 = vmatprep.mubr.f32.mxu0 %v2005
        %3417 = vmatmul.mubr.f32.gmra.mrb[0].mxu0 %v2004
        %v3418 = vpop.f32.mrb[0].mxu0
        %v3419 = vadd.f32 %v3274, %v3418
        %v3420 = vpop.f32.mrb[0].mxu0
        %3421 = vdwg.mxu0
        %v3422 = vld [vmem:[#allocation2] sm:$0x1]
        %vm3423 = vcmask 130048
        %v3424 = vsel %vm3423, %v3344, 0.0
        %v3425 = vsel %vm3423, %v3349, 0.0
        %v3426 = vadd.f32 %v3424, %v3425
        %v3427 = vsel %vm3423, %v3354, 0.0
        %v3428 = vadd.f32 %v3426, %v3427
        %v3429 = vsel %vm3423, %v3359, 0.0
        %v3430 = vadd.f32 %v3428, %v3429
        %v3431 = vsel %vm3423, %v3364, 0.0
        %v3432 = vadd.f32 %v3430, %v3431
        %v3433 = vsel %vm3423, %v3369, 0.0
        %v3434 = vadd.f32 %v3432, %v3433
        %v3435 = vsel %vm3423, %v3374, 0.0
        %v3436 = vadd.f32 %v3434, %v3435
        %v3437 = vsel %vm3423, %v3379, 0.0
        %v3438 = vadd.f32 %v3436, %v3437
        %v3439 = vsel %vm3423, %v3384, 0.0
        %v3440 = vadd.f32 %v3438, %v3439
        %v3441 = vsel %vm3423, %v3389, 0.0
        %v3442 = vadd.f32 %v3440, %v3441
        %v3443 = vsel %vm3423, %v3394, 0.0
        %v3444 = vadd.f32 %v3442, %v3443
        %v3445 = vsel %vm3423, %v3399, 0.0
        %v3446 = vadd.f32 %v3444, %v3445
        %v3447 = vsel %vm3423, %v3404, 0.0
        %v3448 = vadd.f32 %v3446, %v3447
        %v3449 = vsel %vm3423, %v3409, 0.0
        %v3450 = vadd.f32 %v3448, %v3449
        %v3451 = vsel %vm3423, %v3414, 0.0
        %v3452 = vadd.f32 %v3450, %v3451
        %v3453 = vsel %vm3423, %v3419, 0.0
        %v3454 = vadd.f32 %v3452, %v3453
        %v3455 = vrot.slane %v3454, 4
        %v3456 = vadd.f32 %v3454, %v3455
        %v3457 = vrot.slane %v3456, 2
        %v3458 = vadd.f32 %v3456, %v3457
        %v3459 = vrot.slane %v3458, 1
        %v3460 = vadd.f32 %v3458, %v3459
        %v3461 = vadd.f32 %v3422, %v3460
        %vm3462 = vcmask 122880
        %3463 = vst.msk [vmem:[#allocation2] sm:$0x1] %vm3462, %v3461
        %p3464 = scmp.eq.s32.totalorder %s24, 1
        // Predicated region
        $region45: #{mynet_forward.1} parent=39 // pred_check
          %p3465 = pneg %p3464
        $region46: #{mynet_forward.1} parent=39 // pred_check_branch
          %3467 = sbr.rel (%p3465) target = $region48
        $region47: #{mynet_forward.1} parent=39 // pred_region
          %v3468 = vld [vmem:[#allocation2] sm:$0x1]
          %v3469 = vmul.f32 %v3468, 0.00390625
          %v3470 = vld [vmem:[%s4] sm:$0x1]
          %v3471 = vadd.f32 %v3469, %v3470
          %3472 = vst.msk [vmem:[%s239] sm:$0x1] %vm3462, %v3471
        $region48: #{mynet_forward.1} parent=39 // pred_fallthru
          _
        %s3473 = sand.u32 %s151, 1
        %s3474 = scalar_lea.sflag [#allocation4], %s3473
        %s3475 = sand.u32 %s151, 1
        %s3476 = scalar_lea.vmem [#allocation3], %s3475
        // Predicated region
        $region49: #{mynet_forward.1} parent=39 // pred_check
          %p3477 = pneg %p161
        $region50: #{mynet_forward.1} parent=39 // pred_check_branch
          %3479 = sbr.rel (%p3477) target = $region52
        $region51: #{mynet_forward.1} parent=39 // pred_region
          %s3481 = ssub.s32 16, 16
          %3482 = vsyncadd %s3474, %s3481
          %s3483 = smul.addr %s23, 16
          %s3484 = scalar_lea.hbm %s5, %s3483
          %s3486 = sshll.u32 %s3476, 4
          %s3487 = int_to_ptr.vmem [resolvable:$true] %s3486
          %3489 = dma.vmem_to_hbm [thread:$0]  %s3487, 16, %s3484, %s3474
        $region52: #{mynet_forward.1} parent=39 // pred_fallthru
          _
      $region40: #{mynet_forward.1} parent=5 // pred_fallthru
        _
      %p3490 = scmp.le.s32.totalorder 2, %s14
      // Predicated region
      $region53: #{mynet_forward.1} parent=5 // pred_check
        %p3491 = pneg %p3490
      $region54: #{mynet_forward.1} parent=5 // pred_check_branch
        %3493 = sbr.rel (%p3491) target = $region56
      $region55: #{mynet_forward.1} parent=5 // pred_region
        %s3494 = ssub.s32 %s14, 2
        // Predicated region
        $region57: #{mynet_forward.1} parent=55 // pred_check
          %p3495 = pneg %p167
        $region58: #{mynet_forward.1} parent=55 // pred_check_branch
          %3497 = sbr.rel (%p3495) target = $region60
        $region59: #{mynet_forward.1} parent=55 // pred_region
          %s3498 = sand.u32 %s152, 1
          %s3499 = scalar_lea.sflag [#allocation4], %s3498
          %s3500 = sand.u32 %s152, 1
          %s3501 = scalar_lea.vmem [#allocation3], %s3500
          %3502 = dma.done %s3499, 16
        $region60: #{mynet_forward.1} parent=55 // pred_fallthru
          _
      $region56: #{mynet_forward.1} parent=5 // pred_fallthru
        _
    $region6: #{mynet_forward.1} parent=1 // loop_footer
      %s18 = sadd.s32 1, %s14
    $region7: #{mynet_forward.1} parent=1 // loop_footer_branch
      %13 = sbr.rel target = $region3
    $region8: #{mynet_forward.1} parent=1 // loop_exit
      _
    %3503 = vsyncpa [#allocation4], 1
    %s3504 = scalar_lea.sflag [#allocation4], 1
    %3505 = vsyncpa %s3504, 1

</llo_original>
